<compile_context>
chip_gen: v6e
topology: v6e:2x2x1
jax: 0.10.0
libtpu: 0.0.40
codegen_flags: <defaults>
</compile_context>

<pallas_src>
import functools

import jax
import jax.numpy as jnp
import numpy as np
from jax import lax
from jax.experimental import pallas as pl
from jax.experimental.pallas import tpu as pltpu

EPS = 1e-5
BF16_SUBLANE = 16   # bf16 packs a (16, 128) tile per vreg


def residual_block_kernel(x_ref, g1_ref, be1_ref, w1_ref,
                          g2_ref, be2_ref, w2_ref, cb2_ref,
                          o_ref, hp_ref, *, width, dilation, interior_row, fuse_taps):
    N, L, C = x_ref.shape
    P = interior_row                         # sublane-aligned start row of the interior
    total_pad = dilation * (width - 1)
    pad_l = total_pad // 2                   # PyTorch 'same': left = total//2
    pad_r = total_pad - pad_l
    inv_nl = 1.0 / (N * L)

    # One-time zero of the halo rows (the interior [P, P+L) is rewritten every stage).
    if P > 0:
        hp_ref[:, :P, :] = jnp.zeros((N, P, C), hp_ref.dtype)
    if pad_r > 0:
        hp_ref[:, P + L:P + L + pad_r, :] = jnp.zeros((N, pad_r, C), hp_ref.dtype)

    def fold_bn(s, ss, gamma, beta):
        # Training-mode (biased-variance) BN folded to a per-channel scale/shift.
        # TODO(synk): one-pass E[h^2]-mean^2 variance; switch to a shifted/Welford form if
        #             production magnitudes make the cancellation matter.
        mean = s * inv_nl
        var = ss * inv_nl - mean * mean
        scale = gamma * lax.rsqrt(var + EPS)           # rsqrt -> EUP slot
        shift = beta - mean * scale
        return scale, shift

    def conv(w_ref):
        # hp_ref holds the BN+ReLU'd bf16 activations with zero 'same' halos.
        # TODO(synk): if the sublane-unaligned tap slices lower to extra VMEM copies,
        #             generate the shifts with pltpu.roll from one aligned load instead.
        taps = [hp_ref[:, P - pad_l + k * dilation: P - pad_l + k * dilation + L, :]
                for k in range(width)]
        if fuse_taps:
            # One K = W*C matmul (lane-concat offsets 0/C/2C are 128-aligned).
            opnd = jnp.concatenate(taps, axis=-1).reshape(N * L, width * C)
            return jnp.dot(opnd, w_ref[...], preferred_element_type=jnp.float32)
        # Per-tap K = C matmuls (matches v5e's 128-wide MXU); same fused weight layout.
        acc = jnp.dot(taps[0].reshape(N * L, C), w_ref[0:C, :],
                      preferred_element_type=jnp.float32)
        for k in range(1, width):
            acc = acc + jnp.dot(taps[k].reshape(N * L, C), w_ref[k * C:(k + 1) * C, :],
                                preferred_element_type=jnp.float32)
        return acc

    # ---- stage 1: BN1 stats on x, BN+ReLU+bf16 fused into the scratch store, conv1 ----
    x = x_ref[...]                                                     # (N, L, C) f32
    s1 = jnp.sum(x, axis=(0, 1), keepdims=True)                       # (1,1,C)
    ss1 = jnp.sum(x * x, axis=(0, 1), keepdims=True)
    scale1, shift1 = fold_bn(s1, ss1,
                             g1_ref[...].reshape(1, 1, C), be1_ref[...].reshape(1, 1, C))
    hp_ref[:, P:P + L, :] = jnp.maximum(x * scale1 + shift1, 0.0).astype(hp_ref.dtype)

    acc1 = conv(w1_ref)     # (N*L, C) f32; conv1 bias skipped: BN2's mean-sub cancels it exactly

    # ---- stage 2: BN2 stats on the live accumulator, fused store, conv2 ----
    s2 = jnp.sum(acc1, axis=0, keepdims=True)                         # (1, C)
    ss2 = jnp.sum(acc1 * acc1, axis=0, keepdims=True)
    scale2, shift2 = fold_bn(s2, ss2, g2_ref[...], be2_ref[...])
    hp_ref[:, P:P + L, :] = (jnp.maximum(acc1 * scale2 + shift2, 0.0)
                             .reshape(N, L, C).astype(hp_ref.dtype))

    acc2 = conv(w2_ref)

    o_ref[...] = (acc2.reshape(N, L, C) + cb2_ref[...].reshape(1, 1, C)
                  + x_ref[...]).astype(o_ref.dtype)


def residual_block_v2(x_ncl, params, *, width, dilation, fuse_taps=True):
    """x_ncl: (N, C, L) float32 (PyTorch layout). Returns (N, C, L)."""
    g1, be1, w1, cb1, g2, be2, w2, cb2 = params   # kernel-layout params
    del cb1   # exactly cancelled by BN2's mean subtraction (see kernel comment)
    x = jnp.transpose(x_ncl, (0, 2, 1)).astype(jnp.float32)           # NCL -> NLC
    N, L, C = x.shape
    total_pad = dilation * (width - 1)
    pad_l = total_pad // 2
    pad_r = total_pad - pad_l
    P = ((pad_l + BF16_SUBLANE - 1) // BF16_SUBLANE) * BF16_SUBLANE   # aligned interior start
    Lp = P + L + pad_r

    # Scoped-VMEM budget from the actual footprint (not a blanket 32 MiB).
    elem = N * L * C
    footprint = (2 * elem * 4            # x + out, f32, fully VMEM-resident
                 + N * Lp * C * 2        # bf16 padded scratch
                 + elem * 2 * width      # lane-concatenated conv operand (bf16)
                 + 2 * elem * 4)         # f32 conv accumulator + BN-apply temporary
    vmem_limit = int(min(96 * 1024 * 1024, max(4 * 1024 * 1024, 2 * footprint)))

    vmem = pl.BlockSpec(memory_space=pltpu.MemorySpace.VMEM)
    out = pl.pallas_call(
        functools.partial(residual_block_kernel, width=width, dilation=dilation,
                          interior_row=P, fuse_taps=fuse_taps),
        out_shape=jax.ShapeDtypeStruct((N, L, C), jnp.float32),
        in_specs=[vmem] * 8,
        out_specs=vmem,
        scratch_shapes=[pltpu.VMEM((N, Lp, C), jnp.bfloat16)],
        compiler_params=pltpu.CompilerParams(vmem_limit_bytes=vmem_limit),
    )(x, g1, be1, w1, g2, be2, w2, cb2)
    return jnp.transpose(out, (0, 2, 1))                              # NLC -> NCL


def init_params(key, channels, width):
    """Deterministic synthetic parameters (PyTorch shapes), plus kernel-layout versions."""
    ks = jax.random.split(key, 8)
    bound = 1.0 / np.sqrt(channels * width)
    raw = dict(
        g1=1.0 + 0.1 * jax.random.normal(ks[0], (channels,), jnp.float32),
        be1=0.1 * jax.random.normal(ks[1], (channels,), jnp.float32),
        w1=jax.random.uniform(ks[2], (channels, channels, width), jnp.float32, -bound, bound),
        cb1=jax.random.uniform(ks[3], (channels,), jnp.float32, -bound, bound),
        g2=1.0 + 0.1 * jax.random.normal(ks[4], (channels,), jnp.float32),
        be2=0.1 * jax.random.normal(ks[5], (channels,), jnp.float32),
        w2=jax.random.uniform(ks[6], (channels, channels, width), jnp.float32, -bound, bound),
        cb2=jax.random.uniform(ks[7], (channels,), jnp.float32, -bound, bound),
    )

    def conv_w(w):
        # (C_out, C_in, W) -> (W, C_in, C_out) -> (W*C_in, C_out) bf16, tap-major rows
        # (matches the kernel's lane-concatenated operand column order).
        return jnp.transpose(w, (2, 1, 0)).reshape(width * channels, channels).astype(jnp.bfloat16)

    kparams = (
        raw["g1"].reshape(1, channels), raw["be1"].reshape(1, channels),
        conv_w(raw["w1"]), raw["cb1"].reshape(1, channels),
        raw["g2"].reshape(1, channels), raw["be2"].reshape(1, channels),
        conv_w(raw["w2"]), raw["cb2"].reshape(1, channels),
    )
    return kparams, raw


def reference(x_ncl, raw, *, dilation):
    """Pure-JAX f32 reference in PyTorch NCL layout (training-mode BN, full precision)."""
    def bn_relu(x, g, b):
        mean = jnp.mean(x, axis=(0, 2), keepdims=True)
        var = jnp.mean((x - mean) ** 2, axis=(0, 2), keepdims=True)
        y = (x - mean) / jnp.sqrt(var + EPS) * g.reshape(1, -1, 1) + b.reshape(1, -1, 1)
        return jnp.maximum(y, 0.0)

    def conv(x, w, b):
        W = w.shape[-1]
        total = dilation * (W - 1)
        pad_left, pad_right = total // 2, total - total // 2
        y = lax.conv_general_dilated(
            x, w, window_strides=(1,), padding=[(pad_left, pad_right)],
            rhs_dilation=(dilation,), dimension_numbers=('NCH', 'OIH', 'NCH'),
            precision=jax.lax.Precision.HIGHEST)
        return y + b.reshape(1, -1, 1)

    h = bn_relu(x_ncl, raw["g1"], raw["be1"])
    h = conv(h, raw["w1"], raw["cb1"])
    h = bn_relu(h, raw["g2"], raw["be2"])
    h = conv(h, raw["w2"], raw["cb2"])
    return h + x_ncl


if __name__ == "__main__":
    key = jax.random.PRNGKey(0)
    kx, kp = jax.random.split(key)

    N, C, L = 2, 128, 256          # batch, channels, sequence length
    width, dilation = 3, 2

    x = jax.random.normal(kx, (N, C, L), jnp.float32)
    kparams, raw = init_params(kp, C, width)

    out = residual_block_v2(x, kparams, width=width, dilation=dilation)
    out = jax.block_until_ready(out)

    ref = reference(x, raw, dilation=dilation)
    # Tolerance loosened vs pure f32: the conv contractions (K = W*C = 384) run on the
    # bf16 MXU with f32 accumulation across two conv layers -> worst-case ~1e-2 abs
    # deviation from the f32 HIGHEST reference.
    np.testing.assert_allclose(np.asarray(out), np.asarray(ref), rtol=2e-2, atol=3e-2)
    print("KERNEL_OK")
</pallas_src>

<mosaic_0001>
module attributes {stable_mosaic.version = 11 : i64} {
  func.func @residual_block_kernel(%arg0: memref<2x256x128xf32, #tpu.memory_space<vmem>>, %arg1: memref<1x128xf32, #tpu.memory_space<vmem>>, %arg2: memref<1x128xf32, #tpu.memory_space<vmem>>, %arg3: memref<384x128xbf16, #tpu.memory_space<vmem>>, %arg4: memref<1x128xf32, #tpu.memory_space<vmem>>, %arg5: memref<1x128xf32, #tpu.memory_space<vmem>>, %arg6: memref<384x128xbf16, #tpu.memory_space<vmem>>, %arg7: memref<1x128xf32, #tpu.memory_space<vmem>>, %arg8: memref<2x256x128xf32, #tpu.memory_space<vmem>>, %arg9: memref<2x274x128xbf16, #tpu.memory_space<vmem>>) attributes {dimension_semantics = [], scalar_prefetch = 0 : i64, scratch_operands = 1 : i64, tpu.core_type = #tpu.core_type<tc>} {
    %cst = arith.constant 0.000000e+00 : bf16
    %0 = vector.broadcast %cst : bf16 to vector<2x16x128xbf16>
    %c0 = arith.constant 0 : index
    %c0_0 = arith.constant 0 : index
    %c0_1 = arith.constant 0 : index
    %1 = vector.load %arg9[%c0, %c0_0, %c0_1] : memref<2x274x128xbf16, #tpu.memory_space<vmem>>, vector<2x16x128xbf16>
    tpu.vector_store %arg9[%c0, %c0_0, %c0_1], %0 {strides = array<i32>} : memref<2x274x128xbf16, #tpu.memory_space<vmem>>, vector<2x16x128xbf16>,
    %cst_2 = arith.constant 0.000000e+00 : bf16
    %2 = vector.broadcast %cst_2 : bf16 to vector<2x2x128xbf16>
    %c0_3 = arith.constant 0 : index
    %c272 = arith.constant 272 : index
    %c0_4 = arith.constant 0 : index
    %3 = vector.load %arg9[%c0_3, %c272, %c0_4] : memref<2x274x128xbf16, #tpu.memory_space<vmem>>, vector<2x2x128xbf16>
    tpu.vector_store %arg9[%c0_3, %c272, %c0_4], %2 {strides = array<i32>} : memref<2x274x128xbf16, #tpu.memory_space<vmem>>, vector<2x2x128xbf16>,
    %c0_5 = arith.constant 0 : index
    %c0_6 = arith.constant 0 : index
    %c0_7 = arith.constant 0 : index
    %4 = vector.load %arg0[%c0_5, %c0_6, %c0_7] : memref<2x256x128xf32, #tpu.memory_space<vmem>>, vector<2x256x128xf32>
    %cst_8 = arith.constant dense<0.000000e+00> : vector<128xf32>
    %5 = vector.multi_reduction <add>, %4, %cst_8 [0, 1] : vector<2x256x128xf32> to vector<128xf32>
    %6 = vector.shape_cast %5 : vector<128xf32> to vector<1x1x128xf32>
    %7 = arith.mulf %4, %4 : vector<2x256x128xf32>
    %cst_9 = arith.constant dense<0.000000e+00> : vector<128xf32>
    %8 = vector.multi_reduction <add>, %7, %cst_9 [0, 1] : vector<2x256x128xf32> to vector<128xf32>
    %9 = vector.shape_cast %8 : vector<128xf32> to vector<1x1x128xf32>
    %c0_10 = arith.constant 0 : index
    %c0_11 = arith.constant 0 : index
    %10 = vector.load %arg1[%c0_10, %c0_11] : memref<1x128xf32, #tpu.memory_space<vmem>>, vector<1x128xf32>
    %11 = vector.shape_cast %10 : vector<1x128xf32> to vector<1x1x128xf32>
    %c0_12 = arith.constant 0 : index
    %c0_13 = arith.constant 0 : index
    %12 = vector.load %arg2[%c0_12, %c0_13] : memref<1x128xf32, #tpu.memory_space<vmem>>, vector<1x128xf32>
    %13 = vector.shape_cast %12 : vector<1x128xf32> to vector<1x1x128xf32>
    %cst_14 = arith.constant 0.001953125 : f32
    %14 = vector.broadcast %cst_14 : f32 to vector<1x1x128xf32>
    %15 = arith.mulf %6, %14 : vector<1x1x128xf32>
    %cst_15 = arith.constant 0.001953125 : f32
    %16 = vector.broadcast %cst_15 : f32 to vector<1x1x128xf32>
    %17 = arith.mulf %9, %16 : vector<1x1x128xf32>
    %18 = arith.mulf %15, %15 : vector<1x1x128xf32>
    %19 = arith.subf %17, %18 : vector<1x1x128xf32>
    %cst_16 = arith.constant 9.99999974E-6 : f32
    %20 = vector.broadcast %cst_16 : f32 to vector<1x1x128xf32>
    %21 = arith.addf %19, %20 : vector<1x1x128xf32>
    %22 = math.rsqrt %21 : vector<1x1x128xf32>
    %23 = arith.mulf %11, %22 : vector<1x1x128xf32>
    %24 = arith.mulf %15, %23 : vector<1x1x128xf32>
    %25 = arith.subf %13, %24 : vector<1x1x128xf32>
    %26 = vector.broadcast %23 : vector<1x1x128xf32> to vector<2x256x128xf32>
    %27 = arith.mulf %4, %26 : vector<2x256x128xf32>
    %28 = vector.broadcast %25 : vector<1x1x128xf32> to vector<2x256x128xf32>
    %29 = arith.addf %27, %28 : vector<2x256x128xf32>
    %cst_17 = arith.constant 0.000000e+00 : f32
    %30 = vector.broadcast %cst_17 : f32 to vector<2x256x128xf32>
    %31 = arith.maximumf %29, %30 : vector<2x256x128xf32>
    %32 = arith.truncf %31 : vector<2x256x128xf32> to vector<2x256x128xbf16>
    %c0_18 = arith.constant 0 : index
    %c16 = arith.constant 16 : index
    %c0_19 = arith.constant 0 : index
    %33 = vector.load %arg9[%c0_18, %c16, %c0_19] : memref<2x274x128xbf16, #tpu.memory_space<vmem>>, vector<2x256x128xbf16>
    tpu.vector_store %arg9[%c0_18, %c16, %c0_19], %32 {strides = array<i32>} : memref<2x274x128xbf16, #tpu.memory_space<vmem>>, vector<2x256x128xbf16>,
    %c0_20 = arith.constant 0 : index
    %c14 = arith.constant 14 : index
    %c0_21 = arith.constant 0 : index
    %34 = vector.load %arg9[%c0_20, %c14, %c0_21] : memref<2x274x128xbf16, #tpu.memory_space<vmem>>, vector<2x256x128xbf16>
    %c0_22 = arith.constant 0 : index
    %c16_23 = arith.constant 16 : index
    %c0_24 = arith.constant 0 : index
    %35 = vector.load %arg9[%c0_22, %c16_23, %c0_24] : memref<2x274x128xbf16, #tpu.memory_space<vmem>>, vector<2x256x128xbf16>
    %c0_25 = arith.constant 0 : index
    %c18 = arith.constant 18 : index
    %c0_26 = arith.constant 0 : index
    %36 = vector.load %arg9[%c0_25, %c18, %c0_26] : memref<2x274x128xbf16, #tpu.memory_space<vmem>>, vector<2x256x128xbf16>
    %37 = tpu.concatenate %34, %35, %36 in 2 : vector<2x256x128xbf16>, vector<2x256x128xbf16>, vector<2x256x128xbf16> -> vector<2x256x384xbf16>
    %38 = vector.shape_cast %37 : vector<2x256x384xbf16> to vector<512x384xbf16>
    %c0_27 = arith.constant 0 : index
    %c0_28 = arith.constant 0 : index
    %39 = vector.load %arg3[%c0_27, %c0_28] : memref<384x128xbf16, #tpu.memory_space<vmem>>, vector<384x128xbf16>
    %cst_29 = arith.constant dense<0.000000e+00> : vector<512x128xf32>
    %40 = tpu.matmul %38, %39, %cst_29 {dimension_numbers = #tpu.dot_dimension_numbers<[1], [0], [0], [1], [0, 0, 1, 1], [], []>} : vector<512x384xbf16>, vector<384x128xbf16>, vector<512x128xf32> -> vector<512x128xf32>
    %cst_30 = arith.constant dense<0.000000e+00> : vector<128xf32>
    %41 = vector.multi_reduction <add>, %40, %cst_30 [0] : vector<512x128xf32> to vector<128xf32>
    %42 = vector.shape_cast %41 : vector<128xf32> to vector<1x128xf32>
    %43 = arith.mulf %40, %40 : vector<512x128xf32>
    %cst_31 = arith.constant dense<0.000000e+00> : vector<128xf32>
    %44 = vector.multi_reduction <add>, %43, %cst_31 [0] : vector<512x128xf32> to vector<128xf32>
    %45 = vector.shape_cast %44 : vector<128xf32> to vector<1x128xf32>
    %c0_32 = arith.constant 0 : index
    %c0_33 = arith.constant 0 : index
    %46 = vector.load %arg4[%c0_32, %c0_33] : memref<1x128xf32, #tpu.memory_space<vmem>>, vector<1x128xf32>
    %c0_34 = arith.constant 0 : index
    %c0_35 = arith.constant 0 : index
    %47 = vector.load %arg5[%c0_34, %c0_35] : memref<1x128xf32, #tpu.memory_space<vmem>>, vector<1x128xf32>
    %cst_36 = arith.constant 0.001953125 : f32
    %48 = vector.broadcast %cst_36 : f32 to vector<1x128xf32>
    %49 = arith.mulf %42, %48 : vector<1x128xf32>
    %cst_37 = arith.constant 0.001953125 : f32
    %50 = vector.broadcast %cst_37 : f32 to vector<1x128xf32>
    %51 = arith.mulf %45, %50 : vector<1x128xf32>
    %52 = arith.mulf %49, %49 : vector<1x128xf32>
    %53 = arith.subf %51, %52 : vector<1x128xf32>
    %cst_38 = arith.constant 9.99999974E-6 : f32
    %54 = vector.broadcast %cst_38 : f32 to vector<1x128xf32>
    %55 = arith.addf %53, %54 : vector<1x128xf32>
    %56 = math.rsqrt %55 : vector<1x128xf32>
    %57 = arith.mulf %46, %56 : vector<1x128xf32>
    %58 = arith.mulf %49, %57 : vector<1x128xf32>
    %59 = arith.subf %47, %58 : vector<1x128xf32>
    %60 = vector.broadcast %57 : vector<1x128xf32> to vector<512x128xf32>
    %61 = arith.mulf %40, %60 : vector<512x128xf32>
    %62 = vector.broadcast %59 : vector<1x128xf32> to vector<512x128xf32>
    %63 = arith.addf %61, %62 : vector<512x128xf32>
    %cst_39 = arith.constant 0.000000e+00 : f32
    %64 = vector.broadcast %cst_39 : f32 to vector<512x128xf32>
    %65 = arith.maximumf %63, %64 : vector<512x128xf32>
    %66 = vector.shape_cast %65 : vector<512x128xf32> to vector<2x256x128xf32>
    %67 = arith.truncf %66 : vector<2x256x128xf32> to vector<2x256x128xbf16>
    %c0_40 = arith.constant 0 : index
    %c16_41 = arith.constant 16 : index
    %c0_42 = arith.constant 0 : index
    %68 = vector.load %arg9[%c0_40, %c16_41, %c0_42] : memref<2x274x128xbf16, #tpu.memory_space<vmem>>, vector<2x256x128xbf16>
    tpu.vector_store %arg9[%c0_40, %c16_41, %c0_42], %67 {strides = array<i32>} : memref<2x274x128xbf16, #tpu.memory_space<vmem>>, vector<2x256x128xbf16>,
    %c0_43 = arith.constant 0 : index
    %c14_44 = arith.constant 14 : index
    %c0_45 = arith.constant 0 : index
    %69 = vector.load %arg9[%c0_43, %c14_44, %c0_45] : memref<2x274x128xbf16, #tpu.memory_space<vmem>>, vector<2x256x128xbf16>
    %c0_46 = arith.constant 0 : index
    %c16_47 = arith.constant 16 : index
    %c0_48 = arith.constant 0 : index
    %70 = vector.load %arg9[%c0_46, %c16_47, %c0_48] : memref<2x274x128xbf16, #tpu.memory_space<vmem>>, vector<2x256x128xbf16>
    %c0_49 = arith.constant 0 : index
    %c18_50 = arith.constant 18 : index
    %c0_51 = arith.constant 0 : index
    %71 = vector.load %arg9[%c0_49, %c18_50, %c0_51] : memref<2x274x128xbf16, #tpu.memory_space<vmem>>, vector<2x256x128xbf16>
    %72 = tpu.concatenate %69, %70, %71 in 2 : vector<2x256x128xbf16>, vector<2x256x128xbf16>, vector<2x256x128xbf16> -> vector<2x256x384xbf16>
    %73 = vector.shape_cast %72 : vector<2x256x384xbf16> to vector<512x384xbf16>
    %c0_52 = arith.constant 0 : index
    %c0_53 = arith.constant 0 : index
    %74 = vector.load %arg6[%c0_52, %c0_53] : memref<384x128xbf16, #tpu.memory_space<vmem>>, vector<384x128xbf16>
    %cst_54 = arith.constant dense<0.000000e+00> : vector<512x128xf32>
    %75 = tpu.matmul %73, %74, %cst_54 {dimension_numbers = #tpu.dot_dimension_numbers<[1], [0], [0], [1], [0, 0, 1, 1], [], []>} : vector<512x384xbf16>, vector<384x128xbf16>, vector<512x128xf32> -> vector<512x128xf32>
    %76 = vector.shape_cast %75 : vector<512x128xf32> to vector<2x256x128xf32>
    %c0_55 = arith.constant 0 : index
    %c0_56 = arith.constant 0 : index
    %77 = vector.load %arg7[%c0_55, %c0_56] : memref<1x128xf32, #tpu.memory_space<vmem>>, vector<1x128xf32>
    %78 = vector.shape_cast %77 : vector<1x128xf32> to vector<1x1x128xf32>
    %79 = vector.broadcast %78 : vector<1x1x128xf32> to vector<2x256x128xf32>
    %80 = arith.addf %76, %79 : vector<2x256x128xf32>
    %c0_57 = arith.constant 0 : index
    %c0_58 = arith.constant 0 : index
    %c0_59 = arith.constant 0 : index
    %81 = vector.load %arg0[%c0_57, %c0_58, %c0_59] : memref<2x256x128xf32, #tpu.memory_space<vmem>>, vector<2x256x128xf32>
    %82 = arith.addf %80, %81 : vector<2x256x128xf32>
    %c0_60 = arith.constant 0 : index
    %c0_61 = arith.constant 0 : index
    %c0_62 = arith.constant 0 : index
    %83 = vector.load %arg8[%c0_60, %c0_61, %c0_62] : memref<2x256x128xf32, #tpu.memory_space<vmem>>, vector<2x256x128xf32>
    tpu.vector_store %arg8[%c0_60, %c0_61, %c0_62], %82 {strides = array<i32>} : memref<2x256x128xf32, #tpu.memory_space<vmem>>, vector<2x256x128xf32>,
    return
  }
}

</mosaic_0001>

<llo_original>
// kernel: tpu_custom_call.1
$region0: #{tpu_custom_call.1}
  #allocation0 [shape = 'u32[]', space=smem, size = 0x4, offset = 0x4, fixed_abs, tag = 'smem constant byte address 0x4 - core index']
  #allocation1 [shape = 'u32[144,128]{1,0:T(1,128)}', space=vmem, size = 0x12000, scoped, tag = 'internal scratch']
  #allocation2 [shape = 'bf16[2,274,128]{2,1,0:T(8,128)(2,1)}', space=vmem, size = 0x23000, scoped, tag = 'scratch operand']
  %s0 = inlined_call_operand.hbm [shape: f32[2,256,128], index: 0, kind: input, shape index: {}]
  %s1 = inlined_call_operand.vmem [shape: f32[1,128], index: 1, kind: input, shape index: {}]
  %s2 = inlined_call_operand.vmem [shape: f32[1,128], index: 2, kind: input, shape index: {}]
  %s3 = inlined_call_operand.hbm [shape: bf16[384,128], index: 3, kind: input, shape index: {}]
  %s4 = inlined_call_operand.vmem [shape: f32[1,128], index: 4, kind: input, shape index: {}]
  %s5 = inlined_call_operand.vmem [shape: f32[1,128], index: 5, kind: input, shape index: {}]
  %s6 = inlined_call_operand.hbm [shape: bf16[384,128], index: 6, kind: input, shape index: {}]
  %s7 = inlined_call_operand.vmem [shape: f32[1,128], index: 7, kind: input, shape index: {}]
  %s8 = inlined_call_operand.hbm [shape: f32[2,256,128], index: 8, kind: output, shape index: {}]
  %s9 = sld [smem:[#allocation0]]
  $region54: #{tpu_custom_call.1} parent=0
    _
  %s11 = ssub.s32 1, %s9
  %s12 = scalar_select 0, %s11, %s9
  $region1: #{tpu_custom_call.1} parent=0
    #allocation3 [shape = 'u8[262144]{0}', space=vmem, size = 0x40000, scoped, tag = 'input window, operand 0, single buffered']
    #allocation4 [shape = 's32[1]{0}', space=sflag, size = 0x4, scoped, tag = 'scoped memory for tpu_custom_call.1']
    #allocation5 [shape = 's32[1]{0}', space=sflag, size = 0x4, scoped, tag = 'scoped memory for tpu_custom_call.1']
    #allocation6 [shape = 'u8[98304]{0}', space=vmem, size = 0x18000, scoped, tag = 'input window, operand 3, single buffered']
    #allocation7 [shape = 's32[1]{0}', space=sflag, size = 0x4, scoped, tag = 'scoped memory for tpu_custom_call.1']
    #allocation8 [shape = 'u8[98304]{0}', space=vmem, size = 0x18000, scoped, tag = 'input window, operand 6, single buffered']
    #allocation9 [shape = 'u8[262144]{0}', space=vmem, size = 0x40000, scoped, tag = 'output window, operand 0, single buffered']
    %13 = vsyncpa [#allocation4], 0
    %14 = vsyncpa [#allocation7], 0
    %15 = vsyncpa [#allocation5], 0
    // Predicated region
    $region2: #{tpu_custom_call.1} parent=1 // pred_check
      _
    $region3: #{tpu_custom_call.1} parent=1 // pred_check_branch
      %17 = sbr.rel (0) target = $region5
    $region4: #{tpu_custom_call.1} parent=1 // pred_region
      %s19 = ssub.s32 8192, 8192
      %20 = vsyncadd [#allocation4], %s19
      %s21 = sshll.u32 [#allocation3], 4
      %s22 = int_to_ptr.vmem [resolvable:$true] %s21
      %27 = dma.hbm_to_vmem [thread:$0]  %s0, 8192, %s22, [#allocation4], 128, 128, 8
    $region5: #{tpu_custom_call.1} parent=1 // pred_fallthru
      _
    // Predicated region
    $region6: #{tpu_custom_call.1} parent=1 // pred_check
      _
    $region7: #{tpu_custom_call.1} parent=1 // pred_check_branch
      %29 = sbr.rel (0) target = $region9
    $region8: #{tpu_custom_call.1} parent=1 // pred_region
      _
    $region9: #{tpu_custom_call.1} parent=1 // pred_fallthru
      _
    // Predicated region
    $region10: #{tpu_custom_call.1} parent=1 // pred_check
      _
    $region11: #{tpu_custom_call.1} parent=1 // pred_check_branch
      %31 = sbr.rel (0) target = $region13
    $region12: #{tpu_custom_call.1} parent=1 // pred_region
      _
    $region13: #{tpu_custom_call.1} parent=1 // pred_fallthru
      _
    // Predicated region
    $region14: #{tpu_custom_call.1} parent=1 // pred_check
      _
    $region15: #{tpu_custom_call.1} parent=1 // pred_check_branch
      %33 = sbr.rel (0) target = $region17
    $region16: #{tpu_custom_call.1} parent=1 // pred_region
      %s35 = ssub.s32 3072, 3072
      %36 = vsyncadd [#allocation7], %s35
      %s37 = sshll.u32 [#allocation6], 4
      %s38 = int_to_ptr.vmem [resolvable:$true] %s37
      %43 = dma.hbm_to_vmem [thread:$0]  %s3, 3072, %s38, [#allocation7], 64, 64, 4
    $region17: #{tpu_custom_call.1} parent=1 // pred_fallthru
      _
    // Predicated region
    $region18: #{tpu_custom_call.1} parent=1 // pred_check
      _
    $region19: #{tpu_custom_call.1} parent=1 // pred_check_branch
      %45 = sbr.rel (0) target = $region21
    $region20: #{tpu_custom_call.1} parent=1 // pred_region
      _
    $region21: #{tpu_custom_call.1} parent=1 // pred_fallthru
      _
    // Predicated region
    $region22: #{tpu_custom_call.1} parent=1 // pred_check
      _
    $region23: #{tpu_custom_call.1} parent=1 // pred_check_branch
      %47 = sbr.rel (0) target = $region25
    $region24: #{tpu_custom_call.1} parent=1 // pred_region
      _
    $region25: #{tpu_custom_call.1} parent=1 // pred_fallthru
      _
    // Predicated region
    $region26: #{tpu_custom_call.1} parent=1 // pred_check
      _
    $region27: #{tpu_custom_call.1} parent=1 // pred_check_branch
      %49 = sbr.rel (0) target = $region29
    $region28: #{tpu_custom_call.1} parent=1 // pred_region
      %s51 = ssub.s32 3072, 3072
      %52 = vsyncadd [#allocation7], %s51
      %s53 = sshll.u32 [#allocation8], 4
      %s54 = int_to_ptr.vmem [resolvable:$true] %s53
      %59 = dma.hbm_to_vmem [thread:$0]  %s6, 3072, %s54, [#allocation7], 64, 64, 4
    $region29: #{tpu_custom_call.1} parent=1 // pred_fallthru
      _
    // Predicated region
    $region30: #{tpu_custom_call.1} parent=1 // pred_check
      _
    $region31: #{tpu_custom_call.1} parent=1 // pred_check_branch
      %61 = sbr.rel (0) target = $region33
    $region32: #{tpu_custom_call.1} parent=1 // pred_region
      _
    $region33: #{tpu_custom_call.1} parent=1 // pred_fallthru
      _
    // Predicated region
    $region34: #{tpu_custom_call.1} parent=1 // pred_check
      _
    $region35: #{tpu_custom_call.1} parent=1 // pred_check_branch
      %63 = sbr.rel (0) target = $region37
    $region36: #{tpu_custom_call.1} parent=1 // pred_region
      %64 = dma.done [#allocation4], 8192
    $region37: #{tpu_custom_call.1} parent=1 // pred_fallthru
      _
    // Predicated region
    $region38: #{tpu_custom_call.1} parent=1 // pred_check
      _
    $region39: #{tpu_custom_call.1} parent=1 // pred_check_branch
      %66 = sbr.rel (0) target = $region41
    $region40: #{tpu_custom_call.1} parent=1 // pred_region
      %67 = dma.done [#allocation7], 3072
    $region41: #{tpu_custom_call.1} parent=1 // pred_fallthru
      _
    // Predicated region
    $region42: #{tpu_custom_call.1} parent=1 // pred_check
      _
    $region43: #{tpu_custom_call.1} parent=1 // pred_check_branch
      %69 = sbr.rel (0) target = $region45
    $region44: #{tpu_custom_call.1} parent=1 // pred_region
      %70 = dma.done [#allocation7], 3072
    $region45: #{tpu_custom_call.1} parent=1 // pred_fallthru
      _
    %72 = vst [vmem:[#allocation2] sm:$0xf] 0
    %73 = vst [vmem:[#allocation2 + $0x4] sm:$0xf] 0
    %74 = vst [vmem:[#allocation2 + $0x8c] sm:$0xf] 0
    %75 = vst [vmem:[#allocation2 + $0x90] sm:$0xf] 0
    %76 = vst [vmem:[#allocation2 + $0x88] sm:$0x1] 0
    %77 = vst [vmem:[#allocation2 + $0x114] sm:$0x1] 0
    %v78 = vld [vmem:[#allocation3] sm:$0xff]
    %v79 = vld [vmem:[#allocation3 + $0x8] sm:$0xff]
    %v80 = vld [vmem:[#allocation3 + $0x10] sm:$0xff]
    %v81 = vld [vmem:[#allocation3 + $0x18] sm:$0xff]
    %v82 = vld [vmem:[#allocation3 + $0x20] sm:$0xff]
    %v83 = vld [vmem:[#allocation3 + $0x28] sm:$0xff]
    %v84 = vld [vmem:[#allocation3 + $0x30] sm:$0xff]
    %v85 = vld [vmem:[#allocation3 + $0x38] sm:$0xff]
    %v86 = vld [vmem:[#allocation3 + $0x40] sm:$0xff]
    %v87 = vld [vmem:[#allocation3 + $0x48] sm:$0xff]
    %v88 = vld [vmem:[#allocation3 + $0x50] sm:$0xff]
    %v89 = vld [vmem:[#allocation3 + $0x58] sm:$0xff]
    %v90 = vld [vmem:[#allocation3 + $0x60] sm:$0xff]
    %v91 = vld [vmem:[#allocation3 + $0x68] sm:$0xff]
    %v92 = vld [vmem:[#allocation3 + $0x70] sm:$0xff]
    %v93 = vld [vmem:[#allocation3 + $0x78] sm:$0xff]
    %v94 = vld [vmem:[#allocation3 + $0x80] sm:$0xff]
    %v95 = vld [vmem:[#allocation3 + $0x88] sm:$0xff]
    %v96 = vld [vmem:[#allocation3 + $0x90] sm:$0xff]
    %v97 = vld [vmem:[#allocation3 + $0x98] sm:$0xff]
    %v98 = vld [vmem:[#allocation3 + $0xa0] sm:$0xff]
    %v99 = vld [vmem:[#allocation3 + $0xa8] sm:$0xff]
    %v100 = vld [vmem:[#allocation3 + $0xb0] sm:$0xff]
    %v101 = vld [vmem:[#allocation3 + $0xb8] sm:$0xff]
    %v102 = vld [vmem:[#allocation3 + $0xc0] sm:$0xff]
    %v103 = vld [vmem:[#allocation3 + $0xc8] sm:$0xff]
    %v104 = vld [vmem:[#allocation3 + $0xd0] sm:$0xff]
    %v105 = vld [vmem:[#allocation3 + $0xd8] sm:$0xff]
    %v106 = vld [vmem:[#allocation3 + $0xe0] sm:$0xff]
    %v107 = vld [vmem:[#allocation3 + $0xe8] sm:$0xff]
    %v108 = vld [vmem:[#allocation3 + $0xf0] sm:$0xff]
    %v109 = vld [vmem:[#allocation3 + $0xf8] sm:$0xff]
    %v110 = vld [vmem:[#allocation3 + $0x100] sm:$0xff]
    %v111 = vld [vmem:[#allocation3 + $0x108] sm:$0xff]
    %v112 = vld [vmem:[#allocation3 + $0x110] sm:$0xff]
    %v113 = vld [vmem:[#allocation3 + $0x118] sm:$0xff]
    %v114 = vld [vmem:[#allocation3 + $0x120] sm:$0xff]
    %v115 = vld [vmem:[#allocation3 + $0x128] sm:$0xff]
    %v116 = vld [vmem:[#allocation3 + $0x130] sm:$0xff]
    %v117 = vld [vmem:[#allocation3 + $0x138] sm:$0xff]
    %v118 = vld [vmem:[#allocation3 + $0x140] sm:$0xff]
    %v119 = vld [vmem:[#allocation3 + $0x148] sm:$0xff]
    %v120 = vld [vmem:[#allocation3 + $0x150] sm:$0xff]
    %v121 = vld [vmem:[#allocation3 + $0x158] sm:$0xff]
    %v122 = vld [vmem:[#allocation3 + $0x160] sm:$0xff]
    %v123 = vld [vmem:[#allocation3 + $0x168] sm:$0xff]
    %v124 = vld [vmem:[#allocation3 + $0x170] sm:$0xff]
    %v125 = vld [vmem:[#allocation3 + $0x178] sm:$0xff]
    %v126 = vld [vmem:[#allocation3 + $0x180] sm:$0xff]
    %v127 = vld [vmem:[#allocation3 + $0x188] sm:$0xff]
    %v128 = vld [vmem:[#allocation3 + $0x190] sm:$0xff]
    %v129 = vld [vmem:[#allocation3 + $0x198] sm:$0xff]
    %v130 = vld [vmem:[#allocation3 + $0x1a0] sm:$0xff]
    %v131 = vld [vmem:[#allocation3 + $0x1a8] sm:$0xff]
    %v132 = vld [vmem:[#allocation3 + $0x1b0] sm:$0xff]
    %v133 = vld [vmem:[#allocation3 + $0x1b8] sm:$0xff]
    %v134 = vld [vmem:[#allocation3 + $0x1c0] sm:$0xff]
    %v135 = vld [vmem:[#allocation3 + $0x1c8] sm:$0xff]
    %v136 = vld [vmem:[#allocation3 + $0x1d0] sm:$0xff]
    %v137 = vld [vmem:[#allocation3 + $0x1d8] sm:$0xff]
    %v138 = vld [vmem:[#allocation3 + $0x1e0] sm:$0xff]
    %v139 = vld [vmem:[#allocation3 + $0x1e8] sm:$0xff]
    %v140 = vld [vmem:[#allocation3 + $0x1f0] sm:$0xff]
    %v141 = vld [vmem:[#allocation3 + $0x1f8] sm:$0xff]
    %v142 = vadd.f32 %v78, %v79
    %v143 = vadd.f32 %v142, %v80
    %v144 = vadd.f32 %v143, %v81
    %v145 = vadd.f32 %v144, %v82
    %v146 = vadd.f32 %v145, %v83
    %v147 = vadd.f32 %v146, %v84
    %v148 = vadd.f32 %v147, %v85
    %v149 = vadd.f32 %v148, %v86
    %v150 = vadd.f32 %v149, %v87
    %v151 = vadd.f32 %v150, %v88
    %v152 = vadd.f32 %v151, %v89
    %v153 = vadd.f32 %v152, %v90
    %v154 = vadd.f32 %v153, %v91
    %v155 = vadd.f32 %v154, %v92
    %v156 = vadd.f32 %v155, %v93
    %v157 = vadd.f32 %v156, %v94
    %v158 = vadd.f32 %v157, %v95
    %v159 = vadd.f32 %v158, %v96
    %v160 = vadd.f32 %v159, %v97
    %v161 = vadd.f32 %v160, %v98
    %v162 = vadd.f32 %v161, %v99
    %v163 = vadd.f32 %v162, %v100
    %v164 = vadd.f32 %v163, %v101
    %v165 = vadd.f32 %v164, %v102
    %v166 = vadd.f32 %v165, %v103
    %v167 = vadd.f32 %v166, %v104
    %v168 = vadd.f32 %v167, %v105
    %v169 = vadd.f32 %v168, %v106
    %v170 = vadd.f32 %v169, %v107
    %v171 = vadd.f32 %v170, %v108
    %v172 = vadd.f32 %v171, %v109
    %v173 = vadd.f32 %v172, %v110
    %v174 = vadd.f32 %v173, %v111
    %v175 = vadd.f32 %v174, %v112
    %v176 = vadd.f32 %v175, %v113
    %v177 = vadd.f32 %v176, %v114
    %v178 = vadd.f32 %v177, %v115
    %v179 = vadd.f32 %v178, %v116
    %v180 = vadd.f32 %v179, %v117
    %v181 = vadd.f32 %v180, %v118
    %v182 = vadd.f32 %v181, %v119
    %v183 = vadd.f32 %v182, %v120
    %v184 = vadd.f32 %v183, %v121
    %v185 = vadd.f32 %v184, %v122
    %v186 = vadd.f32 %v185, %v123
    %v187 = vadd.f32 %v186, %v124
    %v188 = vadd.f32 %v187, %v125
    %v189 = vadd.f32 %v188, %v126
    %v190 = vadd.f32 %v189, %v127
    %v191 = vadd.f32 %v190, %v128
    %v192 = vadd.f32 %v191, %v129
    %v193 = vadd.f32 %v192, %v130
    %v194 = vadd.f32 %v193, %v131
    %v195 = vadd.f32 %v194, %v132
    %v196 = vadd.f32 %v195, %v133
    %v197 = vadd.f32 %v196, %v134
    %v198 = vadd.f32 %v197, %v135
    %v199 = vadd.f32 %v198, %v136
    %v200 = vadd.f32 %v199, %v137
    %v201 = vadd.f32 %v200, %v138
    %v202 = vadd.f32 %v201, %v139
    %v203 = vadd.f32 %v202, %v140
    %v204 = vadd.f32 %v203, %v141
    %v205 = vrot.slane %v204, 4
    %v206 = vadd.f32 %v204, %v205
    %v207 = vrot.slane %v206, 2
    %v208 = vadd.f32 %v206, %v207
    %v209 = vrot.slane %v208, 1
    %v210 = vadd.f32 %v208, %v209
    %v211 = vmul.f32 %v78, %v78
    %v212 = vmul.f32 %v79, %v79
    %v213 = vmul.f32 %v80, %v80
    %v214 = vmul.f32 %v81, %v81
    %v215 = vmul.f32 %v82, %v82
    %v216 = vmul.f32 %v83, %v83
    %v217 = vmul.f32 %v84, %v84
    %v218 = vmul.f32 %v85, %v85
    %v219 = vmul.f32 %v86, %v86
    %v220 = vmul.f32 %v87, %v87
    %v221 = vmul.f32 %v88, %v88
    %v222 = vmul.f32 %v89, %v89
    %v223 = vmul.f32 %v90, %v90
    %v224 = vmul.f32 %v91, %v91
    %v225 = vmul.f32 %v92, %v92
    %v226 = vmul.f32 %v93, %v93
    %v227 = vmul.f32 %v94, %v94
    %v228 = vmul.f32 %v95, %v95
    %v229 = vmul.f32 %v96, %v96
    %v230 = vmul.f32 %v97, %v97
    %v231 = vmul.f32 %v98, %v98
    %v232 = vmul.f32 %v99, %v99
    %v233 = vmul.f32 %v100, %v100
    %v234 = vmul.f32 %v101, %v101
    %v235 = vmul.f32 %v102, %v102
    %v236 = vmul.f32 %v103, %v103
    %v237 = vmul.f32 %v104, %v104
    %v238 = vmul.f32 %v105, %v105
    %v239 = vmul.f32 %v106, %v106
    %v240 = vmul.f32 %v107, %v107
    %v241 = vmul.f32 %v108, %v108
    %v242 = vmul.f32 %v109, %v109
    %v243 = vmul.f32 %v110, %v110
    %v244 = vmul.f32 %v111, %v111
    %v245 = vmul.f32 %v112, %v112
    %v246 = vmul.f32 %v113, %v113
    %v247 = vmul.f32 %v114, %v114
    %v248 = vmul.f32 %v115, %v115
    %v249 = vmul.f32 %v116, %v116
    %v250 = vmul.f32 %v117, %v117
    %v251 = vmul.f32 %v118, %v118
    %v252 = vmul.f32 %v119, %v119
    %v253 = vmul.f32 %v120, %v120
    %v254 = vmul.f32 %v121, %v121
    %v255 = vmul.f32 %v122, %v122
    %v256 = vmul.f32 %v123, %v123
    %v257 = vmul.f32 %v124, %v124
    %v258 = vmul.f32 %v125, %v125
    %v259 = vmul.f32 %v126, %v126
    %v260 = vmul.f32 %v127, %v127
    %v261 = vmul.f32 %v128, %v128
    %v262 = vmul.f32 %v129, %v129
    %v263 = vmul.f32 %v130, %v130
    %v264 = vmul.f32 %v131, %v131
    %v265 = vmul.f32 %v132, %v132
    %v266 = vmul.f32 %v133, %v133
    %v267 = vmul.f32 %v134, %v134
    %v268 = vmul.f32 %v135, %v135
    %v269 = vmul.f32 %v136, %v136
    %v270 = vmul.f32 %v137, %v137
    %v271 = vmul.f32 %v138, %v138
    %v272 = vmul.f32 %v139, %v139
    %v273 = vmul.f32 %v140, %v140
    %v274 = vmul.f32 %v141, %v141
    %v275 = vadd.f32 %v211, %v212
    %v276 = vadd.f32 %v275, %v213
    %v277 = vadd.f32 %v276, %v214
    %v278 = vadd.f32 %v277, %v215
    %v279 = vadd.f32 %v278, %v216
    %v280 = vadd.f32 %v279, %v217
    %v281 = vadd.f32 %v280, %v218
    %v282 = vadd.f32 %v281, %v219
    %v283 = vadd.f32 %v282, %v220
    %v284 = vadd.f32 %v283, %v221
    %v285 = vadd.f32 %v284, %v222
    %v286 = vadd.f32 %v285, %v223
    %v287 = vadd.f32 %v286, %v224
    %v288 = vadd.f32 %v287, %v225
    %v289 = vadd.f32 %v288, %v226
    %v290 = vadd.f32 %v289, %v227
    %v291 = vadd.f32 %v290, %v228
    %v292 = vadd.f32 %v291, %v229
    %v293 = vadd.f32 %v292, %v230
    %v294 = vadd.f32 %v293, %v231
    %v295 = vadd.f32 %v294, %v232
    %v296 = vadd.f32 %v295, %v233
    %v297 = vadd.f32 %v296, %v234
    %v298 = vadd.f32 %v297, %v235
    %v299 = vadd.f32 %v298, %v236
    %v300 = vadd.f32 %v299, %v237
    %v301 = vadd.f32 %v300, %v238
    %v302 = vadd.f32 %v301, %v239
    %v303 = vadd.f32 %v302, %v240
    %v304 = vadd.f32 %v303, %v241
    %v305 = vadd.f32 %v304, %v242
    %v306 = vadd.f32 %v305, %v243
    %v307 = vadd.f32 %v306, %v244
    %v308 = vadd.f32 %v307, %v245
    %v309 = vadd.f32 %v308, %v246
    %v310 = vadd.f32 %v309, %v247
    %v311 = vadd.f32 %v310, %v248
    %v312 = vadd.f32 %v311, %v249
    %v313 = vadd.f32 %v312, %v250
    %v314 = vadd.f32 %v313, %v251
    %v315 = vadd.f32 %v314, %v252
    %v316 = vadd.f32 %v315, %v253
    %v317 = vadd.f32 %v316, %v254
    %v318 = vadd.f32 %v317, %v255
    %v319 = vadd.f32 %v318, %v256
    %v320 = vadd.f32 %v319, %v257
    %v321 = vadd.f32 %v320, %v258
    %v322 = vadd.f32 %v321, %v259
    %v323 = vadd.f32 %v322, %v260
    %v324 = vadd.f32 %v323, %v261
    %v325 = vadd.f32 %v324, %v262
    %v326 = vadd.f32 %v325, %v263
    %v327 = vadd.f32 %v326, %v264
    %v328 = vadd.f32 %v327, %v265
    %v329 = vadd.f32 %v328, %v266
    %v330 = vadd.f32 %v329, %v267
    %v331 = vadd.f32 %v330, %v268
    %v332 = vadd.f32 %v331, %v269
    %v333 = vadd.f32 %v332, %v270
    %v334 = vadd.f32 %v333, %v271
    %v335 = vadd.f32 %v334, %v272
    %v336 = vadd.f32 %v335, %v273
    %v337 = vadd.f32 %v336, %v274
    %v338 = vrot.slane %v337, 4
    %v339 = vadd.f32 %v337, %v338
    %v340 = vrot.slane %v339, 2
    %v341 = vadd.f32 %v339, %v340
    %v342 = vrot.slane %v341, 1
    %v343 = vadd.f32 %v341, %v342
    %v344 = vld [vmem:[%s1] sm:$0x1]
    %v345 = vld [vmem:[%s2] sm:$0x1]
    %v346 = vmul.f32 %v210, 0.001953125
    %v347 = vmul.f32 %v343, 0.001953125
    %v348 = vmul.f32 %v346, %v346
    %v349 = vsub.f32 %v347, %v348
    %v350 = vadd.f32 %v349, 1e-05
    %v351 = vrsqrt.pop %v350
    %v352 = vmul.f32 %v344, %v351
    %v353 = vmul.f32 %v346, %v352
    %v354 = vsub.f32 %v345, %v353
    %v356 = vlaneseq
    %v357 = vshrl.u32 %v356, 7
    %v358 = vsub.s32 0, %v357
    %v359 = vrot.slane %v352, %v358
    %v361 = vmul.f32 %v78, %v359
    %v362 = vmul.f32 %v79, %v359
    %v363 = vmul.f32 %v80, %v359
    %v364 = vmul.f32 %v81, %v359
    %v365 = vmul.f32 %v82, %v359
    %v366 = vmul.f32 %v83, %v359
    %v367 = vmul.f32 %v84, %v359
    %v368 = vmul.f32 %v85, %v359
    %v369 = vmul.f32 %v86, %v359
    %v370 = vmul.f32 %v87, %v359
    %v371 = vmul.f32 %v88, %v359
    %v372 = vmul.f32 %v89, %v359
    %v373 = vmul.f32 %v90, %v359
    %v374 = vmul.f32 %v91, %v359
    %v375 = vmul.f32 %v92, %v359
    %v376 = vmul.f32 %v93, %v359
    %v377 = vmul.f32 %v94, %v359
    %v378 = vmul.f32 %v95, %v359
    %v379 = vmul.f32 %v96, %v359
    %v380 = vmul.f32 %v97, %v359
    %v381 = vmul.f32 %v98, %v359
    %v382 = vmul.f32 %v99, %v359
    %v383 = vmul.f32 %v100, %v359
    %v384 = vmul.f32 %v101, %v359
    %v385 = vmul.f32 %v102, %v359
    %v386 = vmul.f32 %v103, %v359
    %v387 = vmul.f32 %v104, %v359
    %v388 = vmul.f32 %v105, %v359
    %v389 = vmul.f32 %v106, %v359
    %v390 = vmul.f32 %v107, %v359
    %v391 = vmul.f32 %v108, %v359
    %v392 = vmul.f32 %v109, %v359
    %v393 = vmul.f32 %v110, %v359
    %v394 = vmul.f32 %v111, %v359
    %v395 = vmul.f32 %v112, %v359
    %v396 = vmul.f32 %v113, %v359
    %v397 = vmul.f32 %v114, %v359
    %v398 = vmul.f32 %v115, %v359
    %v399 = vmul.f32 %v116, %v359
    %v400 = vmul.f32 %v117, %v359
    %v401 = vmul.f32 %v118, %v359
    %v402 = vmul.f32 %v119, %v359
    %v403 = vmul.f32 %v120, %v359
    %v404 = vmul.f32 %v121, %v359
    %v405 = vmul.f32 %v122, %v359
    %v406 = vmul.f32 %v123, %v359
    %v407 = vmul.f32 %v124, %v359
    %v408 = vmul.f32 %v125, %v359
    %v409 = vmul.f32 %v126, %v359
    %v410 = vmul.f32 %v127, %v359
    %v411 = vmul.f32 %v128, %v359
    %v412 = vmul.f32 %v129, %v359
    %v413 = vmul.f32 %v130, %v359
    %v414 = vmul.f32 %v131, %v359
    %v415 = vmul.f32 %v132, %v359
    %v416 = vmul.f32 %v133, %v359
    %v417 = vmul.f32 %v134, %v359
    %v418 = vmul.f32 %v135, %v359
    %v419 = vmul.f32 %v136, %v359
    %v420 = vmul.f32 %v137, %v359
    %v421 = vmul.f32 %v138, %v359
    %v422 = vmul.f32 %v139, %v359
    %v423 = vmul.f32 %v140, %v359
    %v424 = vmul.f32 %v141, %v359
    %v426 = vlaneseq
    %v427 = vshrl.u32 %v426, 7
    %v428 = vsub.s32 0, %v427
    %v429 = vrot.slane %v354, %v428
    %v431 = vadd.f32 %v361, %v429
    %v432 = vadd.f32 %v362, %v429
    %v433 = vadd.f32 %v363, %v429
    %v434 = vadd.f32 %v364, %v429
    %v435 = vadd.f32 %v365, %v429
    %v436 = vadd.f32 %v366, %v429
    %v437 = vadd.f32 %v367, %v429
    %v438 = vadd.f32 %v368, %v429
    %v439 = vadd.f32 %v369, %v429
    %v440 = vadd.f32 %v370, %v429
    %v441 = vadd.f32 %v371, %v429
    %v442 = vadd.f32 %v372, %v429
    %v443 = vadd.f32 %v373, %v429
    %v444 = vadd.f32 %v374, %v429
    %v445 = vadd.f32 %v375, %v429
    %v446 = vadd.f32 %v376, %v429
    %v447 = vadd.f32 %v377, %v429
    %v448 = vadd.f32 %v378, %v429
    %v449 = vadd.f32 %v379, %v429
    %v450 = vadd.f32 %v380, %v429
    %v451 = vadd.f32 %v381, %v429
    %v452 = vadd.f32 %v382, %v429
    %v453 = vadd.f32 %v383, %v429
    %v454 = vadd.f32 %v384, %v429
    %v455 = vadd.f32 %v385, %v429
    %v456 = vadd.f32 %v386, %v429
    %v457 = vadd.f32 %v387, %v429
    %v458 = vadd.f32 %v388, %v429
    %v459 = vadd.f32 %v389, %v429
    %v460 = vadd.f32 %v390, %v429
    %v461 = vadd.f32 %v391, %v429
    %v462 = vadd.f32 %v392, %v429
    %v463 = vadd.f32 %v393, %v429
    %v464 = vadd.f32 %v394, %v429
    %v465 = vadd.f32 %v395, %v429
    %v466 = vadd.f32 %v396, %v429
    %v467 = vadd.f32 %v397, %v429
    %v468 = vadd.f32 %v398, %v429
    %v469 = vadd.f32 %v399, %v429
    %v470 = vadd.f32 %v400, %v429
    %v471 = vadd.f32 %v401, %v429
    %v472 = vadd.f32 %v402, %v429
    %v473 = vadd.f32 %v403, %v429
    %v474 = vadd.f32 %v404, %v429
    %v475 = vadd.f32 %v405, %v429
    %v476 = vadd.f32 %v406, %v429
    %v477 = vadd.f32 %v407, %v429
    %v478 = vadd.f32 %v408, %v429
    %v479 = vadd.f32 %v409, %v429
    %v480 = vadd.f32 %v410, %v429
    %v481 = vadd.f32 %v411, %v429
    %v482 = vadd.f32 %v412, %v429
    %v483 = vadd.f32 %v413, %v429
    %v484 = vadd.f32 %v414, %v429
    %v485 = vadd.f32 %v415, %v429
    %v486 = vadd.f32 %v416, %v429
    %v487 = vadd.f32 %v417, %v429
    %v488 = vadd.f32 %v418, %v429
    %v489 = vadd.f32 %v419, %v429
    %v490 = vadd.f32 %v420, %v429
    %v491 = vadd.f32 %v421, %v429
    %v492 = vadd.f32 %v422, %v429
    %v493 = vadd.f32 %v423, %v429
    %v494 = vadd.f32 %v424, %v429
    %v495 = vmax.f32 %v431, 0.0
    %v496 = vmax.f32 %v432, 0.0
    %v497 = vmax.f32 %v433, 0.0
    %v498 = vmax.f32 %v434, 0.0
    %v499 = vmax.f32 %v435, 0.0
    %v500 = vmax.f32 %v436, 0.0
    %v501 = vmax.f32 %v437, 0.0
    %v502 = vmax.f32 %v438, 0.0
    %v503 = vmax.f32 %v439, 0.0
    %v504 = vmax.f32 %v440, 0.0
    %v505 = vmax.f32 %v441, 0.0
    %v506 = vmax.f32 %v442, 0.0
    %v507 = vmax.f32 %v443, 0.0
    %v508 = vmax.f32 %v444, 0.0
    %v509 = vmax.f32 %v445, 0.0
    %v510 = vmax.f32 %v446, 0.0
    %v511 = vmax.f32 %v447, 0.0
    %v512 = vmax.f32 %v448, 0.0
    %v513 = vmax.f32 %v449, 0.0
    %v514 = vmax.f32 %v450, 0.0
    %v515 = vmax.f32 %v451, 0.0
    %v516 = vmax.f32 %v452, 0.0
    %v517 = vmax.f32 %v453, 0.0
    %v518 = vmax.f32 %v454, 0.0
    %v519 = vmax.f32 %v455, 0.0
    %v520 = vmax.f32 %v456, 0.0
    %v521 = vmax.f32 %v457, 0.0
    %v522 = vmax.f32 %v458, 0.0
    %v523 = vmax.f32 %v459, 0.0
    %v524 = vmax.f32 %v460, 0.0
    %v525 = vmax.f32 %v461, 0.0
    %v526 = vmax.f32 %v462, 0.0
    %v527 = vmax.f32 %v463, 0.0
    %v528 = vmax.f32 %v464, 0.0
    %v529 = vmax.f32 %v465, 0.0
    %v530 = vmax.f32 %v466, 0.0
    %v531 = vmax.f32 %v467, 0.0
    %v532 = vmax.f32 %v468, 0.0
    %v533 = vmax.f32 %v469, 0.0
    %v534 = vmax.f32 %v470, 0.0
    %v535 = vmax.f32 %v471, 0.0
    %v536 = vmax.f32 %v472, 0.0
    %v537 = vmax.f32 %v473, 0.0
    %v538 = vmax.f32 %v474, 0.0
    %v539 = vmax.f32 %v475, 0.0
    %v540 = vmax.f32 %v476, 0.0
    %v541 = vmax.f32 %v477, 0.0
    %v542 = vmax.f32 %v478, 0.0
    %v543 = vmax.f32 %v479, 0.0
    %v544 = vmax.f32 %v480, 0.0
    %v545 = vmax.f32 %v481, 0.0
    %v546 = vmax.f32 %v482, 0.0
    %v547 = vmax.f32 %v483, 0.0
    %v548 = vmax.f32 %v484, 0.0
    %v549 = vmax.f32 %v485, 0.0
    %v550 = vmax.f32 %v486, 0.0
    %v551 = vmax.f32 %v487, 0.0
    %v552 = vmax.f32 %v488, 0.0
    %v553 = vmax.f32 %v489, 0.0
    %v554 = vmax.f32 %v490, 0.0
    %v555 = vmax.f32 %v491, 0.0
    %v556 = vmax.f32 %v492, 0.0
    %v557 = vmax.f32 %v493, 0.0
    %v558 = vmax.f32 %v494, 0.0
    %v559 = vpack.c.bf16 %v496, %v495
    %v560 = vpack.c.bf16 %v498, %v497
    %v561 = vpack.c.bf16 %v500, %v499
    %v562 = vpack.c.bf16 %v502, %v501
    %v563 = vpack.c.bf16 %v504, %v503
    %v564 = vpack.c.bf16 %v506, %v505
    %v565 = vpack.c.bf16 %v508, %v507
    %v566 = vpack.c.bf16 %v510, %v509
    %v567 = vpack.c.bf16 %v512, %v511
    %v568 = vpack.c.bf16 %v514, %v513
    %v569 = vpack.c.bf16 %v516, %v515
    %v570 = vpack.c.bf16 %v518, %v517
    %v571 = vpack.c.bf16 %v520, %v519
    %v572 = vpack.c.bf16 %v522, %v521
    %v573 = vpack.c.bf16 %v524, %v523
    %v574 = vpack.c.bf16 %v526, %v525
    %v575 = vpack.c.bf16 %v528, %v527
    %v576 = vpack.c.bf16 %v530, %v529
    %v577 = vpack.c.bf16 %v532, %v531
    %v578 = vpack.c.bf16 %v534, %v533
    %v579 = vpack.c.bf16 %v536, %v535
    %v580 = vpack.c.bf16 %v538, %v537
    %v581 = vpack.c.bf16 %v540, %v539
    %v582 = vpack.c.bf16 %v542, %v541
    %v583 = vpack.c.bf16 %v544, %v543
    %v584 = vpack.c.bf16 %v546, %v545
    %v585 = vpack.c.bf16 %v548, %v547
    %v586 = vpack.c.bf16 %v550, %v549
    %v587 = vpack.c.bf16 %v552, %v551
    %v588 = vpack.c.bf16 %v554, %v553
    %v589 = vpack.c.bf16 %v556, %v555
    %v590 = vpack.c.bf16 %v558, %v557
    %v623 = vunpack.c.l.b16 %v559
    %v624 = vunpack.c.h.b16 %v559
    %v625 = vunpack.c.l.b16 %v560
    %v626 = vunpack.c.h.b16 %v560
    %v627 = vunpack.c.l.b16 %v561
    %v628 = vunpack.c.h.b16 %v561
    %v629 = vunpack.c.l.b16 %v562
    %v630 = vunpack.c.h.b16 %v562
    %v631 = vunpack.c.l.b16 %v563
    %v632 = vunpack.c.h.b16 %v563
    %v633 = vunpack.c.l.b16 %v564
    %v634 = vunpack.c.h.b16 %v564
    %v635 = vunpack.c.l.b16 %v565
    %v636 = vunpack.c.h.b16 %v565
    %v637 = vunpack.c.l.b16 %v566
    %v638 = vunpack.c.h.b16 %v566
    %v639 = vunpack.c.l.b16 %v567
    %v640 = vunpack.c.h.b16 %v567
    %v641 = vunpack.c.l.b16 %v568
    %v642 = vunpack.c.h.b16 %v568
    %v643 = vunpack.c.l.b16 %v569
    %v644 = vunpack.c.h.b16 %v569
    %v645 = vunpack.c.l.b16 %v570
    %v646 = vunpack.c.h.b16 %v570
    %v647 = vunpack.c.l.b16 %v571
    %v648 = vunpack.c.h.b16 %v571
    %v649 = vunpack.c.l.b16 %v572
    %v650 = vunpack.c.h.b16 %v572
    %v651 = vunpack.c.l.b16 %v573
    %v652 = vunpack.c.h.b16 %v573
    %v653 = vunpack.c.l.b16 %v574
    %v654 = vunpack.c.h.b16 %v574
    %v655 = vunpack.c.l.b16 %v575
    %v656 = vunpack.c.h.b16 %v575
    %v657 = vunpack.c.l.b16 %v576
    %v658 = vunpack.c.h.b16 %v576
    %v659 = vunpack.c.l.b16 %v577
    %v660 = vunpack.c.h.b16 %v577
    %v661 = vunpack.c.l.b16 %v578
    %v662 = vunpack.c.h.b16 %v578
    %v663 = vunpack.c.l.b16 %v579
    %v664 = vunpack.c.h.b16 %v579
    %v665 = vunpack.c.l.b16 %v580
    %v666 = vunpack.c.h.b16 %v580
    %v667 = vunpack.c.l.b16 %v581
    %v668 = vunpack.c.h.b16 %v581
    %v669 = vunpack.c.l.b16 %v582
    %v670 = vunpack.c.h.b16 %v582
    %v671 = vunpack.c.l.b16 %v583
    %v672 = vunpack.c.h.b16 %v583
    %v673 = vunpack.c.l.b16 %v584
    %v674 = vunpack.c.h.b16 %v584
    %v675 = vunpack.c.l.b16 %v585
    %v676 = vunpack.c.h.b16 %v585
    %v677 = vunpack.c.l.b16 %v586
    %v678 = vunpack.c.h.b16 %v586
    %v679 = vunpack.c.l.b16 %v587
    %v680 = vunpack.c.h.b16 %v587
    %v681 = vunpack.c.l.b16 %v588
    %v682 = vunpack.c.h.b16 %v588
    %v683 = vunpack.c.l.b16 %v589
    %v684 = vunpack.c.h.b16 %v589
    %v685 = vunpack.c.l.b16 %v590
    %v686 = vunpack.c.h.b16 %v590
    %v687 = vpack.c.b16 %v623, %v623
    %v688 = vpack.c.b16 %v624, %v624
    %v689 = vpack.c.b16 %v625, %v625
    %v690 = vpack.c.b16 %v626, %v626
    %v691 = vpack.c.b16 %v627, %v627
    %v692 = vpack.c.b16 %v628, %v628
    %v693 = vpack.c.b16 %v629, %v629
    %v694 = vpack.c.b16 %v630, %v630
    %v695 = vpack.c.b16 %v631, %v631
    %v696 = vpack.c.b16 %v632, %v632
    %v697 = vpack.c.b16 %v633, %v633
    %v698 = vpack.c.b16 %v634, %v634
    %v699 = vpack.c.b16 %v635, %v635
    %v700 = vpack.c.b16 %v636, %v636
    %v701 = vpack.c.b16 %v637, %v637
    %v702 = vpack.c.b16 %v638, %v638
    %v703 = vpack.c.b16 %v639, %v639
    %v704 = vpack.c.b16 %v640, %v640
    %v705 = vpack.c.b16 %v641, %v641
    %v706 = vpack.c.b16 %v642, %v642
    %v707 = vpack.c.b16 %v643, %v643
    %v708 = vpack.c.b16 %v644, %v644
    %v709 = vpack.c.b16 %v645, %v645
    %v710 = vpack.c.b16 %v646, %v646
    %v711 = vpack.c.b16 %v647, %v647
    %v712 = vpack.c.b16 %v648, %v648
    %v713 = vpack.c.b16 %v649, %v649
    %v714 = vpack.c.b16 %v650, %v650
    %v715 = vpack.c.b16 %v651, %v651
    %v716 = vpack.c.b16 %v652, %v652
    %v717 = vpack.c.b16 %v653, %v653
    %v718 = vpack.c.b16 %v654, %v654
    %v719 = vpack.c.b16 %v655, %v655
    %v720 = vpack.c.b16 %v656, %v656
    %v721 = vpack.c.b16 %v657, %v657
    %v722 = vpack.c.b16 %v658, %v658
    %v723 = vpack.c.b16 %v659, %v659
    %v724 = vpack.c.b16 %v660, %v660
    %v725 = vpack.c.b16 %v661, %v661
    %v726 = vpack.c.b16 %v662, %v662
    %v727 = vpack.c.b16 %v663, %v663
    %v728 = vpack.c.b16 %v664, %v664
    %v729 = vpack.c.b16 %v665, %v665
    %v730 = vpack.c.b16 %v666, %v666
    %v731 = vpack.c.b16 %v667, %v667
    %v732 = vpack.c.b16 %v668, %v668
    %v733 = vpack.c.b16 %v669, %v669
    %v734 = vpack.c.b16 %v670, %v670
    %v735 = vpack.c.b16 %v671, %v671
    %v736 = vpack.c.b16 %v672, %v672
    %v737 = vpack.c.b16 %v673, %v673
    %v738 = vpack.c.b16 %v674, %v674
    %v739 = vpack.c.b16 %v675, %v675
    %v740 = vpack.c.b16 %v676, %v676
    %v741 = vpack.c.b16 %v677, %v677
    %v742 = vpack.c.b16 %v678, %v678
    %v743 = vpack.c.b16 %v679, %v679
    %v744 = vpack.c.b16 %v680, %v680
    %v745 = vpack.c.b16 %v681, %v681
    %v746 = vpack.c.b16 %v682, %v682
    %v747 = vpack.c.b16 %v683, %v683
    %v748 = vpack.c.b16 %v684, %v684
    %v749 = vpack.c.b16 %v685, %v685
    %v750 = vpack.c.b16 %v686, %v686
    %815 = vst [vmem:[#allocation2 + $0x8] sm:$0xf] %v687
    %816 = vst [vmem:[#allocation2 + $0xc] sm:$0xf] %v688
    %817 = vst [vmem:[#allocation2 + $0x10] sm:$0xf] %v689
    %818 = vst [vmem:[#allocation2 + $0x14] sm:$0xf] %v690
    %819 = vst [vmem:[#allocation2 + $0x18] sm:$0xf] %v691
    %820 = vst [vmem:[#allocation2 + $0x1c] sm:$0xf] %v692
    %821 = vst [vmem:[#allocation2 + $0x20] sm:$0xf] %v693
    %822 = vst [vmem:[#allocation2 + $0x24] sm:$0xf] %v694
    %823 = vst [vmem:[#allocation2 + $0x28] sm:$0xf] %v695
    %824 = vst [vmem:[#allocation2 + $0x2c] sm:$0xf] %v696
    %825 = vst [vmem:[#allocation2 + $0x30] sm:$0xf] %v697
    %826 = vst [vmem:[#allocation2 + $0x34] sm:$0xf] %v698
    %827 = vst [vmem:[#allocation2 + $0x38] sm:$0xf] %v699
    %828 = vst [vmem:[#allocation2 + $0x3c] sm:$0xf] %v700
    %829 = vst [vmem:[#allocation2 + $0x40] sm:$0xf] %v701
    %830 = vst [vmem:[#allocation2 + $0x44] sm:$0xf] %v702
    %831 = vst [vmem:[#allocation2 + $0x48] sm:$0xf] %v703
    %832 = vst [vmem:[#allocation2 + $0x4c] sm:$0xf] %v704
    %833 = vst [vmem:[#allocation2 + $0x50] sm:$0xf] %v705
    %834 = vst [vmem:[#allocation2 + $0x54] sm:$0xf] %v706
    %835 = vst [vmem:[#allocation2 + $0x58] sm:$0xf] %v707
    %836 = vst [vmem:[#allocation2 + $0x5c] sm:$0xf] %v708
    %837 = vst [vmem:[#allocation2 + $0x60] sm:$0xf] %v709
    %838 = vst [vmem:[#allocation2 + $0x64] sm:$0xf] %v710
    %839 = vst [vmem:[#allocation2 + $0x68] sm:$0xf] %v711
    %840 = vst [vmem:[#allocation2 + $0x6c] sm:$0xf] %v712
    %841 = vst [vmem:[#allocation2 + $0x70] sm:$0xf] %v713
    %842 = vst [vmem:[#allocation2 + $0x74] sm:$0xf] %v714
    %843 = vst [vmem:[#allocation2 + $0x78] sm:$0xf] %v715
    %844 = vst [vmem:[#allocation2 + $0x7c] sm:$0xf] %v716
    %845 = vst [vmem:[#allocation2 + $0x80] sm:$0xf] %v717
    %846 = vst [vmem:[#allocation2 + $0x84] sm:$0xf] %v718
    %847 = vst [vmem:[#allocation2 + $0x94] sm:$0xf] %v719
    %848 = vst [vmem:[#allocation2 + $0x98] sm:$0xf] %v720
    %849 = vst [vmem:[#allocation2 + $0x9c] sm:$0xf] %v721
    %850 = vst [vmem:[#allocation2 + $0xa0] sm:$0xf] %v722
    %851 = vst [vmem:[#allocation2 + $0xa4] sm:$0xf] %v723
    %852 = vst [vmem:[#allocation2 + $0xa8] sm:$0xf] %v724
    %853 = vst [vmem:[#allocation2 + $0xac] sm:$0xf] %v725
    %854 = vst [vmem:[#allocation2 + $0xb0] sm:$0xf] %v726
    %855 = vst [vmem:[#allocation2 + $0xb4] sm:$0xf] %v727
    %856 = vst [vmem:[#allocation2 + $0xb8] sm:$0xf] %v728
    %857 = vst [vmem:[#allocation2 + $0xbc] sm:$0xf] %v729
    %858 = vst [vmem:[#allocation2 + $0xc0] sm:$0xf] %v730
    %859 = vst [vmem:[#allocation2 + $0xc4] sm:$0xf] %v731
    %860 = vst [vmem:[#allocation2 + $0xc8] sm:$0xf] %v732
    %861 = vst [vmem:[#allocation2 + $0xcc] sm:$0xf] %v733
    %862 = vst [vmem:[#allocation2 + $0xd0] sm:$0xf] %v734
    %863 = vst [vmem:[#allocation2 + $0xd4] sm:$0xf] %v735
    %864 = vst [vmem:[#allocation2 + $0xd8] sm:$0xf] %v736
    %865 = vst [vmem:[#allocation2 + $0xdc] sm:$0xf] %v737
    %866 = vst [vmem:[#allocation2 + $0xe0] sm:$0xf] %v738
    %867 = vst [vmem:[#allocation2 + $0xe4] sm:$0xf] %v739
    %868 = vst [vmem:[#allocation2 + $0xe8] sm:$0xf] %v740
    %869 = vst [vmem:[#allocation2 + $0xec] sm:$0xf] %v741
    %870 = vst [vmem:[#allocation2 + $0xf0] sm:$0xf] %v742
    %871 = vst [vmem:[#allocation2 + $0xf4] sm:$0xf] %v743
    %872 = vst [vmem:[#allocation2 + $0xf8] sm:$0xf] %v744
    %873 = vst [vmem:[#allocation2 + $0xfc] sm:$0xf] %v745
    %874 = vst [vmem:[#allocation2 + $0x100] sm:$0xf] %v746
    %875 = vst [vmem:[#allocation2 + $0x104] sm:$0xf] %v747
    %876 = vst [vmem:[#allocation2 + $0x108] sm:$0xf] %v748
    %877 = vst [vmem:[#allocation2 + $0x10c] sm:$0xf] %v749
    %878 = vst [vmem:[#allocation2 + $0x110] sm:$0xf] %v750
    %v879 = vld [vmem:[#allocation2 + $0x4] sm:$0x8]
    %v880 = vld [vmem:[#allocation2 + $0x8] sm:$0xf]
    %v881 = vld [vmem:[#allocation2 + $0xc] sm:$0xf]
    %v882 = vld [vmem:[#allocation2 + $0x10] sm:$0xf]
    %v883 = vld [vmem:[#allocation2 + $0x14] sm:$0xf]
    %v884 = vld [vmem:[#allocation2 + $0x18] sm:$0xf]
    %v885 = vld [vmem:[#allocation2 + $0x1c] sm:$0xf]
    %v886 = vld [vmem:[#allocation2 + $0x20] sm:$0xf]
    %v887 = vld [vmem:[#allocation2 + $0x24] sm:$0xf]
    %v888 = vld [vmem:[#allocation2 + $0x28] sm:$0xf]
    %v889 = vld [vmem:[#allocation2 + $0x2c] sm:$0xf]
    %v890 = vld [vmem:[#allocation2 + $0x30] sm:$0xf]
    %v891 = vld [vmem:[#allocation2 + $0x34] sm:$0xf]
    %v892 = vld [vmem:[#allocation2 + $0x38] sm:$0xf]
    %v893 = vld [vmem:[#allocation2 + $0x3c] sm:$0xf]
    %v894 = vld [vmem:[#allocation2 + $0x40] sm:$0xf]
    %v895 = vld [vmem:[#allocation2 + $0x44] sm:$0xf]
    %v896 = vld [vmem:[#allocation2 + $0x48] sm:$0xf]
    %v897 = vld [vmem:[#allocation2 + $0x4c] sm:$0xf]
    %v898 = vld [vmem:[#allocation2 + $0x50] sm:$0xf]
    %v899 = vld [vmem:[#allocation2 + $0x54] sm:$0xf]
    %v900 = vld [vmem:[#allocation2 + $0x58] sm:$0xf]
    %v901 = vld [vmem:[#allocation2 + $0x5c] sm:$0xf]
    %v902 = vld [vmem:[#allocation2 + $0x60] sm:$0xf]
    %v903 = vld [vmem:[#allocation2 + $0x64] sm:$0xf]
    %v904 = vld [vmem:[#allocation2 + $0x68] sm:$0xf]
    %v905 = vld [vmem:[#allocation2 + $0x6c] sm:$0xf]
    %v906 = vld [vmem:[#allocation2 + $0x70] sm:$0xf]
    %v907 = vld [vmem:[#allocation2 + $0x74] sm:$0xf]
    %v908 = vld [vmem:[#allocation2 + $0x78] sm:$0xf]
    %v909 = vld [vmem:[#allocation2 + $0x7c] sm:$0xf]
    %v910 = vld [vmem:[#allocation2 + $0x80] sm:$0xf]
    %v911 = vld [vmem:[#allocation2 + $0x84] sm:$0x7]
    %v912 = vld [vmem:[#allocation2 + $0x90] sm:$0x8]
    %v913 = vld [vmem:[#allocation2 + $0x94] sm:$0xf]
    %v914 = vld [vmem:[#allocation2 + $0x98] sm:$0xf]
    %v915 = vld [vmem:[#allocation2 + $0x9c] sm:$0xf]
    %v916 = vld [vmem:[#allocation2 + $0xa0] sm:$0xf]
    %v917 = vld [vmem:[#allocation2 + $0xa4] sm:$0xf]
    %v918 = vld [vmem:[#allocation2 + $0xa8] sm:$0xf]
    %v919 = vld [vmem:[#allocation2 + $0xac] sm:$0xf]
    %v920 = vld [vmem:[#allocation2 + $0xb0] sm:$0xf]
    %v921 = vld [vmem:[#allocation2 + $0xb4] sm:$0xf]
    %v922 = vld [vmem:[#allocation2 + $0xb8] sm:$0xf]
    %v923 = vld [vmem:[#allocation2 + $0xbc] sm:$0xf]
    %v924 = vld [vmem:[#allocation2 + $0xc0] sm:$0xf]
    %v925 = vld [vmem:[#allocation2 + $0xc4] sm:$0xf]
    %v926 = vld [vmem:[#allocation2 + $0xc8] sm:$0xf]
    %v927 = vld [vmem:[#allocation2 + $0xcc] sm:$0xf]
    %v928 = vld [vmem:[#allocation2 + $0xd0] sm:$0xf]
    %v929 = vld [vmem:[#allocation2 + $0xd4] sm:$0xf]
    %v930 = vld [vmem:[#allocation2 + $0xd8] sm:$0xf]
    %v931 = vld [vmem:[#allocation2 + $0xdc] sm:$0xf]
    %v932 = vld [vmem:[#allocation2 + $0xe0] sm:$0xf]
    %v933 = vld [vmem:[#allocation2 + $0xe4] sm:$0xf]
    %v934 = vld [vmem:[#allocation2 + $0xe8] sm:$0xf]
    %v935 = vld [vmem:[#allocation2 + $0xec] sm:$0xf]
    %v936 = vld [vmem:[#allocation2 + $0xf0] sm:$0xf]
    %v937 = vld [vmem:[#allocation2 + $0xf4] sm:$0xf]
    %v938 = vld [vmem:[#allocation2 + $0xf8] sm:$0xf]
    %v939 = vld [vmem:[#allocation2 + $0xfc] sm:$0xf]
    %v940 = vld [vmem:[#allocation2 + $0x100] sm:$0xf]
    %v941 = vld [vmem:[#allocation2 + $0x104] sm:$0xf]
    %v942 = vld [vmem:[#allocation2 + $0x108] sm:$0xf]
    %v943 = vld [vmem:[#allocation2 + $0x10c] sm:$0xf]
    %v944 = vld [vmem:[#allocation2 + $0x110] sm:$0x7]
    %v945 = vld [vmem:[#allocation2 + $0x84] sm:$0xf]
    %v946 = vld [vmem:[#allocation2 + $0x110] sm:$0xf]
    %v947 = vld [vmem:[#allocation2 + $0x8] sm:$0xe]
    %v948 = vld [vmem:[#allocation2 + $0x88] sm:$0x1]
    %v949 = vld [vmem:[#allocation2 + $0x94] sm:$0xe]
    %v950 = vld [vmem:[#allocation2 + $0x114] sm:$0x1]
    %v1017 = vunpack.c.l.b16 %v879
    %v1018 = vunpack.c.l.b16 %v880
    %v1019 = vunpack.c.l.b16 %v881
    %v1020 = vunpack.c.l.b16 %v882
    %v1021 = vunpack.c.l.b16 %v883
    %v1022 = vunpack.c.l.b16 %v884
    %v1023 = vunpack.c.l.b16 %v885
    %v1024 = vunpack.c.l.b16 %v886
    %v1025 = vunpack.c.l.b16 %v887
    %v1026 = vunpack.c.l.b16 %v888
    %v1027 = vunpack.c.l.b16 %v889
    %v1028 = vunpack.c.l.b16 %v890
    %v1029 = vunpack.c.l.b16 %v891
    %v1030 = vunpack.c.l.b16 %v892
    %v1031 = vunpack.c.l.b16 %v893
    %v1032 = vunpack.c.l.b16 %v894
    %v1033 = vunpack.c.l.b16 %v895
    %v1034 = vunpack.c.l.b16 %v896
    %v1035 = vunpack.c.l.b16 %v897
    %v1036 = vunpack.c.l.b16 %v898
    %v1037 = vunpack.c.l.b16 %v899
    %v1038 = vunpack.c.l.b16 %v900
    %v1039 = vunpack.c.l.b16 %v901
    %v1040 = vunpack.c.l.b16 %v902
    %v1041 = vunpack.c.l.b16 %v903
    %v1042 = vunpack.c.l.b16 %v904
    %v1043 = vunpack.c.l.b16 %v905
    %v1044 = vunpack.c.l.b16 %v906
    %v1045 = vunpack.c.l.b16 %v907
    %v1046 = vunpack.c.l.b16 %v908
    %v1047 = vunpack.c.l.b16 %v909
    %v1048 = vunpack.c.l.b16 %v910
    %v1049 = vunpack.c.l.b16 %v911
    %v1050 = vunpack.c.l.b16 %v912
    %v1051 = vunpack.c.l.b16 %v913
    %v1052 = vunpack.c.l.b16 %v914
    %v1053 = vunpack.c.l.b16 %v915
    %v1054 = vunpack.c.l.b16 %v916
    %v1055 = vunpack.c.l.b16 %v917
    %v1056 = vunpack.c.l.b16 %v918
    %v1057 = vunpack.c.l.b16 %v919
    %v1058 = vunpack.c.l.b16 %v920
    %v1059 = vunpack.c.l.b16 %v921
    %v1060 = vunpack.c.l.b16 %v922
    %v1061 = vunpack.c.l.b16 %v923
    %v1062 = vunpack.c.l.b16 %v924
    %v1063 = vunpack.c.l.b16 %v925
    %v1064 = vunpack.c.l.b16 %v926
    %v1065 = vunpack.c.l.b16 %v927
    %v1066 = vunpack.c.l.b16 %v928
    %v1067 = vunpack.c.l.b16 %v929
    %v1068 = vunpack.c.l.b16 %v930
    %v1069 = vunpack.c.l.b16 %v931
    %v1070 = vunpack.c.l.b16 %v932
    %v1071 = vunpack.c.l.b16 %v933
    %v1072 = vunpack.c.l.b16 %v934
    %v1073 = vunpack.c.l.b16 %v935
    %v1074 = vunpack.c.l.b16 %v936
    %v1075 = vunpack.c.l.b16 %v937
    %v1076 = vunpack.c.l.b16 %v938
    %v1077 = vunpack.c.l.b16 %v939
    %v1078 = vunpack.c.l.b16 %v940
    %v1079 = vunpack.c.l.b16 %v941
    %v1080 = vunpack.c.l.b16 %v942
    %v1081 = vunpack.c.l.b16 %v943
    %v1082 = vunpack.c.l.b16 %v944
    %v1083 = vpack.c.b16 %v1018, %v1017
    %v1084 = vpack.c.b16 %v1020, %v1019
    %v1085 = vpack.c.b16 %v1022, %v1021
    %v1086 = vpack.c.b16 %v1024, %v1023
    %v1087 = vpack.c.b16 %v1026, %v1025
    %v1088 = vpack.c.b16 %v1028, %v1027
    %v1089 = vpack.c.b16 %v1030, %v1029
    %v1090 = vpack.c.b16 %v1032, %v1031
    %v1091 = vpack.c.b16 %v1034, %v1033
    %v1092 = vpack.c.b16 %v1036, %v1035
    %v1093 = vpack.c.b16 %v1038, %v1037
    %v1094 = vpack.c.b16 %v1040, %v1039
    %v1095 = vpack.c.b16 %v1042, %v1041
    %v1096 = vpack.c.b16 %v1044, %v1043
    %v1097 = vpack.c.b16 %v1046, %v1045
    %v1098 = vpack.c.b16 %v1048, %v1047
    %v1099 = vpack.c.b16 %v1049, %v1049
    %v1100 = vpack.c.b16 %v1051, %v1050
    %v1101 = vpack.c.b16 %v1053, %v1052
    %v1102 = vpack.c.b16 %v1055, %v1054
    %v1103 = vpack.c.b16 %v1057, %v1056
    %v1104 = vpack.c.b16 %v1059, %v1058
    %v1105 = vpack.c.b16 %v1061, %v1060
    %v1106 = vpack.c.b16 %v1063, %v1062
    %v1107 = vpack.c.b16 %v1065, %v1064
    %v1108 = vpack.c.b16 %v1067, %v1066
    %v1109 = vpack.c.b16 %v1069, %v1068
    %v1110 = vpack.c.b16 %v1071, %v1070
    %v1111 = vpack.c.b16 %v1073, %v1072
    %v1112 = vpack.c.b16 %v1075, %v1074
    %v1113 = vpack.c.b16 %v1077, %v1076
    %v1114 = vpack.c.b16 %v1079, %v1078
    %v1115 = vpack.c.b16 %v1081, %v1080
    %v1116 = vpack.c.b16 %v1082, %v1082
    %v1119 = vunpack.c.l.b16 %v945
    %v1120 = vunpack.c.l.b16 %v946
    %v1121 = vpack.c.b16 %v1019, %v1018
    %v1122 = vpack.c.b16 %v1021, %v1020
    %v1123 = vpack.c.b16 %v1023, %v1022
    %v1124 = vpack.c.b16 %v1025, %v1024
    %v1125 = vpack.c.b16 %v1027, %v1026
    %v1126 = vpack.c.b16 %v1029, %v1028
    %v1127 = vpack.c.b16 %v1031, %v1030
    %v1128 = vpack.c.b16 %v1033, %v1032
    %v1129 = vpack.c.b16 %v1035, %v1034
    %v1130 = vpack.c.b16 %v1037, %v1036
    %v1131 = vpack.c.b16 %v1039, %v1038
    %v1132 = vpack.c.b16 %v1041, %v1040
    %v1133 = vpack.c.b16 %v1043, %v1042
    %v1134 = vpack.c.b16 %v1045, %v1044
    %v1135 = vpack.c.b16 %v1047, %v1046
    %v1136 = vpack.c.b16 %v1119, %v1048
    %v1137 = vpack.c.b16 %v1052, %v1051
    %v1138 = vpack.c.b16 %v1054, %v1053
    %v1139 = vpack.c.b16 %v1056, %v1055
    %v1140 = vpack.c.b16 %v1058, %v1057
    %v1141 = vpack.c.b16 %v1060, %v1059
    %v1142 = vpack.c.b16 %v1062, %v1061
    %v1143 = vpack.c.b16 %v1064, %v1063
    %v1144 = vpack.c.b16 %v1066, %v1065
    %v1145 = vpack.c.b16 %v1068, %v1067
    %v1146 = vpack.c.b16 %v1070, %v1069
    %v1147 = vpack.c.b16 %v1072, %v1071
    %v1148 = vpack.c.b16 %v1074, %v1073
    %v1149 = vpack.c.b16 %v1076, %v1075
    %v1150 = vpack.c.b16 %v1078, %v1077
    %v1151 = vpack.c.b16 %v1080, %v1079
    %v1152 = vpack.c.b16 %v1120, %v1081
    %vm1153 = vcmask 1042432
    %v1154 = vrot.slane %v1121, 5
    %v1155 = vrot.slane %v1122, 5
    %v1156 = vsel %vm1153, %v1154, %v1155
    %v1157 = vrot.slane %v1123, 5
    %v1158 = vsel %vm1153, %v1155, %v1157
    %v1159 = vrot.slane %v1124, 5
    %v1160 = vsel %vm1153, %v1157, %v1159
    %v1161 = vrot.slane %v1125, 5
    %v1162 = vsel %vm1153, %v1159, %v1161
    %v1163 = vrot.slane %v1126, 5
    %v1164 = vsel %vm1153, %v1161, %v1163
    %v1165 = vrot.slane %v1127, 5
    %v1166 = vsel %vm1153, %v1163, %v1165
    %v1167 = vrot.slane %v1128, 5
    %v1168 = vsel %vm1153, %v1165, %v1167
    %v1169 = vrot.slane %v1129, 5
    %v1170 = vsel %vm1153, %v1167, %v1169
    %v1171 = vrot.slane %v1130, 5
    %v1172 = vsel %vm1153, %v1169, %v1171
    %v1173 = vrot.slane %v1131, 5
    %v1174 = vsel %vm1153, %v1171, %v1173
    %v1175 = vrot.slane %v1132, 5
    %v1176 = vsel %vm1153, %v1173, %v1175
    %v1177 = vrot.slane %v1133, 5
    %v1178 = vsel %vm1153, %v1175, %v1177
    %v1179 = vrot.slane %v1134, 5
    %v1180 = vsel %vm1153, %v1177, %v1179
    %v1181 = vrot.slane %v1135, 5
    %v1182 = vsel %vm1153, %v1179, %v1181
    %v1183 = vrot.slane %v1136, 5
    %v1184 = vsel %vm1153, %v1181, %v1183
    %v1185 = vrot.slane %v1137, 5
    %v1186 = vrot.slane %v1138, 5
    %v1187 = vsel %vm1153, %v1185, %v1186
    %v1188 = vrot.slane %v1139, 5
    %v1189 = vsel %vm1153, %v1186, %v1188
    %v1190 = vrot.slane %v1140, 5
    %v1191 = vsel %vm1153, %v1188, %v1190
    %v1192 = vrot.slane %v1141, 5
    %v1193 = vsel %vm1153, %v1190, %v1192
    %v1194 = vrot.slane %v1142, 5
    %v1195 = vsel %vm1153, %v1192, %v1194
    %v1196 = vrot.slane %v1143, 5
    %v1197 = vsel %vm1153, %v1194, %v1196
    %v1198 = vrot.slane %v1144, 5
    %v1199 = vsel %vm1153, %v1196, %v1198
    %v1200 = vrot.slane %v1145, 5
    %v1201 = vsel %vm1153, %v1198, %v1200
    %v1202 = vrot.slane %v1146, 5
    %v1203 = vsel %vm1153, %v1200, %v1202
    %v1204 = vrot.slane %v1147, 5
    %v1205 = vsel %vm1153, %v1202, %v1204
    %v1206 = vrot.slane %v1148, 5
    %v1207 = vsel %vm1153, %v1204, %v1206
    %v1208 = vrot.slane %v1149, 5
    %v1209 = vsel %vm1153, %v1206, %v1208
    %v1210 = vrot.slane %v1150, 5
    %v1211 = vsel %vm1153, %v1208, %v1210
    %v1212 = vrot.slane %v1151, 5
    %v1213 = vsel %vm1153, %v1210, %v1212
    %v1214 = vrot.slane %v1152, 5
    %v1215 = vsel %vm1153, %v1212, %v1214
    %v1220 = vunpack.c.l.b16 %v947
    %v1221 = vunpack.c.l.b16 %v948
    %v1222 = vunpack.c.l.b16 %v949
    %v1223 = vunpack.c.l.b16 %v950
    %v1224 = vpack.c.b16 %v1019, %v1220
    %v1225 = vpack.c.b16 %v1221, %v1221
    %v1226 = vpack.c.b16 %v1052, %v1222
    %v1227 = vpack.c.b16 %v1223, %v1223
    %vm1228 = vcmask 1041408
    %v1229 = vrot.slane %v1224, 6
    %v1230 = vrot.slane %v1122, 6
    %v1231 = vsel %vm1228, %v1229, %v1230
    %v1232 = vrot.slane %v1123, 6
    %v1233 = vsel %vm1228, %v1230, %v1232
    %v1234 = vrot.slane %v1124, 6
    %v1235 = vsel %vm1228, %v1232, %v1234
    %v1236 = vrot.slane %v1125, 6
    %v1237 = vsel %vm1228, %v1234, %v1236
    %v1238 = vrot.slane %v1126, 6
    %v1239 = vsel %vm1228, %v1236, %v1238
    %v1240 = vrot.slane %v1127, 6
    %v1241 = vsel %vm1228, %v1238, %v1240
    %v1242 = vrot.slane %v1128, 6
    %v1243 = vsel %vm1228, %v1240, %v1242
    %v1244 = vrot.slane %v1129, 6
    %v1245 = vsel %vm1228, %v1242, %v1244
    %v1246 = vrot.slane %v1130, 6
    %v1247 = vsel %vm1228, %v1244, %v1246
    %v1248 = vrot.slane %v1131, 6
    %v1249 = vsel %vm1228, %v1246, %v1248
    %v1250 = vrot.slane %v1132, 6
    %v1251 = vsel %vm1228, %v1248, %v1250
    %v1252 = vrot.slane %v1133, 6
    %v1253 = vsel %vm1228, %v1250, %v1252
    %v1254 = vrot.slane %v1134, 6
    %v1255 = vsel %vm1228, %v1252, %v1254
    %v1256 = vrot.slane %v1135, 6
    %v1257 = vsel %vm1228, %v1254, %v1256
    %v1258 = vrot.slane %v1136, 6
    %v1259 = vsel %vm1228, %v1256, %v1258
    %v1260 = vrot.slane %v1225, 6
    %v1261 = vsel %vm1228, %v1258, %v1260
    %v1262 = vrot.slane %v1226, 6
    %v1263 = vrot.slane %v1138, 6
    %v1264 = vsel %vm1228, %v1262, %v1263
    %v1265 = vrot.slane %v1139, 6
    %v1266 = vsel %vm1228, %v1263, %v1265
    %v1267 = vrot.slane %v1140, 6
    %v1268 = vsel %vm1228, %v1265, %v1267
    %v1269 = vrot.slane %v1141, 6
    %v1270 = vsel %vm1228, %v1267, %v1269
    %v1271 = vrot.slane %v1142, 6
    %v1272 = vsel %vm1228, %v1269, %v1271
    %v1273 = vrot.slane %v1143, 6
    %v1274 = vsel %vm1228, %v1271, %v1273
    %v1275 = vrot.slane %v1144, 6
    %v1276 = vsel %vm1228, %v1273, %v1275
    %v1277 = vrot.slane %v1145, 6
    %v1278 = vsel %vm1228, %v1275, %v1277
    %v1279 = vrot.slane %v1146, 6
    %v1280 = vsel %vm1228, %v1277, %v1279
    %v1281 = vrot.slane %v1147, 6
    %v1282 = vsel %vm1228, %v1279, %v1281
    %v1283 = vrot.slane %v1148, 6
    %v1284 = vsel %vm1228, %v1281, %v1283
    %v1285 = vrot.slane %v1149, 6
    %v1286 = vsel %vm1228, %v1283, %v1285
    %v1287 = vrot.slane %v1150, 6
    %v1288 = vsel %vm1228, %v1285, %v1287
    %v1289 = vrot.slane %v1151, 6
    %v1290 = vsel %vm1228, %v1287, %v1289
    %v1291 = vrot.slane %v1152, 6
    %v1292 = vsel %vm1228, %v1289, %v1291
    %v1293 = vrot.slane %v1227, 6
    %v1294 = vsel %vm1228, %v1291, %v1293
    %vm1295 = vcmask 1044480
    %v1296 = vrot.slane %v1083, 3
    %v1297 = vrot.slane %v1084, 3
    %v1298 = vsel %vm1295, %v1296, %v1297
    %v1299 = vrot.slane %v1154, 3
    %v1300 = vrot.slane %v1156, 3
    %v1301 = vsel %vm1295, %v1299, %v1300
    %v1302 = vrot.slane %v1229, 3
    %v1303 = vrot.slane %v1231, 3
    %v1304 = vsel %vm1295, %v1302, %v1303
    %v1305 = vrot.slane %v1085, 3
    %v1306 = vsel %vm1295, %v1297, %v1305
    %v1307 = vrot.slane %v1158, 3
    %v1308 = vsel %vm1295, %v1300, %v1307
    %v1309 = vrot.slane %v1233, 3
    %v1310 = vsel %vm1295, %v1303, %v1309
    %v1311 = vrot.slane %v1086, 3
    %v1312 = vsel %vm1295, %v1305, %v1311
    %v1313 = vrot.slane %v1160, 3
    %v1314 = vsel %vm1295, %v1307, %v1313
    %v1315 = vrot.slane %v1235, 3
    %v1316 = vsel %vm1295, %v1309, %v1315
    %v1317 = vrot.slane %v1087, 3
    %v1318 = vsel %vm1295, %v1311, %v1317
    %v1319 = vrot.slane %v1162, 3
    %v1320 = vsel %vm1295, %v1313, %v1319
    %v1321 = vrot.slane %v1237, 3
    %v1322 = vsel %vm1295, %v1315, %v1321
    %v1323 = vrot.slane %v1088, 3
    %v1324 = vsel %vm1295, %v1317, %v1323
    %v1325 = vrot.slane %v1164, 3
    %v1326 = vsel %vm1295, %v1319, %v1325
    %v1327 = vrot.slane %v1239, 3
    %v1328 = vsel %vm1295, %v1321, %v1327
    %v1329 = vrot.slane %v1089, 3
    %v1330 = vsel %vm1295, %v1323, %v1329
    %v1331 = vrot.slane %v1166, 3
    %v1332 = vsel %vm1295, %v1325, %v1331
    %v1333 = vrot.slane %v1241, 3
    %v1334 = vsel %vm1295, %v1327, %v1333
    %v1335 = vrot.slane %v1090, 3
    %v1336 = vsel %vm1295, %v1329, %v1335
    %v1337 = vrot.slane %v1168, 3
    %v1338 = vsel %vm1295, %v1331, %v1337
    %v1339 = vrot.slane %v1243, 3
    %v1340 = vsel %vm1295, %v1333, %v1339
    %v1341 = vrot.slane %v1091, 3
    %v1342 = vsel %vm1295, %v1335, %v1341
    %v1343 = vrot.slane %v1170, 3
    %v1344 = vsel %vm1295, %v1337, %v1343
    %v1345 = vrot.slane %v1245, 3
    %v1346 = vsel %vm1295, %v1339, %v1345
    %v1347 = vrot.slane %v1092, 3
    %v1348 = vsel %vm1295, %v1341, %v1347
    %v1349 = vrot.slane %v1172, 3
    %v1350 = vsel %vm1295, %v1343, %v1349
    %v1351 = vrot.slane %v1247, 3
    %v1352 = vsel %vm1295, %v1345, %v1351
    %v1353 = vrot.slane %v1093, 3
    %v1354 = vsel %vm1295, %v1347, %v1353
    %v1355 = vrot.slane %v1174, 3
    %v1356 = vsel %vm1295, %v1349, %v1355
    %v1357 = vrot.slane %v1249, 3
    %v1358 = vsel %vm1295, %v1351, %v1357
    %v1359 = vrot.slane %v1094, 3
    %v1360 = vsel %vm1295, %v1353, %v1359
    %v1361 = vrot.slane %v1176, 3
    %v1362 = vsel %vm1295, %v1355, %v1361
    %v1363 = vrot.slane %v1251, 3
    %v1364 = vsel %vm1295, %v1357, %v1363
    %v1365 = vrot.slane %v1095, 3
    %v1366 = vsel %vm1295, %v1359, %v1365
    %v1367 = vrot.slane %v1178, 3
    %v1368 = vsel %vm1295, %v1361, %v1367
    %v1369 = vrot.slane %v1253, 3
    %v1370 = vsel %vm1295, %v1363, %v1369
    %v1371 = vrot.slane %v1096, 3
    %v1372 = vsel %vm1295, %v1365, %v1371
    %v1373 = vrot.slane %v1180, 3
    %v1374 = vsel %vm1295, %v1367, %v1373
    %v1375 = vrot.slane %v1255, 3
    %v1376 = vsel %vm1295, %v1369, %v1375
    %v1377 = vrot.slane %v1097, 3
    %v1378 = vsel %vm1295, %v1371, %v1377
    %v1379 = vrot.slane %v1182, 3
    %v1380 = vsel %vm1295, %v1373, %v1379
    %v1381 = vrot.slane %v1257, 3
    %v1382 = vsel %vm1295, %v1375, %v1381
    %v1383 = vrot.slane %v1098, 3
    %v1384 = vsel %vm1295, %v1377, %v1383
    %v1385 = vrot.slane %v1184, 3
    %v1386 = vsel %vm1295, %v1379, %v1385
    %v1387 = vrot.slane %v1259, 3
    %v1388 = vsel %vm1295, %v1381, %v1387
    %v1389 = vrot.slane %v1099, 3
    %v1390 = vsel %vm1295, %v1383, %v1389
    %v1391 = vrot.slane %v1183, 3
    %v1392 = vsel %vm1295, %v1385, %v1391
    %v1393 = vrot.slane %v1261, 3
    %v1394 = vsel %vm1295, %v1387, %v1393
    %v1395 = vrot.slane %v1100, 3
    %v1396 = vrot.slane %v1101, 3
    %v1397 = vsel %vm1295, %v1395, %v1396
    %v1398 = vrot.slane %v1185, 3
    %v1399 = vrot.slane %v1187, 3
    %v1400 = vsel %vm1295, %v1398, %v1399
    %v1401 = vrot.slane %v1262, 3
    %v1402 = vrot.slane %v1264, 3
    %v1403 = vsel %vm1295, %v1401, %v1402
    %v1404 = vrot.slane %v1102, 3
    %v1405 = vsel %vm1295, %v1396, %v1404
    %v1406 = vrot.slane %v1189, 3
    %v1407 = vsel %vm1295, %v1399, %v1406
    %v1408 = vrot.slane %v1266, 3
    %v1409 = vsel %vm1295, %v1402, %v1408
    %v1410 = vrot.slane %v1103, 3
    %v1411 = vsel %vm1295, %v1404, %v1410
    %v1412 = vrot.slane %v1191, 3
    %v1413 = vsel %vm1295, %v1406, %v1412
    %v1414 = vrot.slane %v1268, 3
    %v1415 = vsel %vm1295, %v1408, %v1414
    %v1416 = vrot.slane %v1104, 3
    %v1417 = vsel %vm1295, %v1410, %v1416
    %v1418 = vrot.slane %v1193, 3
    %v1419 = vsel %vm1295, %v1412, %v1418
    %v1420 = vrot.slane %v1270, 3
    %v1421 = vsel %vm1295, %v1414, %v1420
    %v1422 = vrot.slane %v1105, 3
    %v1423 = vsel %vm1295, %v1416, %v1422
    %v1424 = vrot.slane %v1195, 3
    %v1425 = vsel %vm1295, %v1418, %v1424
    %v1426 = vrot.slane %v1272, 3
    %v1427 = vsel %vm1295, %v1420, %v1426
    %v1428 = vrot.slane %v1106, 3
    %v1429 = vsel %vm1295, %v1422, %v1428
    %v1430 = vrot.slane %v1197, 3
    %v1431 = vsel %vm1295, %v1424, %v1430
    %v1432 = vrot.slane %v1274, 3
    %v1433 = vsel %vm1295, %v1426, %v1432
    %v1434 = vrot.slane %v1107, 3
    %v1435 = vsel %vm1295, %v1428, %v1434
    %v1436 = vrot.slane %v1199, 3
    %v1437 = vsel %vm1295, %v1430, %v1436
    %v1438 = vrot.slane %v1276, 3
    %v1439 = vsel %vm1295, %v1432, %v1438
    %v1440 = vrot.slane %v1108, 3
    %v1441 = vsel %vm1295, %v1434, %v1440
    %v1442 = vrot.slane %v1201, 3
    %v1443 = vsel %vm1295, %v1436, %v1442
    %v1444 = vrot.slane %v1278, 3
    %v1445 = vsel %vm1295, %v1438, %v1444
    %v1446 = vrot.slane %v1109, 3
    %v1447 = vsel %vm1295, %v1440, %v1446
    %v1448 = vrot.slane %v1203, 3
    %v1449 = vsel %vm1295, %v1442, %v1448
    %v1450 = vrot.slane %v1280, 3
    %v1451 = vsel %vm1295, %v1444, %v1450
    %v1452 = vrot.slane %v1110, 3
    %v1453 = vsel %vm1295, %v1446, %v1452
    %v1454 = vrot.slane %v1205, 3
    %v1455 = vsel %vm1295, %v1448, %v1454
    %v1456 = vrot.slane %v1282, 3
    %v1457 = vsel %vm1295, %v1450, %v1456
    %v1458 = vrot.slane %v1111, 3
    %v1459 = vsel %vm1295, %v1452, %v1458
    %v1460 = vrot.slane %v1207, 3
    %v1461 = vsel %vm1295, %v1454, %v1460
    %v1462 = vrot.slane %v1284, 3
    %v1463 = vsel %vm1295, %v1456, %v1462
    %v1464 = vrot.slane %v1112, 3
    %v1465 = vsel %vm1295, %v1458, %v1464
    %v1466 = vrot.slane %v1209, 3
    %v1467 = vsel %vm1295, %v1460, %v1466
    %v1468 = vrot.slane %v1286, 3
    %v1469 = vsel %vm1295, %v1462, %v1468
    %v1470 = vrot.slane %v1113, 3
    %v1471 = vsel %vm1295, %v1464, %v1470
    %v1472 = vrot.slane %v1211, 3
    %v1473 = vsel %vm1295, %v1466, %v1472
    %v1474 = vrot.slane %v1288, 3
    %v1475 = vsel %vm1295, %v1468, %v1474
    %v1476 = vrot.slane %v1114, 3
    %v1477 = vsel %vm1295, %v1470, %v1476
    %v1478 = vrot.slane %v1213, 3
    %v1479 = vsel %vm1295, %v1472, %v1478
    %v1480 = vrot.slane %v1290, 3
    %v1481 = vsel %vm1295, %v1474, %v1480
    %v1482 = vrot.slane %v1115, 3
    %v1483 = vsel %vm1295, %v1476, %v1482
    %v1484 = vrot.slane %v1215, 3
    %v1485 = vsel %vm1295, %v1478, %v1484
    %v1486 = vrot.slane %v1292, 3
    %v1487 = vsel %vm1295, %v1480, %v1486
    %v1488 = vrot.slane %v1116, 3
    %v1489 = vsel %vm1295, %v1482, %v1488
    %v1490 = vrot.slane %v1214, 3
    %v1491 = vsel %vm1295, %v1484, %v1490
    %v1492 = vrot.slane %v1294, 3
    %v1493 = vsel %vm1295, %v1486, %v1492
    %v1590 = vld [vmem:[#allocation6] sm:$0xf]
    %v1591 = vld [vmem:[#allocation6 + $0x4] sm:$0xf]
    %v1592 = vld [vmem:[#allocation6 + $0x8] sm:$0xf]
    %v1593 = vld [vmem:[#allocation6 + $0xc] sm:$0xf]
    %v1594 = vld [vmem:[#allocation6 + $0x10] sm:$0xf]
    %v1595 = vld [vmem:[#allocation6 + $0x14] sm:$0xf]
    %v1596 = vld [vmem:[#allocation6 + $0x18] sm:$0xf]
    %v1597 = vld [vmem:[#allocation6 + $0x1c] sm:$0xf]
    %v1598 = vld [vmem:[#allocation6 + $0x20] sm:$0xf]
    %v1599 = vld [vmem:[#allocation6 + $0x24] sm:$0xf]
    %v1600 = vld [vmem:[#allocation6 + $0x28] sm:$0xf]
    %v1601 = vld [vmem:[#allocation6 + $0x2c] sm:$0xf]
    %v1602 = vld [vmem:[#allocation6 + $0x30] sm:$0xf]
    %v1603 = vld [vmem:[#allocation6 + $0x34] sm:$0xf]
    %v1604 = vld [vmem:[#allocation6 + $0x38] sm:$0xf]
    %v1605 = vld [vmem:[#allocation6 + $0x3c] sm:$0xf]
    %v1606 = vld [vmem:[#allocation6 + $0x40] sm:$0xf]
    %v1607 = vld [vmem:[#allocation6 + $0x44] sm:$0xf]
    %v1608 = vld [vmem:[#allocation6 + $0x48] sm:$0xf]
    %v1609 = vld [vmem:[#allocation6 + $0x4c] sm:$0xf]
    %v1610 = vld [vmem:[#allocation6 + $0x50] sm:$0xf]
    %v1611 = vld [vmem:[#allocation6 + $0x54] sm:$0xf]
    %v1612 = vld [vmem:[#allocation6 + $0x58] sm:$0xf]
    %v1613 = vld [vmem:[#allocation6 + $0x5c] sm:$0xf]
    %v1614 = vld [vmem:[#allocation6 + $0x60] sm:$0xf]
    %v1615 = vld [vmem:[#allocation6 + $0x64] sm:$0xf]
    %v1616 = vld [vmem:[#allocation6 + $0x68] sm:$0xf]
    %v1617 = vld [vmem:[#allocation6 + $0x6c] sm:$0xf]
    %v1618 = vld [vmem:[#allocation6 + $0x70] sm:$0xf]
    %v1619 = vld [vmem:[#allocation6 + $0x74] sm:$0xf]
    %v1620 = vld [vmem:[#allocation6 + $0x78] sm:$0xf]
    %v1621 = vld [vmem:[#allocation6 + $0x7c] sm:$0xf]
    %v1622 = vld [vmem:[#allocation6 + $0x80] sm:$0xf]
    %v1623 = vld [vmem:[#allocation6 + $0x84] sm:$0xf]
    %v1624 = vld [vmem:[#allocation6 + $0x88] sm:$0xf]
    %v1625 = vld [vmem:[#allocation6 + $0x8c] sm:$0xf]
    %v1626 = vld [vmem:[#allocation6 + $0x90] sm:$0xf]
    %v1627 = vld [vmem:[#allocation6 + $0x94] sm:$0xf]
    %v1628 = vld [vmem:[#allocation6 + $0x98] sm:$0xf]
    %v1629 = vld [vmem:[#allocation6 + $0x9c] sm:$0xf]
    %v1630 = vld [vmem:[#allocation6 + $0xa0] sm:$0xf]
    %v1631 = vld [vmem:[#allocation6 + $0xa4] sm:$0xf]
    %v1632 = vld [vmem:[#allocation6 + $0xa8] sm:$0xf]
    %v1633 = vld [vmem:[#allocation6 + $0xac] sm:$0xf]
    %v1634 = vld [vmem:[#allocation6 + $0xb0] sm:$0xf]
    %v1635 = vld [vmem:[#allocation6 + $0xb4] sm:$0xf]
    %v1636 = vld [vmem:[#allocation6 + $0xb8] sm:$0xf]
    %v1637 = vld [vmem:[#allocation6 + $0xbc] sm:$0xf]
    %v1686 = vunpack.c.l.b16 %v1590
    %v1687 = vunpack.c.l.b16 %v1591
    %v1688 = vunpack.c.l.b16 %v1592
    %v1689 = vunpack.c.l.b16 %v1593
    %v1690 = vunpack.c.l.b16 %v1594
    %v1691 = vunpack.c.l.b16 %v1595
    %v1692 = vunpack.c.l.b16 %v1596
    %v1693 = vunpack.c.l.b16 %v1597
    %v1694 = vunpack.c.l.b16 %v1598
    %v1695 = vunpack.c.l.b16 %v1599
    %v1696 = vunpack.c.l.b16 %v1600
    %v1697 = vunpack.c.l.b16 %v1601
    %v1698 = vunpack.c.l.b16 %v1602
    %v1699 = vunpack.c.l.b16 %v1603
    %v1700 = vunpack.c.l.b16 %v1604
    %v1701 = vunpack.c.l.b16 %v1605
    %v1702 = vunpack.c.l.b16 %v1606
    %v1703 = vunpack.c.l.b16 %v1607
    %v1704 = vunpack.c.l.b16 %v1608
    %v1705 = vunpack.c.l.b16 %v1609
    %v1706 = vunpack.c.l.b16 %v1610
    %v1707 = vunpack.c.l.b16 %v1611
    %v1708 = vunpack.c.l.b16 %v1612
    %v1709 = vunpack.c.l.b16 %v1613
    %v1710 = vunpack.c.l.b16 %v1614
    %v1711 = vunpack.c.l.b16 %v1615
    %v1712 = vunpack.c.l.b16 %v1616
    %v1713 = vunpack.c.l.b16 %v1617
    %v1714 = vunpack.c.l.b16 %v1618
    %v1715 = vunpack.c.l.b16 %v1619
    %v1716 = vunpack.c.l.b16 %v1620
    %v1717 = vunpack.c.l.b16 %v1621
    %v1718 = vunpack.c.l.b16 %v1622
    %v1719 = vunpack.c.l.b16 %v1623
    %v1720 = vunpack.c.l.b16 %v1624
    %v1721 = vunpack.c.l.b16 %v1625
    %v1722 = vunpack.c.l.b16 %v1626
    %v1723 = vunpack.c.l.b16 %v1627
    %v1724 = vunpack.c.l.b16 %v1628
    %v1725 = vunpack.c.l.b16 %v1629
    %v1726 = vunpack.c.l.b16 %v1630
    %v1727 = vunpack.c.l.b16 %v1631
    %v1728 = vunpack.c.l.b16 %v1632
    %v1729 = vunpack.c.l.b16 %v1633
    %v1730 = vunpack.c.l.b16 %v1634
    %v1731 = vunpack.c.l.b16 %v1635
    %v1732 = vunpack.c.l.b16 %v1636
    %v1733 = vunpack.c.l.b16 %v1637
    %v1734 = vpack.c.b16 %v1687, %v1686
    %v1735 = vpack.c.b16 %v1689, %v1688
    %v1736 = vpack.c.b16 %v1691, %v1690
    %v1737 = vpack.c.b16 %v1693, %v1692
    %v1738 = vpack.c.b16 %v1695, %v1694
    %v1739 = vpack.c.b16 %v1697, %v1696
    %v1740 = vpack.c.b16 %v1699, %v1698
    %v1741 = vpack.c.b16 %v1701, %v1700
    %v1742 = vpack.c.b16 %v1703, %v1702
    %v1743 = vpack.c.b16 %v1705, %v1704
    %v1744 = vpack.c.b16 %v1707, %v1706
    %v1745 = vpack.c.b16 %v1709, %v1708
    %v1746 = vpack.c.b16 %v1711, %v1710
    %v1747 = vpack.c.b16 %v1713, %v1712
    %v1748 = vpack.c.b16 %v1715, %v1714
    %v1749 = vpack.c.b16 %v1717, %v1716
    %v1750 = vpack.c.b16 %v1719, %v1718
    %v1751 = vpack.c.b16 %v1721, %v1720
    %v1752 = vpack.c.b16 %v1723, %v1722
    %v1753 = vpack.c.b16 %v1725, %v1724
    %v1754 = vpack.c.b16 %v1727, %v1726
    %v1755 = vpack.c.b16 %v1729, %v1728
    %v1756 = vpack.c.b16 %v1731, %v1730
    %v1757 = vpack.c.b16 %v1733, %v1732
    %1782 = vmatprep.subr.bf16.mxu0 0
    %1783 = vmatpush1.bf16.msra.mxu0 %v1741
    %1784 = vmatprep.subr.bf16.mxu0 0
    %1785 = vmatpush1.bf16.msra.mxu0 %v1740
    %1786 = vmatprep.subr.bf16.mxu0 0
    %1787 = vmatpush1.bf16.msra.mxu0 %v1739
    %1788 = vmatprep.subr.bf16.mxu0 0
    %1789 = vmatpush1.bf16.msra.mxu0 %v1738
    %1790 = vmatprep.subr.bf16.mxu0 0
    %1791 = vmatpush1.bf16.msra.mxu0 %v1737
    %1792 = vmatprep.subr.bf16.mxu0 0
    %1793 = vmatpush1.bf16.msra.mxu0 %v1736
    %1794 = vmatprep.subr.bf16.mxu0 0
    %1795 = vmatpush1.bf16.msra.mxu0 %v1735
    %1796 = vmatprep.subr.bf16.mxu0 0
    %1797 = vmatpush1.bf16.msra.mxu0 %v1734
    %1798 = vmatprep.subr.bf16.mxu0 0
    %1799 = vmatpush2.bf16.msra.mxu0 %v1749
    %1800 = vmatprep.subr.bf16.mxu0 0
    %1801 = vmatpush2.bf16.msra.mxu0 %v1748
    %1802 = vmatprep.subr.bf16.mxu0 0
    %1803 = vmatpush2.bf16.msra.mxu0 %v1747
    %1804 = vmatprep.subr.bf16.mxu0 0
    %1805 = vmatpush2.bf16.msra.mxu0 %v1746
    %1806 = vmatprep.subr.bf16.mxu0 0
    %1807 = vmatpush2.bf16.msra.mxu0 %v1745
    %1808 = vmatprep.subr.bf16.mxu0 0
    %1809 = vmatpush2.bf16.msra.mxu0 %v1744
    %1810 = vmatprep.subr.bf16.mxu0 0
    %1811 = vmatpush2.bf16.msra.mxu0 %v1743
    %1812 = vmatprep.subr.bf16.mxu0 0
    %1813 = vmatpush2.bf16.msra.mxu0 %v1742
    %1814 = vmatprep.mubr.bf16.mxu0 %v1301
    %1815 = vmatmul.mubr.bf16.gmra.mxu0 %v1298
    %v1816 = vpop.f32.mrf.mxu0
    %v1817 = vadd.f32 0.0, %v1816
    %v1818 = vpop.f32.mrf.mxu0
    %v1819 = vpop.f32.mrf.mxu0
    %v1820 = vadd.f32 0.0, %v1819
    %v1821 = vpop.f32.mrf.mxu0
    %1822 = vmatprep.mubr.bf16.mxu0 %v1308
    %1823 = vmatmul.mubr.bf16.gmra.mxu0 %v1306
    %v1824 = vpop.f32.mrf.mxu0
    %v1825 = vadd.f32 0.0, %v1824
    %v1826 = vpop.f32.mrf.mxu0
    %v1827 = vpop.f32.mrf.mxu0
    %v1828 = vadd.f32 0.0, %v1827
    %v1829 = vpop.f32.mrf.mxu0
    %1830 = vmatprep.mubr.bf16.mxu0 %v1314
    %1831 = vmatmul.mubr.bf16.gmra.mxu0 %v1312
    %v1832 = vpop.f32.mrf.mxu0
    %v1833 = vadd.f32 0.0, %v1832
    %v1834 = vpop.f32.mrf.mxu0
    %v1835 = vpop.f32.mrf.mxu0
    %v1836 = vadd.f32 0.0, %v1835
    %v1837 = vpop.f32.mrf.mxu0
    %1838 = vmatprep.mubr.bf16.mxu0 %v1320
    %1839 = vmatmul.mubr.bf16.gmra.mxu0 %v1318
    %v1840 = vpop.f32.mrf.mxu0
    %v1841 = vadd.f32 0.0, %v1840
    %v1842 = vpop.f32.mrf.mxu0
    %v1843 = vpop.f32.mrf.mxu0
    %v1844 = vadd.f32 0.0, %v1843
    %v1845 = vpop.f32.mrf.mxu0
    %1846 = vmatprep.mubr.bf16.mxu0 %v1326
    %1847 = vmatmul.mubr.bf16.gmra.mxu0 %v1324
    %v1848 = vpop.f32.mrf.mxu0
    %v1849 = vadd.f32 0.0, %v1848
    %v1850 = vpop.f32.mrf.mxu0
    %v1851 = vpop.f32.mrf.mxu0
    %v1852 = vadd.f32 0.0, %v1851
    %v1853 = vpop.f32.mrf.mxu0
    %1854 = vmatprep.mubr.bf16.mxu0 %v1332
    %1855 = vmatmul.mubr.bf16.gmra.mxu0 %v1330
    %v1856 = vpop.f32.mrf.mxu0
    %v1857 = vadd.f32 0.0, %v1856
    %v1858 = vpop.f32.mrf.mxu0
    %v1859 = vpop.f32.mrf.mxu0
    %v1860 = vadd.f32 0.0, %v1859
    %v1861 = vpop.f32.mrf.mxu0
    %1862 = vmatprep.mubr.bf16.mxu0 %v1338
    %1863 = vmatmul.mubr.bf16.gmra.mxu0 %v1336
    %v1864 = vpop.f32.mrf.mxu0
    %v1865 = vadd.f32 0.0, %v1864
    %v1866 = vpop.f32.mrf.mxu0
    %v1867 = vpop.f32.mrf.mxu0
    %v1868 = vadd.f32 0.0, %v1867
    %v1869 = vpop.f32.mrf.mxu0
    %1870 = vmatprep.mubr.bf16.mxu0 %v1344
    %1871 = vmatmul.mubr.bf16.gmra.mxu0 %v1342
    %v1872 = vpop.f32.mrf.mxu0
    %v1873 = vadd.f32 0.0, %v1872
    %v1874 = vpop.f32.mrf.mxu0
    %v1875 = vpop.f32.mrf.mxu0
    %v1876 = vadd.f32 0.0, %v1875
    %v1877 = vpop.f32.mrf.mxu0
    %1878 = vmatprep.mubr.bf16.mxu0 %v1350
    %1879 = vmatmul.mubr.bf16.gmra.mxu0 %v1348
    %v1880 = vpop.f32.mrf.mxu0
    %v1881 = vadd.f32 0.0, %v1880
    %v1882 = vpop.f32.mrf.mxu0
    %v1883 = vpop.f32.mrf.mxu0
    %v1884 = vadd.f32 0.0, %v1883
    %v1885 = vpop.f32.mrf.mxu0
    %1886 = vmatprep.mubr.bf16.mxu0 %v1356
    %1887 = vmatmul.mubr.bf16.gmra.mxu0 %v1354
    %v1888 = vpop.f32.mrf.mxu0
    %v1889 = vadd.f32 0.0, %v1888
    %v1890 = vpop.f32.mrf.mxu0
    %v1891 = vpop.f32.mrf.mxu0
    %v1892 = vadd.f32 0.0, %v1891
    %v1893 = vpop.f32.mrf.mxu0
    %1894 = vmatprep.mubr.bf16.mxu0 %v1362
    %1895 = vmatmul.mubr.bf16.gmra.mxu0 %v1360
    %v1896 = vpop.f32.mrf.mxu0
    %v1897 = vadd.f32 0.0, %v1896
    %v1898 = vpop.f32.mrf.mxu0
    %v1899 = vpop.f32.mrf.mxu0
    %v1900 = vadd.f32 0.0, %v1899
    %v1901 = vpop.f32.mrf.mxu0
    %1902 = vmatprep.mubr.bf16.mxu0 %v1368
    %1903 = vmatmul.mubr.bf16.gmra.mxu0 %v1366
    %v1904 = vpop.f32.mrf.mxu0
    %v1905 = vadd.f32 0.0, %v1904
    %v1906 = vpop.f32.mrf.mxu0
    %v1907 = vpop.f32.mrf.mxu0
    %v1908 = vadd.f32 0.0, %v1907
    %v1909 = vpop.f32.mrf.mxu0
    %1910 = vmatprep.mubr.bf16.mxu0 %v1374
    %1911 = vmatmul.mubr.bf16.gmra.mxu0 %v1372
    %v1912 = vpop.f32.mrf.mxu0
    %v1913 = vadd.f32 0.0, %v1912
    %v1914 = vpop.f32.mrf.mxu0
    %v1915 = vpop.f32.mrf.mxu0
    %v1916 = vadd.f32 0.0, %v1915
    %v1917 = vpop.f32.mrf.mxu0
    %1918 = vmatprep.mubr.bf16.mxu0 %v1380
    %1919 = vmatmul.mubr.bf16.gmra.mxu0 %v1378
    %v1920 = vpop.f32.mrf.mxu0
    %v1921 = vadd.f32 0.0, %v1920
    %v1922 = vpop.f32.mrf.mxu0
    %v1923 = vpop.f32.mrf.mxu0
    %v1924 = vadd.f32 0.0, %v1923
    %v1925 = vpop.f32.mrf.mxu0
    %1926 = vmatprep.mubr.bf16.mxu0 %v1386
    %1927 = vmatmul.mubr.bf16.gmra.mxu0 %v1384
    %v1928 = vpop.f32.mrf.mxu0
    %v1929 = vadd.f32 0.0, %v1928
    %v1930 = vpop.f32.mrf.mxu0
    %v1931 = vpop.f32.mrf.mxu0
    %v1932 = vadd.f32 0.0, %v1931
    %v1933 = vpop.f32.mrf.mxu0
    %1934 = vmatprep.mubr.bf16.mxu0 %v1392
    %1935 = vmatmul.mubr.bf16.gmra.mxu0 %v1390
    %v1936 = vpop.f32.mrf.mxu0
    %v1937 = vadd.f32 0.0, %v1936
    %v1938 = vpop.f32.mrf.mxu0
    %v1939 = vpop.f32.mrf.mxu0
    %v1940 = vadd.f32 0.0, %v1939
    %v1941 = vpop.f32.mrf.mxu0
    %1942 = vmatprep.mubr.bf16.mxu0 %v1400
    %1943 = vmatmul.mubr.bf16.gmra.mxu0 %v1397
    %v1944 = vpop.f32.mrf.mxu0
    %v1945 = vadd.f32 0.0, %v1944
    %v1946 = vpop.f32.mrf.mxu0
    %v1947 = vpop.f32.mrf.mxu0
    %v1948 = vadd.f32 0.0, %v1947
    %v1949 = vpop.f32.mrf.mxu0
    %1950 = vmatprep.mubr.bf16.mxu0 %v1407
    %1951 = vmatmul.mubr.bf16.gmra.mxu0 %v1405
    %v1952 = vpop.f32.mrf.mxu0
    %v1953 = vadd.f32 0.0, %v1952
    %v1954 = vpop.f32.mrf.mxu0
    %v1955 = vpop.f32.mrf.mxu0
    %v1956 = vadd.f32 0.0, %v1955
    %v1957 = vpop.f32.mrf.mxu0
    %1958 = vmatprep.mubr.bf16.mxu0 %v1413
    %1959 = vmatmul.mubr.bf16.gmra.mxu0 %v1411
    %v1960 = vpop.f32.mrf.mxu0
    %v1961 = vadd.f32 0.0, %v1960
    %v1962 = vpop.f32.mrf.mxu0
    %v1963 = vpop.f32.mrf.mxu0
    %v1964 = vadd.f32 0.0, %v1963
    %v1965 = vpop.f32.mrf.mxu0
    %1966 = vmatprep.mubr.bf16.mxu0 %v1419
    %1967 = vmatmul.mubr.bf16.gmra.mxu0 %v1417
    %v1968 = vpop.f32.mrf.mxu0
    %v1969 = vadd.f32 0.0, %v1968
    %v1970 = vpop.f32.mrf.mxu0
    %v1971 = vpop.f32.mrf.mxu0
    %v1972 = vadd.f32 0.0, %v1971
    %v1973 = vpop.f32.mrf.mxu0
    %1974 = vmatprep.mubr.bf16.mxu0 %v1425
    %1975 = vmatmul.mubr.bf16.gmra.mxu0 %v1423
    %v1976 = vpop.f32.mrf.mxu0
    %v1977 = vadd.f32 0.0, %v1976
    %v1978 = vpop.f32.mrf.mxu0
    %v1979 = vpop.f32.mrf.mxu0
    %v1980 = vadd.f32 0.0, %v1979
    %v1981 = vpop.f32.mrf.mxu0
    %1982 = vmatprep.mubr.bf16.mxu0 %v1431
    %1983 = vmatmul.mubr.bf16.gmra.mxu0 %v1429
    %v1984 = vpop.f32.mrf.mxu0
    %v1985 = vadd.f32 0.0, %v1984
    %v1986 = vpop.f32.mrf.mxu0
    %v1987 = vpop.f32.mrf.mxu0
    %v1988 = vadd.f32 0.0, %v1987
    %v1989 = vpop.f32.mrf.mxu0
    %1990 = vmatprep.mubr.bf16.mxu0 %v1437
    %1991 = vmatmul.mubr.bf16.gmra.mxu0 %v1435
    %v1992 = vpop.f32.mrf.mxu0
    %v1993 = vadd.f32 0.0, %v1992
    %v1994 = vpop.f32.mrf.mxu0
    %v1995 = vpop.f32.mrf.mxu0
    %v1996 = vadd.f32 0.0, %v1995
    %v1997 = vpop.f32.mrf.mxu0
    %1998 = vmatprep.mubr.bf16.mxu0 %v1443
    %1999 = vmatmul.mubr.bf16.gmra.mxu0 %v1441
    %v2000 = vpop.f32.mrf.mxu0
    %v2001 = vadd.f32 0.0, %v2000
    %v2002 = vpop.f32.mrf.mxu0
    %v2003 = vpop.f32.mrf.mxu0
    %v2004 = vadd.f32 0.0, %v2003
    %v2005 = vpop.f32.mrf.mxu0
    %2006 = vmatprep.mubr.bf16.mxu0 %v1449
    %2007 = vmatmul.mubr.bf16.gmra.mxu0 %v1447
    %v2008 = vpop.f32.mrf.mxu0
    %v2009 = vadd.f32 0.0, %v2008
    %v2010 = vpop.f32.mrf.mxu0
    %v2011 = vpop.f32.mrf.mxu0
    %v2012 = vadd.f32 0.0, %v2011
    %v2013 = vpop.f32.mrf.mxu0
    %2014 = vmatprep.mubr.bf16.mxu0 %v1455
    %2015 = vmatmul.mubr.bf16.gmra.mxu0 %v1453
    %v2016 = vpop.f32.mrf.mxu0
    %v2017 = vadd.f32 0.0, %v2016
    %v2018 = vpop.f32.mrf.mxu0
    %v2019 = vpop.f32.mrf.mxu0
    %v2020 = vadd.f32 0.0, %v2019
    %v2021 = vpop.f32.mrf.mxu0
    %2022 = vmatprep.mubr.bf16.mxu0 %v1461
    %2023 = vmatmul.mubr.bf16.gmra.mxu0 %v1459
    %v2024 = vpop.f32.mrf.mxu0
    %v2025 = vadd.f32 0.0, %v2024
    %v2026 = vpop.f32.mrf.mxu0
    %v2027 = vpop.f32.mrf.mxu0
    %v2028 = vadd.f32 0.0, %v2027
    %v2029 = vpop.f32.mrf.mxu0
    %2030 = vmatprep.mubr.bf16.mxu0 %v1467
    %2031 = vmatmul.mubr.bf16.gmra.mxu0 %v1465
    %v2032 = vpop.f32.mrf.mxu0
    %v2033 = vadd.f32 0.0, %v2032
    %v2034 = vpop.f32.mrf.mxu0
    %v2035 = vpop.f32.mrf.mxu0
    %v2036 = vadd.f32 0.0, %v2035
    %v2037 = vpop.f32.mrf.mxu0
    %2038 = vmatprep.mubr.bf16.mxu0 %v1473
    %2039 = vmatmul.mubr.bf16.gmra.mxu0 %v1471
    %v2040 = vpop.f32.mrf.mxu0
    %v2041 = vadd.f32 0.0, %v2040
    %v2042 = vpop.f32.mrf.mxu0
    %v2043 = vpop.f32.mrf.mxu0
    %v2044 = vadd.f32 0.0, %v2043
    %v2045 = vpop.f32.mrf.mxu0
    %2046 = vmatprep.mubr.bf16.mxu0 %v1479
    %2047 = vmatmul.mubr.bf16.gmra.mxu0 %v1477
    %v2048 = vpop.f32.mrf.mxu0
    %v2049 = vadd.f32 0.0, %v2048
    %v2050 = vpop.f32.mrf.mxu0
    %v2051 = vpop.f32.mrf.mxu0
    %v2052 = vadd.f32 0.0, %v2051
    %v2053 = vpop.f32.mrf.mxu0
    %2054 = vmatprep.mubr.bf16.mxu0 %v1485
    %2055 = vmatmul.mubr.bf16.gmra.mxu0 %v1483
    %v2056 = vpop.f32.mrf.mxu0
    %v2057 = vadd.f32 0.0, %v2056
    %v2058 = vpop.f32.mrf.mxu0
    %v2059 = vpop.f32.mrf.mxu0
    %v2060 = vadd.f32 0.0, %v2059
    %v2061 = vpop.f32.mrf.mxu0
    %2062 = vmatprep.mubr.bf16.mxu0 %v1491
    %2063 = vmatmul.mubr.bf16.gmra.mxu0 %v1489
    %v2064 = vpop.f32.mrf.mxu0
    %v2065 = vadd.f32 0.0, %v2064
    %v2066 = vpop.f32.mrf.mxu0
    %v2067 = vpop.f32.mrf.mxu0
    %v2068 = vadd.f32 0.0, %v2067
    %v2069 = vpop.f32.mrf.mxu0
    %2070 = vdwg.mxu0
    %2071 = vmatprep.subr.bf16.mxu0 0
    %2072 = vmatpush1.bf16.msra.mxu0 %v1757
    %2073 = vmatprep.subr.bf16.mxu0 0
    %2074 = vmatpush1.bf16.msra.mxu0 %v1756
    %2075 = vmatprep.subr.bf16.mxu0 0
    %2076 = vmatpush1.bf16.msra.mxu0 %v1755
    %2077 = vmatprep.subr.bf16.mxu0 0
    %2078 = vmatpush1.bf16.msra.mxu0 %v1754
    %2079 = vmatprep.subr.bf16.mxu0 0
    %2080 = vmatpush1.bf16.msra.mxu0 %v1753
    %2081 = vmatprep.subr.bf16.mxu0 0
    %2082 = vmatpush1.bf16.msra.mxu0 %v1752
    %2083 = vmatprep.subr.bf16.mxu0 0
    %2084 = vmatpush1.bf16.msra.mxu0 %v1751
    %2085 = vmatprep.subr.bf16.mxu0 0
    %2086 = vmatpush1.bf16.msra.mxu0 %v1750
    %2087 = vmatprep.subr.bf16.mxu0 0
    %2088 = vmatpush2.bf16.msra.mxu0 0
    %2089 = vmatprep.subr.bf16.mxu0 0
    %2090 = vmatpush2.bf16.msra.mxu0 0
    %2091 = vmatprep.subr.bf16.mxu0 0
    %2092 = vmatpush2.bf16.msra.mxu0 0
    %2093 = vmatprep.subr.bf16.mxu0 0
    %2094 = vmatpush2.bf16.msra.mxu0 0
    %2095 = vmatprep.subr.bf16.mxu0 0
    %2096 = vmatpush2.bf16.msra.mxu0 0
    %2097 = vmatprep.subr.bf16.mxu0 0
    %2098 = vmatpush2.bf16.msra.mxu0 0
    %2099 = vmatprep.subr.bf16.mxu0 0
    %2100 = vmatpush2.bf16.msra.mxu0 0
    %2101 = vmatprep.subr.bf16.mxu0 0
    %2102 = vmatpush2.bf16.msra.mxu0 0
    %2103 = vmatprep.mubr.bf16.mxu0 0
    %2104 = vmatmul.mubr.bf16.gmra.mxu0 %v1304
    %v2105 = vpop.f32.mrf.mxu0
    %v2106 = vadd.f32 %v1817, %v2105
    %v2107 = vpop.f32.mrf.mxu0
    %v2108 = vpop.f32.mrf.mxu0
    %v2109 = vadd.f32 %v1820, %v2108
    %v2110 = vpop.f32.mrf.mxu0
    %2111 = vmatprep.mubr.bf16.mxu0 0
    %2112 = vmatmul.mubr.bf16.gmra.mxu0 %v1310
    %v2113 = vpop.f32.mrf.mxu0
    %v2114 = vadd.f32 %v1825, %v2113
    %v2115 = vpop.f32.mrf.mxu0
    %v2116 = vpop.f32.mrf.mxu0
    %v2117 = vadd.f32 %v1828, %v2116
    %v2118 = vpop.f32.mrf.mxu0
    %2119 = vmatprep.mubr.bf16.mxu0 0
    %2120 = vmatmul.mubr.bf16.gmra.mxu0 %v1316
    %v2121 = vpop.f32.mrf.mxu0
    %v2122 = vadd.f32 %v1833, %v2121
    %v2123 = vpop.f32.mrf.mxu0
    %v2124 = vpop.f32.mrf.mxu0
    %v2125 = vadd.f32 %v1836, %v2124
    %v2126 = vpop.f32.mrf.mxu0
    %2127 = vmatprep.mubr.bf16.mxu0 0
    %2128 = vmatmul.mubr.bf16.gmra.mxu0 %v1322
    %v2129 = vpop.f32.mrf.mxu0
    %v2130 = vadd.f32 %v1841, %v2129
    %v2131 = vpop.f32.mrf.mxu0
    %v2132 = vpop.f32.mrf.mxu0
    %v2133 = vadd.f32 %v1844, %v2132
    %v2134 = vpop.f32.mrf.mxu0
    %2135 = vmatprep.mubr.bf16.mxu0 0
    %2136 = vmatmul.mubr.bf16.gmra.mxu0 %v1328
    %v2137 = vpop.f32.mrf.mxu0
    %v2138 = vadd.f32 %v1849, %v2137
    %v2139 = vpop.f32.mrf.mxu0
    %v2140 = vpop.f32.mrf.mxu0
    %v2141 = vadd.f32 %v1852, %v2140
    %v2142 = vpop.f32.mrf.mxu0
    %2143 = vmatprep.mubr.bf16.mxu0 0
    %2144 = vmatmul.mubr.bf16.gmra.mxu0 %v1334
    %v2145 = vpop.f32.mrf.mxu0
    %v2146 = vadd.f32 %v1857, %v2145
    %v2147 = vpop.f32.mrf.mxu0
    %v2148 = vpop.f32.mrf.mxu0
    %v2149 = vadd.f32 %v1860, %v2148
    %v2150 = vpop.f32.mrf.mxu0
    %2151 = vmatprep.mubr.bf16.mxu0 0
    %2152 = vmatmul.mubr.bf16.gmra.mxu0 %v1340
    %v2153 = vpop.f32.mrf.mxu0
    %v2154 = vadd.f32 %v1865, %v2153
    %v2155 = vpop.f32.mrf.mxu0
    %v2156 = vpop.f32.mrf.mxu0
    %v2157 = vadd.f32 %v1868, %v2156
    %v2158 = vpop.f32.mrf.mxu0
    %2159 = vmatprep.mubr.bf16.mxu0 0
    %2160 = vmatmul.mubr.bf16.gmra.mxu0 %v1346
    %v2161 = vpop.f32.mrf.mxu0
    %v2162 = vadd.f32 %v1873, %v2161
    %v2163 = vpop.f32.mrf.mxu0
    %v2164 = vpop.f32.mrf.mxu0
    %v2165 = vadd.f32 %v1876, %v2164
    %v2166 = vpop.f32.mrf.mxu0
    %2167 = vmatprep.mubr.bf16.mxu0 0
    %2168 = vmatmul.mubr.bf16.gmra.mxu0 %v1352
    %v2169 = vpop.f32.mrf.mxu0
    %v2170 = vadd.f32 %v1881, %v2169
    %v2171 = vpop.f32.mrf.mxu0
    %v2172 = vpop.f32.mrf.mxu0
    %v2173 = vadd.f32 %v1884, %v2172
    %v2174 = vpop.f32.mrf.mxu0
    %2175 = vmatprep.mubr.bf16.mxu0 0
    %2176 = vmatmul.mubr.bf16.gmra.mxu0 %v1358
    %v2177 = vpop.f32.mrf.mxu0
    %v2178 = vadd.f32 %v1889, %v2177
    %v2179 = vpop.f32.mrf.mxu0
    %v2180 = vpop.f32.mrf.mxu0
    %v2181 = vadd.f32 %v1892, %v2180
    %v2182 = vpop.f32.mrf.mxu0
    %2183 = vmatprep.mubr.bf16.mxu0 0
    %2184 = vmatmul.mubr.bf16.gmra.mxu0 %v1364
    %v2185 = vpop.f32.mrf.mxu0
    %v2186 = vadd.f32 %v1897, %v2185
    %v2187 = vpop.f32.mrf.mxu0
    %v2188 = vpop.f32.mrf.mxu0
    %v2189 = vadd.f32 %v1900, %v2188
    %v2190 = vpop.f32.mrf.mxu0
    %2191 = vmatprep.mubr.bf16.mxu0 0
    %2192 = vmatmul.mubr.bf16.gmra.mxu0 %v1370
    %v2193 = vpop.f32.mrf.mxu0
    %v2194 = vadd.f32 %v1905, %v2193
    %v2195 = vpop.f32.mrf.mxu0
    %v2196 = vpop.f32.mrf.mxu0
    %v2197 = vadd.f32 %v1908, %v2196
    %v2198 = vpop.f32.mrf.mxu0
    %2199 = vmatprep.mubr.bf16.mxu0 0
    %2200 = vmatmul.mubr.bf16.gmra.mxu0 %v1376
    %v2201 = vpop.f32.mrf.mxu0
    %v2202 = vadd.f32 %v1913, %v2201
    %v2203 = vpop.f32.mrf.mxu0
    %v2204 = vpop.f32.mrf.mxu0
    %v2205 = vadd.f32 %v1916, %v2204
    %v2206 = vpop.f32.mrf.mxu0
    %2207 = vmatprep.mubr.bf16.mxu0 0
    %2208 = vmatmul.mubr.bf16.gmra.mxu0 %v1382
    %v2209 = vpop.f32.mrf.mxu0
    %v2210 = vadd.f32 %v1921, %v2209
    %v2211 = vpop.f32.mrf.mxu0
    %v2212 = vpop.f32.mrf.mxu0
    %v2213 = vadd.f32 %v1924, %v2212
    %v2214 = vpop.f32.mrf.mxu0
    %2215 = vmatprep.mubr.bf16.mxu0 0
    %2216 = vmatmul.mubr.bf16.gmra.mxu0 %v1388
    %v2217 = vpop.f32.mrf.mxu0
    %v2218 = vadd.f32 %v1929, %v2217
    %v2219 = vpop.f32.mrf.mxu0
    %v2220 = vpop.f32.mrf.mxu0
    %v2221 = vadd.f32 %v1932, %v2220
    %v2222 = vpop.f32.mrf.mxu0
    %2223 = vmatprep.mubr.bf16.mxu0 0
    %2224 = vmatmul.mubr.bf16.gmra.mxu0 %v1394
    %v2225 = vpop.f32.mrf.mxu0
    %v2226 = vadd.f32 %v1937, %v2225
    %v2227 = vpop.f32.mrf.mxu0
    %v2228 = vpop.f32.mrf.mxu0
    %v2229 = vadd.f32 %v1940, %v2228
    %v2230 = vpop.f32.mrf.mxu0
    %2231 = vmatprep.mubr.bf16.mxu0 0
    %2232 = vmatmul.mubr.bf16.gmra.mxu0 %v1403
    %v2233 = vpop.f32.mrf.mxu0
    %v2234 = vadd.f32 %v1945, %v2233
    %v2235 = vpop.f32.mrf.mxu0
    %v2236 = vpop.f32.mrf.mxu0
    %v2237 = vadd.f32 %v1948, %v2236
    %v2238 = vpop.f32.mrf.mxu0
    %2239 = vmatprep.mubr.bf16.mxu0 0
    %2240 = vmatmul.mubr.bf16.gmra.mxu0 %v1409
    %v2241 = vpop.f32.mrf.mxu0
    %v2242 = vadd.f32 %v1953, %v2241
    %v2243 = vpop.f32.mrf.mxu0
    %v2244 = vpop.f32.mrf.mxu0
    %v2245 = vadd.f32 %v1956, %v2244
    %v2246 = vpop.f32.mrf.mxu0
    %2247 = vmatprep.mubr.bf16.mxu0 0
    %2248 = vmatmul.mubr.bf16.gmra.mxu0 %v1415
    %v2249 = vpop.f32.mrf.mxu0
    %v2250 = vadd.f32 %v1961, %v2249
    %v2251 = vpop.f32.mrf.mxu0
    %v2252 = vpop.f32.mrf.mxu0
    %v2253 = vadd.f32 %v1964, %v2252
    %v2254 = vpop.f32.mrf.mxu0
    %2255 = vmatprep.mubr.bf16.mxu0 0
    %2256 = vmatmul.mubr.bf16.gmra.mxu0 %v1421
    %v2257 = vpop.f32.mrf.mxu0
    %v2258 = vadd.f32 %v1969, %v2257
    %v2259 = vpop.f32.mrf.mxu0
    %v2260 = vpop.f32.mrf.mxu0
    %v2261 = vadd.f32 %v1972, %v2260
    %v2262 = vpop.f32.mrf.mxu0
    %2263 = vmatprep.mubr.bf16.mxu0 0
    %2264 = vmatmul.mubr.bf16.gmra.mxu0 %v1427
    %v2265 = vpop.f32.mrf.mxu0
    %v2266 = vadd.f32 %v1977, %v2265
    %v2267 = vpop.f32.mrf.mxu0
    %v2268 = vpop.f32.mrf.mxu0
    %v2269 = vadd.f32 %v1980, %v2268
    %v2270 = vpop.f32.mrf.mxu0
    %2271 = vmatprep.mubr.bf16.mxu0 0
    %2272 = vmatmul.mubr.bf16.gmra.mxu0 %v1433
    %v2273 = vpop.f32.mrf.mxu0
    %v2274 = vadd.f32 %v1985, %v2273
    %v2275 = vpop.f32.mrf.mxu0
    %v2276 = vpop.f32.mrf.mxu0
    %v2277 = vadd.f32 %v1988, %v2276
    %v2278 = vpop.f32.mrf.mxu0
    %2279 = vmatprep.mubr.bf16.mxu0 0
    %2280 = vmatmul.mubr.bf16.gmra.mxu0 %v1439
    %v2281 = vpop.f32.mrf.mxu0
    %v2282 = vadd.f32 %v1993, %v2281
    %v2283 = vpop.f32.mrf.mxu0
    %v2284 = vpop.f32.mrf.mxu0
    %v2285 = vadd.f32 %v1996, %v2284
    %v2286 = vpop.f32.mrf.mxu0
    %2287 = vmatprep.mubr.bf16.mxu0 0
    %2288 = vmatmul.mubr.bf16.gmra.mxu0 %v1445
    %v2289 = vpop.f32.mrf.mxu0
    %v2290 = vadd.f32 %v2001, %v2289
    %v2291 = vpop.f32.mrf.mxu0
    %v2292 = vpop.f32.mrf.mxu0
    %v2293 = vadd.f32 %v2004, %v2292
    %v2294 = vpop.f32.mrf.mxu0
    %2295 = vmatprep.mubr.bf16.mxu0 0
    %2296 = vmatmul.mubr.bf16.gmra.mxu0 %v1451
    %v2297 = vpop.f32.mrf.mxu0
    %v2298 = vadd.f32 %v2009, %v2297
    %v2299 = vpop.f32.mrf.mxu0
    %v2300 = vpop.f32.mrf.mxu0
    %v2301 = vadd.f32 %v2012, %v2300
    %v2302 = vpop.f32.mrf.mxu0
    %2303 = vmatprep.mubr.bf16.mxu0 0
    %2304 = vmatmul.mubr.bf16.gmra.mxu0 %v1457
    %v2305 = vpop.f32.mrf.mxu0
    %v2306 = vadd.f32 %v2017, %v2305
    %v2307 = vpop.f32.mrf.mxu0
    %v2308 = vpop.f32.mrf.mxu0
    %v2309 = vadd.f32 %v2020, %v2308
    %v2310 = vpop.f32.mrf.mxu0
    %2311 = vmatprep.mubr.bf16.mxu0 0
    %2312 = vmatmul.mubr.bf16.gmra.mxu0 %v1463
    %v2313 = vpop.f32.mrf.mxu0
    %v2314 = vadd.f32 %v2025, %v2313
    %v2315 = vpop.f32.mrf.mxu0
    %v2316 = vpop.f32.mrf.mxu0
    %v2317 = vadd.f32 %v2028, %v2316
    %v2318 = vpop.f32.mrf.mxu0
    %2319 = vmatprep.mubr.bf16.mxu0 0
    %2320 = vmatmul.mubr.bf16.gmra.mxu0 %v1469
    %v2321 = vpop.f32.mrf.mxu0
    %v2322 = vadd.f32 %v2033, %v2321
    %v2323 = vpop.f32.mrf.mxu0
    %v2324 = vpop.f32.mrf.mxu0
    %v2325 = vadd.f32 %v2036, %v2324
    %v2326 = vpop.f32.mrf.mxu0
    %2327 = vmatprep.mubr.bf16.mxu0 0
    %2328 = vmatmul.mubr.bf16.gmra.mxu0 %v1475
    %v2329 = vpop.f32.mrf.mxu0
    %v2330 = vadd.f32 %v2041, %v2329
    %v2331 = vpop.f32.mrf.mxu0
    %v2332 = vpop.f32.mrf.mxu0
    %v2333 = vadd.f32 %v2044, %v2332
    %v2334 = vpop.f32.mrf.mxu0
    %2335 = vmatprep.mubr.bf16.mxu0 0
    %2336 = vmatmul.mubr.bf16.gmra.mxu0 %v1481
    %v2337 = vpop.f32.mrf.mxu0
    %v2338 = vadd.f32 %v2049, %v2337
    %v2339 = vpop.f32.mrf.mxu0
    %v2340 = vpop.f32.mrf.mxu0
    %v2341 = vadd.f32 %v2052, %v2340
    %v2342 = vpop.f32.mrf.mxu0
    %2343 = vmatprep.mubr.bf16.mxu0 0
    %2344 = vmatmul.mubr.bf16.gmra.mxu0 %v1487
    %v2345 = vpop.f32.mrf.mxu0
    %v2346 = vadd.f32 %v2057, %v2345
    %v2347 = vpop.f32.mrf.mxu0
    %v2348 = vpop.f32.mrf.mxu0
    %v2349 = vadd.f32 %v2060, %v2348
    %v2350 = vpop.f32.mrf.mxu0
    %2351 = vmatprep.mubr.bf16.mxu0 0
    %2352 = vmatmul.mubr.bf16.gmra.mxu0 %v1493
    %v2353 = vpop.f32.mrf.mxu0
    %v2354 = vadd.f32 %v2065, %v2353
    %v2355 = vpop.f32.mrf.mxu0
    %v2356 = vpop.f32.mrf.mxu0
    %v2357 = vadd.f32 %v2068, %v2356
    %v2358 = vpop.f32.mrf.mxu0
    %2359 = vdwg.mxu0
    %v2360 = vadd.f32 %v2106, %v2109
    %v2361 = vadd.f32 %v2360, %v2114
    %v2362 = vadd.f32 %v2361, %v2117
    %v2363 = vadd.f32 %v2362, %v2122
    %v2364 = vadd.f32 %v2363, %v2125
    %v2365 = vadd.f32 %v2364, %v2130
    %v2366 = vadd.f32 %v2365, %v2133
    %v2367 = vadd.f32 %v2366, %v2138
    %v2368 = vadd.f32 %v2367, %v2141
    %v2369 = vadd.f32 %v2368, %v2146
    %v2370 = vadd.f32 %v2369, %v2149
    %v2371 = vadd.f32 %v2370, %v2154
    %v2372 = vadd.f32 %v2371, %v2157
    %v2373 = vadd.f32 %v2372, %v2162
    %v2374 = vadd.f32 %v2373, %v2165
    %v2375 = vadd.f32 %v2374, %v2170
    %v2376 = vadd.f32 %v2375, %v2173
    %v2377 = vadd.f32 %v2376, %v2178
    %v2378 = vadd.f32 %v2377, %v2181
    %v2379 = vadd.f32 %v2378, %v2186
    %v2380 = vadd.f32 %v2379, %v2189
    %v2381 = vadd.f32 %v2380, %v2194
    %v2382 = vadd.f32 %v2381, %v2197
    %v2383 = vadd.f32 %v2382, %v2202
    %v2384 = vadd.f32 %v2383, %v2205
    %v2385 = vadd.f32 %v2384, %v2210
    %v2386 = vadd.f32 %v2385, %v2213
    %v2387 = vadd.f32 %v2386, %v2218
    %v2388 = vadd.f32 %v2387, %v2221
    %v2389 = vadd.f32 %v2388, %v2226
    %v2390 = vadd.f32 %v2389, %v2229
    %v2391 = vadd.f32 %v2390, %v2234
    %v2392 = vadd.f32 %v2391, %v2237
    %v2393 = vadd.f32 %v2392, %v2242
    %v2394 = vadd.f32 %v2393, %v2245
    %v2395 = vadd.f32 %v2394, %v2250
    %v2396 = vadd.f32 %v2395, %v2253
    %v2397 = vadd.f32 %v2396, %v2258
    %v2398 = vadd.f32 %v2397, %v2261
    %v2399 = vadd.f32 %v2398, %v2266
    %v2400 = vadd.f32 %v2399, %v2269
    %v2401 = vadd.f32 %v2400, %v2274
    %v2402 = vadd.f32 %v2401, %v2277
    %v2403 = vadd.f32 %v2402, %v2282
    %v2404 = vadd.f32 %v2403, %v2285
    %v2405 = vadd.f32 %v2404, %v2290
    %v2406 = vadd.f32 %v2405, %v2293
    %v2407 = vadd.f32 %v2406, %v2298
    %v2408 = vadd.f32 %v2407, %v2301
    %v2409 = vadd.f32 %v2408, %v2306
    %v2410 = vadd.f32 %v2409, %v2309
    %v2411 = vadd.f32 %v2410, %v2314
    %v2412 = vadd.f32 %v2411, %v2317
    %v2413 = vadd.f32 %v2412, %v2322
    %v2414 = vadd.f32 %v2413, %v2325
    %v2415 = vadd.f32 %v2414, %v2330
    %v2416 = vadd.f32 %v2415, %v2333
    %v2417 = vadd.f32 %v2416, %v2338
    %v2418 = vadd.f32 %v2417, %v2341
    %v2419 = vadd.f32 %v2418, %v2346
    %v2420 = vadd.f32 %v2419, %v2349
    %v2421 = vadd.f32 %v2420, %v2354
    %v2422 = vadd.f32 %v2421, %v2357
    %v2423 = vrot.slane %v2422, 4
    %v2424 = vadd.f32 %v2422, %v2423
    %v2425 = vrot.slane %v2424, 2
    %v2426 = vadd.f32 %v2424, %v2425
    %v2427 = vrot.slane %v2426, 1
    %v2428 = vadd.f32 %v2426, %v2427
    %v2429 = vmul.f32 %v2106, %v2106
    %v2430 = vmul.f32 %v2109, %v2109
    %v2431 = vmul.f32 %v2114, %v2114
    %v2432 = vmul.f32 %v2117, %v2117
    %v2433 = vmul.f32 %v2122, %v2122
    %v2434 = vmul.f32 %v2125, %v2125
    %v2435 = vmul.f32 %v2130, %v2130
    %v2436 = vmul.f32 %v2133, %v2133
    %v2437 = vmul.f32 %v2138, %v2138
    %v2438 = vmul.f32 %v2141, %v2141
    %v2439 = vmul.f32 %v2146, %v2146
    %v2440 = vmul.f32 %v2149, %v2149
    %v2441 = vmul.f32 %v2154, %v2154
    %v2442 = vmul.f32 %v2157, %v2157
    %v2443 = vmul.f32 %v2162, %v2162
    %v2444 = vmul.f32 %v2165, %v2165
    %v2445 = vmul.f32 %v2170, %v2170
    %v2446 = vmul.f32 %v2173, %v2173
    %v2447 = vmul.f32 %v2178, %v2178
    %v2448 = vmul.f32 %v2181, %v2181
    %v2449 = vmul.f32 %v2186, %v2186
    %v2450 = vmul.f32 %v2189, %v2189
    %v2451 = vmul.f32 %v2194, %v2194
    %v2452 = vmul.f32 %v2197, %v2197
    %v2453 = vmul.f32 %v2202, %v2202
    %v2454 = vmul.f32 %v2205, %v2205
    %v2455 = vmul.f32 %v2210, %v2210
    %v2456 = vmul.f32 %v2213, %v2213
    %v2457 = vmul.f32 %v2218, %v2218
    %v2458 = vmul.f32 %v2221, %v2221
    %v2459 = vmul.f32 %v2226, %v2226
    %v2460 = vmul.f32 %v2229, %v2229
    %v2461 = vmul.f32 %v2234, %v2234
    %v2462 = vmul.f32 %v2237, %v2237
    %v2463 = vmul.f32 %v2242, %v2242
    %v2464 = vmul.f32 %v2245, %v2245
    %v2465 = vmul.f32 %v2250, %v2250
    %v2466 = vmul.f32 %v2253, %v2253
    %v2467 = vmul.f32 %v2258, %v2258
    %v2468 = vmul.f32 %v2261, %v2261
    %v2469 = vmul.f32 %v2266, %v2266
    %v2470 = vmul.f32 %v2269, %v2269
    %v2471 = vmul.f32 %v2274, %v2274
    %v2472 = vmul.f32 %v2277, %v2277
    %v2473 = vmul.f32 %v2282, %v2282
    %v2474 = vmul.f32 %v2285, %v2285
    %v2475 = vmul.f32 %v2290, %v2290
    %v2476 = vmul.f32 %v2293, %v2293
    %v2477 = vmul.f32 %v2298, %v2298
    %v2478 = vmul.f32 %v2301, %v2301
    %v2479 = vmul.f32 %v2306, %v2306
    %v2480 = vmul.f32 %v2309, %v2309
    %v2481 = vmul.f32 %v2314, %v2314
    %v2482 = vmul.f32 %v2317, %v2317
    %v2483 = vmul.f32 %v2322, %v2322
    %v2484 = vmul.f32 %v2325, %v2325
    %v2485 = vmul.f32 %v2330, %v2330
    %v2486 = vmul.f32 %v2333, %v2333
    %v2487 = vmul.f32 %v2338, %v2338
    %v2488 = vmul.f32 %v2341, %v2341
    %v2489 = vmul.f32 %v2346, %v2346
    %v2490 = vmul.f32 %v2349, %v2349
    %v2491 = vmul.f32 %v2354, %v2354
    %v2492 = vmul.f32 %v2357, %v2357
    %v2493 = vadd.f32 %v2429, %v2430
    %v2494 = vadd.f32 %v2493, %v2431
    %v2495 = vadd.f32 %v2494, %v2432
    %v2496 = vadd.f32 %v2495, %v2433
    %v2497 = vadd.f32 %v2496, %v2434
    %v2498 = vadd.f32 %v2497, %v2435
    %v2499 = vadd.f32 %v2498, %v2436
    %v2500 = vadd.f32 %v2499, %v2437
    %v2501 = vadd.f32 %v2500, %v2438
    %v2502 = vadd.f32 %v2501, %v2439
    %v2503 = vadd.f32 %v2502, %v2440
    %v2504 = vadd.f32 %v2503, %v2441
    %v2505 = vadd.f32 %v2504, %v2442
    %v2506 = vadd.f32 %v2505, %v2443
    %v2507 = vadd.f32 %v2506, %v2444
    %v2508 = vadd.f32 %v2507, %v2445
    %v2509 = vadd.f32 %v2508, %v2446
    %v2510 = vadd.f32 %v2509, %v2447
    %v2511 = vadd.f32 %v2510, %v2448
    %v2512 = vadd.f32 %v2511, %v2449
    %v2513 = vadd.f32 %v2512, %v2450
    %v2514 = vadd.f32 %v2513, %v2451
    %v2515 = vadd.f32 %v2514, %v2452
    %v2516 = vadd.f32 %v2515, %v2453
    %v2517 = vadd.f32 %v2516, %v2454
    %v2518 = vadd.f32 %v2517, %v2455
    %v2519 = vadd.f32 %v2518, %v2456
    %v2520 = vadd.f32 %v2519, %v2457
    %v2521 = vadd.f32 %v2520, %v2458
    %v2522 = vadd.f32 %v2521, %v2459
    %v2523 = vadd.f32 %v2522, %v2460
    %v2524 = vadd.f32 %v2523, %v2461
    %v2525 = vadd.f32 %v2524, %v2462
    %v2526 = vadd.f32 %v2525, %v2463
    %v2527 = vadd.f32 %v2526, %v2464
    %v2528 = vadd.f32 %v2527, %v2465
    %v2529 = vadd.f32 %v2528, %v2466
    %v2530 = vadd.f32 %v2529, %v2467
    %v2531 = vadd.f32 %v2530, %v2468
    %v2532 = vadd.f32 %v2531, %v2469
    %v2533 = vadd.f32 %v2532, %v2470
    %v2534 = vadd.f32 %v2533, %v2471
    %v2535 = vadd.f32 %v2534, %v2472
    %v2536 = vadd.f32 %v2535, %v2473
    %v2537 = vadd.f32 %v2536, %v2474
    %v2538 = vadd.f32 %v2537, %v2475
    %v2539 = vadd.f32 %v2538, %v2476
    %v2540 = vadd.f32 %v2539, %v2477
    %v2541 = vadd.f32 %v2540, %v2478
    %v2542 = vadd.f32 %v2541, %v2479
    %v2543 = vadd.f32 %v2542, %v2480
    %v2544 = vadd.f32 %v2543, %v2481
    %v2545 = vadd.f32 %v2544, %v2482
    %v2546 = vadd.f32 %v2545, %v2483
    %v2547 = vadd.f32 %v2546, %v2484
    %v2548 = vadd.f32 %v2547, %v2485
    %v2549 = vadd.f32 %v2548, %v2486
    %v2550 = vadd.f32 %v2549, %v2487
    %v2551 = vadd.f32 %v2550, %v2488
    %v2552 = vadd.f32 %v2551, %v2489
    %v2553 = vadd.f32 %v2552, %v2490
    %v2554 = vadd.f32 %v2553, %v2491
    %v2555 = vadd.f32 %v2554, %v2492
    %v2556 = vrot.slane %v2555, 4
    %v2557 = vadd.f32 %v2555, %v2556
    %v2558 = vrot.slane %v2557, 2
    %v2559 = vadd.f32 %v2557, %v2558
    %v2560 = vrot.slane %v2559, 1
    %v2561 = vadd.f32 %v2559, %v2560
    %v2562 = vld [vmem:[%s4] sm:$0x1]
    %v2563 = vld [vmem:[%s5] sm:$0x1]
    %v2564 = vmul.f32 %v2428, 0.001953125
    %v2565 = vmul.f32 %v2561, 0.001953125
    %v2566 = vmul.f32 %v2564, %v2564
    %v2567 = vsub.f32 %v2565, %v2566
    %v2568 = vadd.f32 %v2567, 1e-05
    %v2569 = vrsqrt.pop %v2568
    %v2570 = vmul.f32 %v2562, %v2569
    %v2571 = vmul.f32 %v2564, %v2570
    %v2572 = vsub.f32 %v2563, %v2571
    %v2574 = vlaneseq
    %v2575 = vshrl.u32 %v2574, 7
    %v2576 = vsub.s32 0, %v2575
    %v2577 = vrot.slane %v2570, %v2576
    %v2579 = vmul.f32 %v2106, %v2577
    %v2580 = vmul.f32 %v2109, %v2577
    %v2581 = vmul.f32 %v2114, %v2577
    %v2582 = vmul.f32 %v2117, %v2577
    %v2583 = vmul.f32 %v2122, %v2577
    %v2584 = vmul.f32 %v2125, %v2577
    %v2585 = vmul.f32 %v2130, %v2577
    %v2586 = vmul.f32 %v2133, %v2577
    %v2587 = vmul.f32 %v2138, %v2577
    %v2588 = vmul.f32 %v2141, %v2577
    %v2589 = vmul.f32 %v2146, %v2577
    %v2590 = vmul.f32 %v2149, %v2577
    %v2591 = vmul.f32 %v2154, %v2577
    %v2592 = vmul.f32 %v2157, %v2577
    %v2593 = vmul.f32 %v2162, %v2577
    %v2594 = vmul.f32 %v2165, %v2577
    %v2595 = vmul.f32 %v2170, %v2577
    %v2596 = vmul.f32 %v2173, %v2577
    %v2597 = vmul.f32 %v2178, %v2577
    %v2598 = vmul.f32 %v2181, %v2577
    %v2599 = vmul.f32 %v2186, %v2577
    %v2600 = vmul.f32 %v2189, %v2577
    %v2601 = vmul.f32 %v2194, %v2577
    %v2602 = vmul.f32 %v2197, %v2577
    %v2603 = vmul.f32 %v2202, %v2577
    %v2604 = vmul.f32 %v2205, %v2577
    %v2605 = vmul.f32 %v2210, %v2577
    %v2606 = vmul.f32 %v2213, %v2577
    %v2607 = vmul.f32 %v2218, %v2577
    %v2608 = vmul.f32 %v2221, %v2577
    %v2609 = vmul.f32 %v2226, %v2577
    %v2610 = vmul.f32 %v2229, %v2577
    %v2611 = vmul.f32 %v2234, %v2577
    %v2612 = vmul.f32 %v2237, %v2577
    %v2613 = vmul.f32 %v2242, %v2577
    %v2614 = vmul.f32 %v2245, %v2577
    %v2615 = vmul.f32 %v2250, %v2577
    %v2616 = vmul.f32 %v2253, %v2577
    %v2617 = vmul.f32 %v2258, %v2577
    %v2618 = vmul.f32 %v2261, %v2577
    %v2619 = vmul.f32 %v2266, %v2577
    %v2620 = vmul.f32 %v2269, %v2577
    %v2621 = vmul.f32 %v2274, %v2577
    %v2622 = vmul.f32 %v2277, %v2577
    %v2623 = vmul.f32 %v2282, %v2577
    %v2624 = vmul.f32 %v2285, %v2577
    %v2625 = vmul.f32 %v2290, %v2577
    %v2626 = vmul.f32 %v2293, %v2577
    %v2627 = vmul.f32 %v2298, %v2577
    %v2628 = vmul.f32 %v2301, %v2577
    %v2629 = vmul.f32 %v2306, %v2577
    %v2630 = vmul.f32 %v2309, %v2577
    %v2631 = vmul.f32 %v2314, %v2577
    %v2632 = vmul.f32 %v2317, %v2577
    %v2633 = vmul.f32 %v2322, %v2577
    %v2634 = vmul.f32 %v2325, %v2577
    %v2635 = vmul.f32 %v2330, %v2577
    %v2636 = vmul.f32 %v2333, %v2577
    %v2637 = vmul.f32 %v2338, %v2577
    %v2638 = vmul.f32 %v2341, %v2577
    %v2639 = vmul.f32 %v2346, %v2577
    %v2640 = vmul.f32 %v2349, %v2577
    %v2641 = vmul.f32 %v2354, %v2577
    %v2642 = vmul.f32 %v2357, %v2577
    %v2644 = vlaneseq
    %v2645 = vshrl.u32 %v2644, 7
    %v2646 = vsub.s32 0, %v2645
    %v2647 = vrot.slane %v2572, %v2646
    %v2649 = vadd.f32 %v2579, %v2647
    %v2650 = vadd.f32 %v2580, %v2647
    %v2651 = vadd.f32 %v2581, %v2647
    %v2652 = vadd.f32 %v2582, %v2647
    %v2653 = vadd.f32 %v2583, %v2647
    %v2654 = vadd.f32 %v2584, %v2647
    %v2655 = vadd.f32 %v2585, %v2647
    %v2656 = vadd.f32 %v2586, %v2647
    %v2657 = vadd.f32 %v2587, %v2647
    %v2658 = vadd.f32 %v2588, %v2647
    %v2659 = vadd.f32 %v2589, %v2647
    %v2660 = vadd.f32 %v2590, %v2647
    %v2661 = vadd.f32 %v2591, %v2647
    %v2662 = vadd.f32 %v2592, %v2647
    %v2663 = vadd.f32 %v2593, %v2647
    %v2664 = vadd.f32 %v2594, %v2647
    %v2665 = vadd.f32 %v2595, %v2647
    %v2666 = vadd.f32 %v2596, %v2647
    %v2667 = vadd.f32 %v2597, %v2647
    %v2668 = vadd.f32 %v2598, %v2647
    %v2669 = vadd.f32 %v2599, %v2647
    %v2670 = vadd.f32 %v2600, %v2647
    %v2671 = vadd.f32 %v2601, %v2647
    %v2672 = vadd.f32 %v2602, %v2647
    %v2673 = vadd.f32 %v2603, %v2647
    %v2674 = vadd.f32 %v2604, %v2647
    %v2675 = vadd.f32 %v2605, %v2647
    %v2676 = vadd.f32 %v2606, %v2647
    %v2677 = vadd.f32 %v2607, %v2647
    %v2678 = vadd.f32 %v2608, %v2647
    %v2679 = vadd.f32 %v2609, %v2647
    %v2680 = vadd.f32 %v2610, %v2647
    %v2681 = vadd.f32 %v2611, %v2647
    %v2682 = vadd.f32 %v2612, %v2647
    %v2683 = vadd.f32 %v2613, %v2647
    %v2684 = vadd.f32 %v2614, %v2647
    %v2685 = vadd.f32 %v2615, %v2647
    %v2686 = vadd.f32 %v2616, %v2647
    %v2687 = vadd.f32 %v2617, %v2647
    %v2688 = vadd.f32 %v2618, %v2647
    %v2689 = vadd.f32 %v2619, %v2647
    %v2690 = vadd.f32 %v2620, %v2647
    %v2691 = vadd.f32 %v2621, %v2647
    %v2692 = vadd.f32 %v2622, %v2647
    %v2693 = vadd.f32 %v2623, %v2647
    %v2694 = vadd.f32 %v2624, %v2647
    %v2695 = vadd.f32 %v2625, %v2647
    %v2696 = vadd.f32 %v2626, %v2647
    %v2697 = vadd.f32 %v2627, %v2647
    %v2698 = vadd.f32 %v2628, %v2647
    %v2699 = vadd.f32 %v2629, %v2647
    %v2700 = vadd.f32 %v2630, %v2647
    %v2701 = vadd.f32 %v2631, %v2647
    %v2702 = vadd.f32 %v2632, %v2647
    %v2703 = vadd.f32 %v2633, %v2647
    %v2704 = vadd.f32 %v2634, %v2647
    %v2705 = vadd.f32 %v2635, %v2647
    %v2706 = vadd.f32 %v2636, %v2647
    %v2707 = vadd.f32 %v2637, %v2647
    %v2708 = vadd.f32 %v2638, %v2647
    %v2709 = vadd.f32 %v2639, %v2647
    %v2710 = vadd.f32 %v2640, %v2647
    %v2711 = vadd.f32 %v2641, %v2647
    %v2712 = vadd.f32 %v2642, %v2647
    %v2713 = vmax.f32 %v2649, 0.0
    %v2714 = vmax.f32 %v2650, 0.0
    %v2715 = vmax.f32 %v2651, 0.0
    %v2716 = vmax.f32 %v2652, 0.0
    %v2717 = vmax.f32 %v2653, 0.0
    %v2718 = vmax.f32 %v2654, 0.0
    %v2719 = vmax.f32 %v2655, 0.0
    %v2720 = vmax.f32 %v2656, 0.0
    %v2721 = vmax.f32 %v2657, 0.0
    %v2722 = vmax.f32 %v2658, 0.0
    %v2723 = vmax.f32 %v2659, 0.0
    %v2724 = vmax.f32 %v2660, 0.0
    %v2725 = vmax.f32 %v2661, 0.0
    %v2726 = vmax.f32 %v2662, 0.0
    %v2727 = vmax.f32 %v2663, 0.0
    %v2728 = vmax.f32 %v2664, 0.0
    %v2729 = vmax.f32 %v2665, 0.0
    %v2730 = vmax.f32 %v2666, 0.0
    %v2731 = vmax.f32 %v2667, 0.0
    %v2732 = vmax.f32 %v2668, 0.0
    %v2733 = vmax.f32 %v2669, 0.0
    %v2734 = vmax.f32 %v2670, 0.0
    %v2735 = vmax.f32 %v2671, 0.0
    %v2736 = vmax.f32 %v2672, 0.0
    %v2737 = vmax.f32 %v2673, 0.0
    %v2738 = vmax.f32 %v2674, 0.0
    %v2739 = vmax.f32 %v2675, 0.0
    %v2740 = vmax.f32 %v2676, 0.0
    %v2741 = vmax.f32 %v2677, 0.0
    %v2742 = vmax.f32 %v2678, 0.0
    %v2743 = vmax.f32 %v2679, 0.0
    %v2744 = vmax.f32 %v2680, 0.0
    %v2745 = vmax.f32 %v2681, 0.0
    %v2746 = vmax.f32 %v2682, 0.0
    %v2747 = vmax.f32 %v2683, 0.0
    %v2748 = vmax.f32 %v2684, 0.0
    %v2749 = vmax.f32 %v2685, 0.0
    %v2750 = vmax.f32 %v2686, 0.0
    %v2751 = vmax.f32 %v2687, 0.0
    %v2752 = vmax.f32 %v2688, 0.0
    %v2753 = vmax.f32 %v2689, 0.0
    %v2754 = vmax.f32 %v2690, 0.0
    %v2755 = vmax.f32 %v2691, 0.0
    %v2756 = vmax.f32 %v2692, 0.0
    %v2757 = vmax.f32 %v2693, 0.0
    %v2758 = vmax.f32 %v2694, 0.0
    %v2759 = vmax.f32 %v2695, 0.0
    %v2760 = vmax.f32 %v2696, 0.0
    %v2761 = vmax.f32 %v2697, 0.0
    %v2762 = vmax.f32 %v2698, 0.0
    %v2763 = vmax.f32 %v2699, 0.0
    %v2764 = vmax.f32 %v2700, 0.0
    %v2765 = vmax.f32 %v2701, 0.0
    %v2766 = vmax.f32 %v2702, 0.0
    %v2767 = vmax.f32 %v2703, 0.0
    %v2768 = vmax.f32 %v2704, 0.0
    %v2769 = vmax.f32 %v2705, 0.0
    %v2770 = vmax.f32 %v2706, 0.0
    %v2771 = vmax.f32 %v2707, 0.0
    %v2772 = vmax.f32 %v2708, 0.0
    %v2773 = vmax.f32 %v2709, 0.0
    %v2774 = vmax.f32 %v2710, 0.0
    %v2775 = vmax.f32 %v2711, 0.0
    %v2776 = vmax.f32 %v2712, 0.0
    %v2777 = vpack.c.bf16 %v2714, %v2713
    %v2778 = vpack.c.bf16 %v2716, %v2715
    %v2779 = vpack.c.bf16 %v2718, %v2717
    %v2780 = vpack.c.bf16 %v2720, %v2719
    %v2781 = vpack.c.bf16 %v2722, %v2721
    %v2782 = vpack.c.bf16 %v2724, %v2723
    %v2783 = vpack.c.bf16 %v2726, %v2725
    %v2784 = vpack.c.bf16 %v2728, %v2727
    %v2785 = vpack.c.bf16 %v2730, %v2729
    %v2786 = vpack.c.bf16 %v2732, %v2731
    %v2787 = vpack.c.bf16 %v2734, %v2733
    %v2788 = vpack.c.bf16 %v2736, %v2735
    %v2789 = vpack.c.bf16 %v2738, %v2737
    %v2790 = vpack.c.bf16 %v2740, %v2739
    %v2791 = vpack.c.bf16 %v2742, %v2741
    %v2792 = vpack.c.bf16 %v2744, %v2743
    %v2793 = vpack.c.bf16 %v2746, %v2745
    %v2794 = vpack.c.bf16 %v2748, %v2747
    %v2795 = vpack.c.bf16 %v2750, %v2749
    %v2796 = vpack.c.bf16 %v2752, %v2751
    %v2797 = vpack.c.bf16 %v2754, %v2753
    %v2798 = vpack.c.bf16 %v2756, %v2755
    %v2799 = vpack.c.bf16 %v2758, %v2757
    %v2800 = vpack.c.bf16 %v2760, %v2759
    %v2801 = vpack.c.bf16 %v2762, %v2761
    %v2802 = vpack.c.bf16 %v2764, %v2763
    %v2803 = vpack.c.bf16 %v2766, %v2765
    %v2804 = vpack.c.bf16 %v2768, %v2767
    %v2805 = vpack.c.bf16 %v2770, %v2769
    %v2806 = vpack.c.bf16 %v2772, %v2771
    %v2807 = vpack.c.bf16 %v2774, %v2773
    %v2808 = vpack.c.bf16 %v2776, %v2775
    %v2841 = vunpack.c.l.b16 %v2777
    %v2842 = vunpack.c.h.b16 %v2777
    %v2843 = vunpack.c.l.b16 %v2778
    %v2844 = vunpack.c.h.b16 %v2778
    %v2845 = vunpack.c.l.b16 %v2779
    %v2846 = vunpack.c.h.b16 %v2779
    %v2847 = vunpack.c.l.b16 %v2780
    %v2848 = vunpack.c.h.b16 %v2780
    %v2849 = vunpack.c.l.b16 %v2781
    %v2850 = vunpack.c.h.b16 %v2781
    %v2851 = vunpack.c.l.b16 %v2782
    %v2852 = vunpack.c.h.b16 %v2782
    %v2853 = vunpack.c.l.b16 %v2783
    %v2854 = vunpack.c.h.b16 %v2783
    %v2855 = vunpack.c.l.b16 %v2784
    %v2856 = vunpack.c.h.b16 %v2784
    %v2857 = vunpack.c.l.b16 %v2785
    %v2858 = vunpack.c.h.b16 %v2785
    %v2859 = vunpack.c.l.b16 %v2786
    %v2860 = vunpack.c.h.b16 %v2786
    %v2861 = vunpack.c.l.b16 %v2787
    %v2862 = vunpack.c.h.b16 %v2787
    %v2863 = vunpack.c.l.b16 %v2788
    %v2864 = vunpack.c.h.b16 %v2788
    %v2865 = vunpack.c.l.b16 %v2789
    %v2866 = vunpack.c.h.b16 %v2789
    %v2867 = vunpack.c.l.b16 %v2790
    %v2868 = vunpack.c.h.b16 %v2790
    %v2869 = vunpack.c.l.b16 %v2791
    %v2870 = vunpack.c.h.b16 %v2791
    %v2871 = vunpack.c.l.b16 %v2792
    %v2872 = vunpack.c.h.b16 %v2792
    %v2873 = vunpack.c.l.b16 %v2793
    %v2874 = vunpack.c.h.b16 %v2793
    %v2875 = vunpack.c.l.b16 %v2794
    %v2876 = vunpack.c.h.b16 %v2794
    %v2877 = vunpack.c.l.b16 %v2795
    %v2878 = vunpack.c.h.b16 %v2795
    %v2879 = vunpack.c.l.b16 %v2796
    %v2880 = vunpack.c.h.b16 %v2796
    %v2881 = vunpack.c.l.b16 %v2797
    %v2882 = vunpack.c.h.b16 %v2797
    %v2883 = vunpack.c.l.b16 %v2798
    %v2884 = vunpack.c.h.b16 %v2798
    %v2885 = vunpack.c.l.b16 %v2799
    %v2886 = vunpack.c.h.b16 %v2799
    %v2887 = vunpack.c.l.b16 %v2800
    %v2888 = vunpack.c.h.b16 %v2800
    %v2889 = vunpack.c.l.b16 %v2801
    %v2890 = vunpack.c.h.b16 %v2801
    %v2891 = vunpack.c.l.b16 %v2802
    %v2892 = vunpack.c.h.b16 %v2802
    %v2893 = vunpack.c.l.b16 %v2803
    %v2894 = vunpack.c.h.b16 %v2803
    %v2895 = vunpack.c.l.b16 %v2804
    %v2896 = vunpack.c.h.b16 %v2804
    %v2897 = vunpack.c.l.b16 %v2805
    %v2898 = vunpack.c.h.b16 %v2805
    %v2899 = vunpack.c.l.b16 %v2806
    %v2900 = vunpack.c.h.b16 %v2806
    %v2901 = vunpack.c.l.b16 %v2807
    %v2902 = vunpack.c.h.b16 %v2807
    %v2903 = vunpack.c.l.b16 %v2808
    %v2904 = vunpack.c.h.b16 %v2808
    %v2905 = vpack.c.b16 %v2841, %v2841
    %v2906 = vpack.c.b16 %v2842, %v2842
    %v2907 = vpack.c.b16 %v2843, %v2843
    %v2908 = vpack.c.b16 %v2844, %v2844
    %v2909 = vpack.c.b16 %v2845, %v2845
    %v2910 = vpack.c.b16 %v2846, %v2846
    %v2911 = vpack.c.b16 %v2847, %v2847
    %v2912 = vpack.c.b16 %v2848, %v2848
    %v2913 = vpack.c.b16 %v2849, %v2849
    %v2914 = vpack.c.b16 %v2850, %v2850
    %v2915 = vpack.c.b16 %v2851, %v2851
    %v2916 = vpack.c.b16 %v2852, %v2852
    %v2917 = vpack.c.b16 %v2853, %v2853
    %v2918 = vpack.c.b16 %v2854, %v2854
    %v2919 = vpack.c.b16 %v2855, %v2855
    %v2920 = vpack.c.b16 %v2856, %v2856
    %v2921 = vpack.c.b16 %v2857, %v2857
    %v2922 = vpack.c.b16 %v2858, %v2858
    %v2923 = vpack.c.b16 %v2859, %v2859
    %v2924 = vpack.c.b16 %v2860, %v2860
    %v2925 = vpack.c.b16 %v2861, %v2861
    %v2926 = vpack.c.b16 %v2862, %v2862
    %v2927 = vpack.c.b16 %v2863, %v2863
    %v2928 = vpack.c.b16 %v2864, %v2864
    %v2929 = vpack.c.b16 %v2865, %v2865
    %v2930 = vpack.c.b16 %v2866, %v2866
    %v2931 = vpack.c.b16 %v2867, %v2867
    %v2932 = vpack.c.b16 %v2868, %v2868
    %v2933 = vpack.c.b16 %v2869, %v2869
    %v2934 = vpack.c.b16 %v2870, %v2870
    %v2935 = vpack.c.b16 %v2871, %v2871
    %v2936 = vpack.c.b16 %v2872, %v2872
    %v2937 = vpack.c.b16 %v2873, %v2873
    %v2938 = vpack.c.b16 %v2874, %v2874
    %v2939 = vpack.c.b16 %v2875, %v2875
    %v2940 = vpack.c.b16 %v2876, %v2876
    %v2941 = vpack.c.b16 %v2877, %v2877
    %v2942 = vpack.c.b16 %v2878, %v2878
    %v2943 = vpack.c.b16 %v2879, %v2879
    %v2944 = vpack.c.b16 %v2880, %v2880
    %v2945 = vpack.c.b16 %v2881, %v2881
    %v2946 = vpack.c.b16 %v2882, %v2882
    %v2947 = vpack.c.b16 %v2883, %v2883
    %v2948 = vpack.c.b16 %v2884, %v2884
    %v2949 = vpack.c.b16 %v2885, %v2885
    %v2950 = vpack.c.b16 %v2886, %v2886
    %v2951 = vpack.c.b16 %v2887, %v2887
    %v2952 = vpack.c.b16 %v2888, %v2888
    %v2953 = vpack.c.b16 %v2889, %v2889
    %v2954 = vpack.c.b16 %v2890, %v2890
    %v2955 = vpack.c.b16 %v2891, %v2891
    %v2956 = vpack.c.b16 %v2892, %v2892
    %v2957 = vpack.c.b16 %v2893, %v2893
    %v2958 = vpack.c.b16 %v2894, %v2894
    %v2959 = vpack.c.b16 %v2895, %v2895
    %v2960 = vpack.c.b16 %v2896, %v2896
    %v2961 = vpack.c.b16 %v2897, %v2897
    %v2962 = vpack.c.b16 %v2898, %v2898
    %v2963 = vpack.c.b16 %v2899, %v2899
    %v2964 = vpack.c.b16 %v2900, %v2900
    %v2965 = vpack.c.b16 %v2901, %v2901
    %v2966 = vpack.c.b16 %v2902, %v2902
    %v2967 = vpack.c.b16 %v2903, %v2903
    %v2968 = vpack.c.b16 %v2904, %v2904
    %3033 = vst [vmem:[#allocation2 + $0x8] sm:$0xf] %v2905
    %3034 = vst [vmem:[#allocation2 + $0xc] sm:$0xf] %v2906
    %3035 = vst [vmem:[#allocation2 + $0x10] sm:$0xf] %v2907
    %3036 = vst [vmem:[#allocation2 + $0x14] sm:$0xf] %v2908
    %3037 = vst [vmem:[#allocation2 + $0x18] sm:$0xf] %v2909
    %3038 = vst [vmem:[#allocation2 + $0x1c] sm:$0xf] %v2910
    %3039 = vst [vmem:[#allocation2 + $0x20] sm:$0xf] %v2911
    %3040 = vst [vmem:[#allocation2 + $0x24] sm:$0xf] %v2912
    %3041 = vst [vmem:[#allocation2 + $0x28] sm:$0xf] %v2913
    %3042 = vst [vmem:[#allocation2 + $0x2c] sm:$0xf] %v2914
    %3043 = vst [vmem:[#allocation2 + $0x30] sm:$0xf] %v2915
    %3044 = vst [vmem:[#allocation2 + $0x34] sm:$0xf] %v2916
    %3045 = vst [vmem:[#allocation2 + $0x38] sm:$0xf] %v2917
    %3046 = vst [vmem:[#allocation2 + $0x3c] sm:$0xf] %v2918
    %3047 = vst [vmem:[#allocation2 + $0x40] sm:$0xf] %v2919
    %3048 = vst [vmem:[#allocation2 + $0x44] sm:$0xf] %v2920
    %3049 = vst [vmem:[#allocation2 + $0x48] sm:$0xf] %v2921
    %3050 = vst [vmem:[#allocation2 + $0x4c] sm:$0xf] %v2922
    %3051 = vst [vmem:[#allocation2 + $0x50] sm:$0xf] %v2923
    %3052 = vst [vmem:[#allocation2 + $0x54] sm:$0xf] %v2924
    %3053 = vst [vmem:[#allocation2 + $0x58] sm:$0xf] %v2925
    %3054 = vst [vmem:[#allocation2 + $0x5c] sm:$0xf] %v2926
    %3055 = vst [vmem:[#allocation2 + $0x60] sm:$0xf] %v2927
    %3056 = vst [vmem:[#allocation2 + $0x64] sm:$0xf] %v2928
    %3057 = vst [vmem:[#allocation2 + $0x68] sm:$0xf] %v2929
    %3058 = vst [vmem:[#allocation2 + $0x6c] sm:$0xf] %v2930
    %3059 = vst [vmem:[#allocation2 + $0x70] sm:$0xf] %v2931
    %3060 = vst [vmem:[#allocation2 + $0x74] sm:$0xf] %v2932
    %3061 = vst [vmem:[#allocation2 + $0x78] sm:$0xf] %v2933
    %3062 = vst [vmem:[#allocation2 + $0x7c] sm:$0xf] %v2934
    %3063 = vst [vmem:[#allocation2 + $0x80] sm:$0xf] %v2935
    %3064 = vst [vmem:[#allocation2 + $0x84] sm:$0xf] %v2936
    %3065 = vst [vmem:[#allocation2 + $0x94] sm:$0xf] %v2937
    %3066 = vst [vmem:[#allocation2 + $0x98] sm:$0xf] %v2938
    %3067 = vst [vmem:[#allocation2 + $0x9c] sm:$0xf] %v2939
    %3068 = vst [vmem:[#allocation2 + $0xa0] sm:$0xf] %v2940
    %3069 = vst [vmem:[#allocation2 + $0xa4] sm:$0xf] %v2941
    %3070 = vst [vmem:[#allocation2 + $0xa8] sm:$0xf] %v2942
    %3071 = vst [vmem:[#allocation2 + $0xac] sm:$0xf] %v2943
    %3072 = vst [vmem:[#allocation2 + $0xb0] sm:$0xf] %v2944
    %3073 = vst [vmem:[#allocation2 + $0xb4] sm:$0xf] %v2945
    %3074 = vst [vmem:[#allocation2 + $0xb8] sm:$0xf] %v2946
    %3075 = vst [vmem:[#allocation2 + $0xbc] sm:$0xf] %v2947
    %3076 = vst [vmem:[#allocation2 + $0xc0] sm:$0xf] %v2948
    %3077 = vst [vmem:[#allocation2 + $0xc4] sm:$0xf] %v2949
    %3078 = vst [vmem:[#allocation2 + $0xc8] sm:$0xf] %v2950
    %3079 = vst [vmem:[#allocation2 + $0xcc] sm:$0xf] %v2951
    %3080 = vst [vmem:[#allocation2 + $0xd0] sm:$0xf] %v2952
    %3081 = vst [vmem:[#allocation2 + $0xd4] sm:$0xf] %v2953
    %3082 = vst [vmem:[#allocation2 + $0xd8] sm:$0xf] %v2954
    %3083 = vst [vmem:[#allocation2 + $0xdc] sm:$0xf] %v2955
    %3084 = vst [vmem:[#allocation2 + $0xe0] sm:$0xf] %v2956
    %3085 = vst [vmem:[#allocation2 + $0xe4] sm:$0xf] %v2957
    %3086 = vst [vmem:[#allocation2 + $0xe8] sm:$0xf] %v2958
    %3087 = vst [vmem:[#allocation2 + $0xec] sm:$0xf] %v2959
    %3088 = vst [vmem:[#allocation2 + $0xf0] sm:$0xf] %v2960
    %3089 = vst [vmem:[#allocation2 + $0xf4] sm:$0xf] %v2961
    %3090 = vst [vmem:[#allocation2 + $0xf8] sm:$0xf] %v2962
    %3091 = vst [vmem:[#allocation2 + $0xfc] sm:$0xf] %v2963
    %3092 = vst [vmem:[#allocation2 + $0x100] sm:$0xf] %v2964
    %3093 = vst [vmem:[#allocation2 + $0x104] sm:$0xf] %v2965
    %3094 = vst [vmem:[#allocation2 + $0x108] sm:$0xf] %v2966
    %3095 = vst [vmem:[#allocation2 + $0x10c] sm:$0xf] %v2967
    %3096 = vst [vmem:[#allocation2 + $0x110] sm:$0xf] %v2968
    %v3097 = vld [vmem:[#allocation2 + $0x4] sm:$0x8]
    %v3098 = vld [vmem:[#allocation2 + $0x8] sm:$0xf]
    %v3099 = vld [vmem:[#allocation2 + $0xc] sm:$0xf]
    %v3100 = vld [vmem:[#allocation2 + $0x10] sm:$0xf]
    %v3101 = vld [vmem:[#allocation2 + $0x14] sm:$0xf]
    %v3102 = vld [vmem:[#allocation2 + $0x18] sm:$0xf]
    %v3103 = vld [vmem:[#allocation2 + $0x1c] sm:$0xf]
    %v3104 = vld [vmem:[#allocation2 + $0x20] sm:$0xf]
    %v3105 = vld [vmem:[#allocation2 + $0x24] sm:$0xf]
    %v3106 = vld [vmem:[#allocation2 + $0x28] sm:$0xf]
    %v3107 = vld [vmem:[#allocation2 + $0x2c] sm:$0xf]
    %v3108 = vld [vmem:[#allocation2 + $0x30] sm:$0xf]
    %v3109 = vld [vmem:[#allocation2 + $0x34] sm:$0xf]
    %v3110 = vld [vmem:[#allocation2 + $0x38] sm:$0xf]
    %v3111 = vld [vmem:[#allocation2 + $0x3c] sm:$0xf]
    %v3112 = vld [vmem:[#allocation2 + $0x40] sm:$0xf]
    %v3113 = vld [vmem:[#allocation2 + $0x44] sm:$0xf]
    %v3114 = vld [vmem:[#allocation2 + $0x48] sm:$0xf]
    %v3115 = vld [vmem:[#allocation2 + $0x4c] sm:$0xf]
    %v3116 = vld [vmem:[#allocation2 + $0x50] sm:$0xf]
    %v3117 = vld [vmem:[#allocation2 + $0x54] sm:$0xf]
    %v3118 = vld [vmem:[#allocation2 + $0x58] sm:$0xf]
    %v3119 = vld [vmem:[#allocation2 + $0x5c] sm:$0xf]
    %v3120 = vld [vmem:[#allocation2 + $0x60] sm:$0xf]
    %v3121 = vld [vmem:[#allocation2 + $0x64] sm:$0xf]
    %v3122 = vld [vmem:[#allocation2 + $0x68] sm:$0xf]
    %v3123 = vld [vmem:[#allocation2 + $0x6c] sm:$0xf]
    %v3124 = vld [vmem:[#allocation2 + $0x70] sm:$0xf]
    %v3125 = vld [vmem:[#allocation2 + $0x74] sm:$0xf]
    %v3126 = vld [vmem:[#allocation2 + $0x78] sm:$0xf]
    %v3127 = vld [vmem:[#allocation2 + $0x7c] sm:$0xf]
    %v3128 = vld [vmem:[#allocation2 + $0x80] sm:$0xf]
    %v3129 = vld [vmem:[#allocation2 + $0x84] sm:$0x7]
    %v3130 = vld [vmem:[#allocation2 + $0x90] sm:$0x8]
    %v3131 = vld [vmem:[#allocation2 + $0x94] sm:$0xf]
    %v3132 = vld [vmem:[#allocation2 + $0x98] sm:$0xf]
    %v3133 = vld [vmem:[#allocation2 + $0x9c] sm:$0xf]
    %v3134 = vld [vmem:[#allocation2 + $0xa0] sm:$0xf]
    %v3135 = vld [vmem:[#allocation2 + $0xa4] sm:$0xf]
    %v3136 = vld [vmem:[#allocation2 + $0xa8] sm:$0xf]
    %v3137 = vld [vmem:[#allocation2 + $0xac] sm:$0xf]
    %v3138 = vld [vmem:[#allocation2 + $0xb0] sm:$0xf]
    %v3139 = vld [vmem:[#allocation2 + $0xb4] sm:$0xf]
    %v3140 = vld [vmem:[#allocation2 + $0xb8] sm:$0xf]
    %v3141 = vld [vmem:[#allocation2 + $0xbc] sm:$0xf]
    %v3142 = vld [vmem:[#allocation2 + $0xc0] sm:$0xf]
    %v3143 = vld [vmem:[#allocation2 + $0xc4] sm:$0xf]
    %v3144 = vld [vmem:[#allocation2 + $0xc8] sm:$0xf]
    %v3145 = vld [vmem:[#allocation2 + $0xcc] sm:$0xf]
    %v3146 = vld [vmem:[#allocation2 + $0xd0] sm:$0xf]
    %v3147 = vld [vmem:[#allocation2 + $0xd4] sm:$0xf]
    %v3148 = vld [vmem:[#allocation2 + $0xd8] sm:$0xf]
    %v3149 = vld [vmem:[#allocation2 + $0xdc] sm:$0xf]
    %v3150 = vld [vmem:[#allocation2 + $0xe0] sm:$0xf]
    %v3151 = vld [vmem:[#allocation2 + $0xe4] sm:$0xf]
    %v3152 = vld [vmem:[#allocation2 + $0xe8] sm:$0xf]
    %v3153 = vld [vmem:[#allocation2 + $0xec] sm:$0xf]
    %v3154 = vld [vmem:[#allocation2 + $0xf0] sm:$0xf]
    %v3155 = vld [vmem:[#allocation2 + $0xf4] sm:$0xf]
    %v3156 = vld [vmem:[#allocation2 + $0xf8] sm:$0xf]
    %v3157 = vld [vmem:[#allocation2 + $0xfc] sm:$0xf]
    %v3158 = vld [vmem:[#allocation2 + $0x100] sm:$0xf]
    %v3159 = vld [vmem:[#allocation2 + $0x104] sm:$0xf]
    %v3160 = vld [vmem:[#allocation2 + $0x108] sm:$0xf]
    %v3161 = vld [vmem:[#allocation2 + $0x10c] sm:$0xf]
    %v3162 = vld [vmem:[#allocation2 + $0x110] sm:$0x7]
    %v3163 = vld [vmem:[#allocation2 + $0x84] sm:$0xf]
    %v3164 = vld [vmem:[#allocation2 + $0x110] sm:$0xf]
    %v3165 = vld [vmem:[#allocation2 + $0x8] sm:$0xe]
    %v3166 = vld [vmem:[#allocation2 + $0x88] sm:$0x1]
    %v3167 = vld [vmem:[#allocation2 + $0x94] sm:$0xe]
    %v3168 = vld [vmem:[#allocation2 + $0x114] sm:$0x1]
    %v3235 = vunpack.c.l.b16 %v3097
    %v3236 = vunpack.c.l.b16 %v3098
    %v3237 = vunpack.c.l.b16 %v3099
    %v3238 = vunpack.c.l.b16 %v3100
    %v3239 = vunpack.c.l.b16 %v3101
    %v3240 = vunpack.c.l.b16 %v3102
    %v3241 = vunpack.c.l.b16 %v3103
    %v3242 = vunpack.c.l.b16 %v3104
    %v3243 = vunpack.c.l.b16 %v3105
    %v3244 = vunpack.c.l.b16 %v3106
    %v3245 = vunpack.c.l.b16 %v3107
    %v3246 = vunpack.c.l.b16 %v3108
    %v3247 = vunpack.c.l.b16 %v3109
    %v3248 = vunpack.c.l.b16 %v3110
    %v3249 = vunpack.c.l.b16 %v3111
    %v3250 = vunpack.c.l.b16 %v3112
    %v3251 = vunpack.c.l.b16 %v3113
    %v3252 = vunpack.c.l.b16 %v3114
    %v3253 = vunpack.c.l.b16 %v3115
    %v3254 = vunpack.c.l.b16 %v3116
    %v3255 = vunpack.c.l.b16 %v3117
    %v3256 = vunpack.c.l.b16 %v3118
    %v3257 = vunpack.c.l.b16 %v3119
    %v3258 = vunpack.c.l.b16 %v3120
    %v3259 = vunpack.c.l.b16 %v3121
    %v3260 = vunpack.c.l.b16 %v3122
    %v3261 = vunpack.c.l.b16 %v3123
    %v3262 = vunpack.c.l.b16 %v3124
    %v3263 = vunpack.c.l.b16 %v3125
    %v3264 = vunpack.c.l.b16 %v3126
    %v3265 = vunpack.c.l.b16 %v3127
    %v3266 = vunpack.c.l.b16 %v3128
    %v3267 = vunpack.c.l.b16 %v3129
    %v3268 = vunpack.c.l.b16 %v3130
    %v3269 = vunpack.c.l.b16 %v3131
    %v3270 = vunpack.c.l.b16 %v3132
    %v3271 = vunpack.c.l.b16 %v3133
    %v3272 = vunpack.c.l.b16 %v3134
    %v3273 = vunpack.c.l.b16 %v3135
    %v3274 = vunpack.c.l.b16 %v3136
    %v3275 = vunpack.c.l.b16 %v3137
    %v3276 = vunpack.c.l.b16 %v3138
    %v3277 = vunpack.c.l.b16 %v3139
    %v3278 = vunpack.c.l.b16 %v3140
    %v3279 = vunpack.c.l.b16 %v3141
    %v3280 = vunpack.c.l.b16 %v3142
    %v3281 = vunpack.c.l.b16 %v3143
    %v3282 = vunpack.c.l.b16 %v3144
    %v3283 = vunpack.c.l.b16 %v3145
    %v3284 = vunpack.c.l.b16 %v3146
    %v3285 = vunpack.c.l.b16 %v3147
    %v3286 = vunpack.c.l.b16 %v3148
    %v3287 = vunpack.c.l.b16 %v3149
    %v3288 = vunpack.c.l.b16 %v3150
    %v3289 = vunpack.c.l.b16 %v3151
    %v3290 = vunpack.c.l.b16 %v3152
    %v3291 = vunpack.c.l.b16 %v3153
    %v3292 = vunpack.c.l.b16 %v3154
    %v3293 = vunpack.c.l.b16 %v3155
    %v3294 = vunpack.c.l.b16 %v3156
    %v3295 = vunpack.c.l.b16 %v3157
    %v3296 = vunpack.c.l.b16 %v3158
    %v3297 = vunpack.c.l.b16 %v3159
    %v3298 = vunpack.c.l.b16 %v3160
    %v3299 = vunpack.c.l.b16 %v3161
    %v3300 = vunpack.c.l.b16 %v3162
    %v3301 = vpack.c.b16 %v3236, %v3235
    %v3302 = vpack.c.b16 %v3238, %v3237
    %v3303 = vpack.c.b16 %v3240, %v3239
    %v3304 = vpack.c.b16 %v3242, %v3241
    %v3305 = vpack.c.b16 %v3244, %v3243
    %v3306 = vpack.c.b16 %v3246, %v3245
    %v3307 = vpack.c.b16 %v3248, %v3247
    %v3308 = vpack.c.b16 %v3250, %v3249
    %v3309 = vpack.c.b16 %v3252, %v3251
    %v3310 = vpack.c.b16 %v3254, %v3253
    %v3311 = vpack.c.b16 %v3256, %v3255
    %v3312 = vpack.c.b16 %v3258, %v3257
    %v3313 = vpack.c.b16 %v3260, %v3259
    %v3314 = vpack.c.b16 %v3262, %v3261
    %v3315 = vpack.c.b16 %v3264, %v3263
    %v3316 = vpack.c.b16 %v3266, %v3265
    %v3317 = vpack.c.b16 %v3267, %v3267
    %v3318 = vpack.c.b16 %v3269, %v3268
    %v3319 = vpack.c.b16 %v3271, %v3270
    %v3320 = vpack.c.b16 %v3273, %v3272
    %v3321 = vpack.c.b16 %v3275, %v3274
    %v3322 = vpack.c.b16 %v3277, %v3276
    %v3323 = vpack.c.b16 %v3279, %v3278
    %v3324 = vpack.c.b16 %v3281, %v3280
    %v3325 = vpack.c.b16 %v3283, %v3282
    %v3326 = vpack.c.b16 %v3285, %v3284
    %v3327 = vpack.c.b16 %v3287, %v3286
    %v3328 = vpack.c.b16 %v3289, %v3288
    %v3329 = vpack.c.b16 %v3291, %v3290
    %v3330 = vpack.c.b16 %v3293, %v3292
    %v3331 = vpack.c.b16 %v3295, %v3294
    %v3332 = vpack.c.b16 %v3297, %v3296
    %v3333 = vpack.c.b16 %v3299, %v3298
    %v3334 = vpack.c.b16 %v3300, %v3300
    %v3337 = vunpack.c.l.b16 %v3163
    %v3338 = vunpack.c.l.b16 %v3164
    %v3339 = vpack.c.b16 %v3237, %v3236
    %v3340 = vpack.c.b16 %v3239, %v3238
    %v3341 = vpack.c.b16 %v3241, %v3240
    %v3342 = vpack.c.b16 %v3243, %v3242
    %v3343 = vpack.c.b16 %v3245, %v3244
    %v3344 = vpack.c.b16 %v3247, %v3246
    %v3345 = vpack.c.b16 %v3249, %v3248
    %v3346 = vpack.c.b16 %v3251, %v3250
    %v3347 = vpack.c.b16 %v3253, %v3252
    %v3348 = vpack.c.b16 %v3255, %v3254
    %v3349 = vpack.c.b16 %v3257, %v3256
    %v3350 = vpack.c.b16 %v3259, %v3258
    %v3351 = vpack.c.b16 %v3261, %v3260
    %v3352 = vpack.c.b16 %v3263, %v3262
    %v3353 = vpack.c.b16 %v3265, %v3264
    %v3354 = vpack.c.b16 %v3337, %v3266
    %v3355 = vpack.c.b16 %v3270, %v3269
    %v3356 = vpack.c.b16 %v3272, %v3271
    %v3357 = vpack.c.b16 %v3274, %v3273
    %v3358 = vpack.c.b16 %v3276, %v3275
    %v3359 = vpack.c.b16 %v3278, %v3277
    %v3360 = vpack.c.b16 %v3280, %v3279
    %v3361 = vpack.c.b16 %v3282, %v3281
    %v3362 = vpack.c.b16 %v3284, %v3283
    %v3363 = vpack.c.b16 %v3286, %v3285
    %v3364 = vpack.c.b16 %v3288, %v3287
    %v3365 = vpack.c.b16 %v3290, %v3289
    %v3366 = vpack.c.b16 %v3292, %v3291
    %v3367 = vpack.c.b16 %v3294, %v3293
    %v3368 = vpack.c.b16 %v3296, %v3295
    %v3369 = vpack.c.b16 %v3298, %v3297
    %v3370 = vpack.c.b16 %v3338, %v3299
    %v3371 = vrot.slane %v3339, 5
    %v3372 = vrot.slane %v3340, 5
    %v3373 = vsel %vm1153, %v3371, %v3372
    %v3374 = vrot.slane %v3341, 5
    %v3375 = vsel %vm1153, %v3372, %v3374
    %v3376 = vrot.slane %v3342, 5
    %v3377 = vsel %vm1153, %v3374, %v3376
    %v3378 = vrot.slane %v3343, 5
    %v3379 = vsel %vm1153, %v3376, %v3378
    %v3380 = vrot.slane %v3344, 5
    %v3381 = vsel %vm1153, %v3378, %v3380
    %v3382 = vrot.slane %v3345, 5
    %v3383 = vsel %vm1153, %v3380, %v3382
    %v3384 = vrot.slane %v3346, 5
    %v3385 = vsel %vm1153, %v3382, %v3384
    %v3386 = vrot.slane %v3347, 5
    %v3387 = vsel %vm1153, %v3384, %v3386
    %v3388 = vrot.slane %v3348, 5
    %v3389 = vsel %vm1153, %v3386, %v3388
    %v3390 = vrot.slane %v3349, 5
    %v3391 = vsel %vm1153, %v3388, %v3390
    %v3392 = vrot.slane %v3350, 5
    %v3393 = vsel %vm1153, %v3390, %v3392
    %v3394 = vrot.slane %v3351, 5
    %v3395 = vsel %vm1153, %v3392, %v3394
    %v3396 = vrot.slane %v3352, 5
    %v3397 = vsel %vm1153, %v3394, %v3396
    %v3398 = vrot.slane %v3353, 5
    %v3399 = vsel %vm1153, %v3396, %v3398
    %v3400 = vrot.slane %v3354, 5
    %v3401 = vsel %vm1153, %v3398, %v3400
    %v3402 = vrot.slane %v3355, 5
    %v3403 = vrot.slane %v3356, 5
    %v3404 = vsel %vm1153, %v3402, %v3403
    %v3405 = vrot.slane %v3357, 5
    %v3406 = vsel %vm1153, %v3403, %v3405
    %v3407 = vrot.slane %v3358, 5
    %v3408 = vsel %vm1153, %v3405, %v3407
    %v3409 = vrot.slane %v3359, 5
    %v3410 = vsel %vm1153, %v3407, %v3409
    %v3411 = vrot.slane %v3360, 5
    %v3412 = vsel %vm1153, %v3409, %v3411
    %v3413 = vrot.slane %v3361, 5
    %v3414 = vsel %vm1153, %v3411, %v3413
    %v3415 = vrot.slane %v3362, 5
    %v3416 = vsel %vm1153, %v3413, %v3415
    %v3417 = vrot.slane %v3363, 5
    %v3418 = vsel %vm1153, %v3415, %v3417
    %v3419 = vrot.slane %v3364, 5
    %v3420 = vsel %vm1153, %v3417, %v3419
    %v3421 = vrot.slane %v3365, 5
    %v3422 = vsel %vm1153, %v3419, %v3421
    %v3423 = vrot.slane %v3366, 5
    %v3424 = vsel %vm1153, %v3421, %v3423
    %v3425 = vrot.slane %v3367, 5
    %v3426 = vsel %vm1153, %v3423, %v3425
    %v3427 = vrot.slane %v3368, 5
    %v3428 = vsel %vm1153, %v3425, %v3427
    %v3429 = vrot.slane %v3369, 5
    %v3430 = vsel %vm1153, %v3427, %v3429
    %v3431 = vrot.slane %v3370, 5
    %v3432 = vsel %vm1153, %v3429, %v3431
    %v3437 = vunpack.c.l.b16 %v3165
    %v3438 = vunpack.c.l.b16 %v3166
    %v3439 = vunpack.c.l.b16 %v3167
    %v3440 = vunpack.c.l.b16 %v3168
    %v3441 = vpack.c.b16 %v3237, %v3437
    %v3442 = vpack.c.b16 %v3438, %v3438
    %v3443 = vpack.c.b16 %v3270, %v3439
    %v3444 = vpack.c.b16 %v3440, %v3440
    %v3445 = vrot.slane %v3441, 6
    %v3446 = vrot.slane %v3340, 6
    %v3447 = vsel %vm1228, %v3445, %v3446
    %v3448 = vrot.slane %v3341, 6
    %v3449 = vsel %vm1228, %v3446, %v3448
    %v3450 = vrot.slane %v3342, 6
    %v3451 = vsel %vm1228, %v3448, %v3450
    %v3452 = vrot.slane %v3343, 6
    %v3453 = vsel %vm1228, %v3450, %v3452
    %v3454 = vrot.slane %v3344, 6
    %v3455 = vsel %vm1228, %v3452, %v3454
    %v3456 = vrot.slane %v3345, 6
    %v3457 = vsel %vm1228, %v3454, %v3456
    %v3458 = vrot.slane %v3346, 6
    %v3459 = vsel %vm1228, %v3456, %v3458
    %v3460 = vrot.slane %v3347, 6
    %v3461 = vsel %vm1228, %v3458, %v3460
    %v3462 = vrot.slane %v3348, 6
    %v3463 = vsel %vm1228, %v3460, %v3462
    %v3464 = vrot.slane %v3349, 6
    %v3465 = vsel %vm1228, %v3462, %v3464
    %v3466 = vrot.slane %v3350, 6
    %v3467 = vsel %vm1228, %v3464, %v3466
    %v3468 = vrot.slane %v3351, 6
    %v3469 = vsel %vm1228, %v3466, %v3468
    %v3470 = vrot.slane %v3352, 6
    %v3471 = vsel %vm1228, %v3468, %v3470
    %v3472 = vrot.slane %v3353, 6
    %v3473 = vsel %vm1228, %v3470, %v3472
    %v3474 = vrot.slane %v3354, 6
    %v3475 = vsel %vm1228, %v3472, %v3474
    %v3476 = vrot.slane %v3442, 6
    %v3477 = vsel %vm1228, %v3474, %v3476
    %v3478 = vrot.slane %v3443, 6
    %v3479 = vrot.slane %v3356, 6
    %v3480 = vsel %vm1228, %v3478, %v3479
    %v3481 = vrot.slane %v3357, 6
    %v3482 = vsel %vm1228, %v3479, %v3481
    %v3483 = vrot.slane %v3358, 6
    %v3484 = vsel %vm1228, %v3481, %v3483
    %v3485 = vrot.slane %v3359, 6
    %v3486 = vsel %vm1228, %v3483, %v3485
    %v3487 = vrot.slane %v3360, 6
    %v3488 = vsel %vm1228, %v3485, %v3487
    %v3489 = vrot.slane %v3361, 6
    %v3490 = vsel %vm1228, %v3487, %v3489
    %v3491 = vrot.slane %v3362, 6
    %v3492 = vsel %vm1228, %v3489, %v3491
    %v3493 = vrot.slane %v3363, 6
    %v3494 = vsel %vm1228, %v3491, %v3493
    %v3495 = vrot.slane %v3364, 6
    %v3496 = vsel %vm1228, %v3493, %v3495
    %v3497 = vrot.slane %v3365, 6
    %v3498 = vsel %vm1228, %v3495, %v3497
    %v3499 = vrot.slane %v3366, 6
    %v3500 = vsel %vm1228, %v3497, %v3499
    %v3501 = vrot.slane %v3367, 6
    %v3502 = vsel %vm1228, %v3499, %v3501
    %v3503 = vrot.slane %v3368, 6
    %v3504 = vsel %vm1228, %v3501, %v3503
    %v3505 = vrot.slane %v3369, 6
    %v3506 = vsel %vm1228, %v3503, %v3505
    %v3507 = vrot.slane %v3370, 6
    %v3508 = vsel %vm1228, %v3505, %v3507
    %v3509 = vrot.slane %v3444, 6
    %v3510 = vsel %vm1228, %v3507, %v3509
    %v3511 = vrot.slane %v3301, 3
    %v3512 = vrot.slane %v3302, 3
    %v3513 = vsel %vm1295, %v3511, %v3512
    %v3514 = vrot.slane %v3371, 3
    %v3515 = vrot.slane %v3373, 3
    %v3516 = vsel %vm1295, %v3514, %v3515
    %v3517 = vrot.slane %v3445, 3
    %v3518 = vrot.slane %v3447, 3
    %v3519 = vsel %vm1295, %v3517, %v3518
    %v3520 = vrot.slane %v3303, 3
    %v3521 = vsel %vm1295, %v3512, %v3520
    %v3522 = vrot.slane %v3375, 3
    %v3523 = vsel %vm1295, %v3515, %v3522
    %v3524 = vrot.slane %v3449, 3
    %v3525 = vsel %vm1295, %v3518, %v3524
    %v3526 = vrot.slane %v3304, 3
    %v3527 = vsel %vm1295, %v3520, %v3526
    %v3528 = vrot.slane %v3377, 3
    %v3529 = vsel %vm1295, %v3522, %v3528
    %v3530 = vrot.slane %v3451, 3
    %v3531 = vsel %vm1295, %v3524, %v3530
    %v3532 = vrot.slane %v3305, 3
    %v3533 = vsel %vm1295, %v3526, %v3532
    %v3534 = vrot.slane %v3379, 3
    %v3535 = vsel %vm1295, %v3528, %v3534
    %v3536 = vrot.slane %v3453, 3
    %v3537 = vsel %vm1295, %v3530, %v3536
    %v3538 = vrot.slane %v3306, 3
    %v3539 = vsel %vm1295, %v3532, %v3538
    %v3540 = vrot.slane %v3381, 3
    %v3541 = vsel %vm1295, %v3534, %v3540
    %v3542 = vrot.slane %v3455, 3
    %v3543 = vsel %vm1295, %v3536, %v3542
    %v3544 = vrot.slane %v3307, 3
    %v3545 = vsel %vm1295, %v3538, %v3544
    %v3546 = vrot.slane %v3383, 3
    %v3547 = vsel %vm1295, %v3540, %v3546
    %v3548 = vrot.slane %v3457, 3
    %v3549 = vsel %vm1295, %v3542, %v3548
    %v3550 = vrot.slane %v3308, 3
    %v3551 = vsel %vm1295, %v3544, %v3550
    %v3552 = vrot.slane %v3385, 3
    %v3553 = vsel %vm1295, %v3546, %v3552
    %v3554 = vrot.slane %v3459, 3
    %v3555 = vsel %vm1295, %v3548, %v3554
    %v3556 = vrot.slane %v3309, 3
    %v3557 = vsel %vm1295, %v3550, %v3556
    %v3558 = vrot.slane %v3387, 3
    %v3559 = vsel %vm1295, %v3552, %v3558
    %v3560 = vrot.slane %v3461, 3
    %v3561 = vsel %vm1295, %v3554, %v3560
    %v3562 = vrot.slane %v3310, 3
    %v3563 = vsel %vm1295, %v3556, %v3562
    %v3564 = vrot.slane %v3389, 3
    %v3565 = vsel %vm1295, %v3558, %v3564
    %v3566 = vrot.slane %v3463, 3
    %v3567 = vsel %vm1295, %v3560, %v3566
    %v3568 = vrot.slane %v3311, 3
    %v3569 = vsel %vm1295, %v3562, %v3568
    %v3570 = vrot.slane %v3391, 3
    %v3571 = vsel %vm1295, %v3564, %v3570
    %v3572 = vrot.slane %v3465, 3
    %v3573 = vsel %vm1295, %v3566, %v3572
    %v3574 = vrot.slane %v3312, 3
    %v3575 = vsel %vm1295, %v3568, %v3574
    %v3576 = vrot.slane %v3393, 3
    %v3577 = vsel %vm1295, %v3570, %v3576
    %v3578 = vrot.slane %v3467, 3
    %v3579 = vsel %vm1295, %v3572, %v3578
    %v3580 = vrot.slane %v3313, 3
    %v3581 = vsel %vm1295, %v3574, %v3580
    %v3582 = vrot.slane %v3395, 3
    %v3583 = vsel %vm1295, %v3576, %v3582
    %v3584 = vrot.slane %v3469, 3
    %v3585 = vsel %vm1295, %v3578, %v3584
    %v3586 = vrot.slane %v3314, 3
    %v3587 = vsel %vm1295, %v3580, %v3586
    %v3588 = vrot.slane %v3397, 3
    %v3589 = vsel %vm1295, %v3582, %v3588
    %v3590 = vrot.slane %v3471, 3
    %v3591 = vsel %vm1295, %v3584, %v3590
    %v3592 = vrot.slane %v3315, 3
    %v3593 = vsel %vm1295, %v3586, %v3592
    %v3594 = vrot.slane %v3399, 3
    %v3595 = vsel %vm1295, %v3588, %v3594
    %v3596 = vrot.slane %v3473, 3
    %v3597 = vsel %vm1295, %v3590, %v3596
    %v3598 = vrot.slane %v3316, 3
    %v3599 = vsel %vm1295, %v3592, %v3598
    %v3600 = vrot.slane %v3401, 3
    %v3601 = vsel %vm1295, %v3594, %v3600
    %v3602 = vrot.slane %v3475, 3
    %v3603 = vsel %vm1295, %v3596, %v3602
    %v3604 = vrot.slane %v3317, 3
    %v3605 = vsel %vm1295, %v3598, %v3604
    %v3606 = vrot.slane %v3400, 3
    %v3607 = vsel %vm1295, %v3600, %v3606
    %v3608 = vrot.slane %v3477, 3
    %v3609 = vsel %vm1295, %v3602, %v3608
    %v3610 = vrot.slane %v3318, 3
    %v3611 = vrot.slane %v3319, 3
    %v3612 = vsel %vm1295, %v3610, %v3611
    %v3613 = vrot.slane %v3402, 3
    %v3614 = vrot.slane %v3404, 3
    %v3615 = vsel %vm1295, %v3613, %v3614
    %v3616 = vrot.slane %v3478, 3
    %v3617 = vrot.slane %v3480, 3
    %v3618 = vsel %vm1295, %v3616, %v3617
    %v3619 = vrot.slane %v3320, 3
    %v3620 = vsel %vm1295, %v3611, %v3619
    %v3621 = vrot.slane %v3406, 3
    %v3622 = vsel %vm1295, %v3614, %v3621
    %v3623 = vrot.slane %v3482, 3
    %v3624 = vsel %vm1295, %v3617, %v3623
    %v3625 = vrot.slane %v3321, 3
    %v3626 = vsel %vm1295, %v3619, %v3625
    %v3627 = vrot.slane %v3408, 3
    %v3628 = vsel %vm1295, %v3621, %v3627
    %v3629 = vrot.slane %v3484, 3
    %v3630 = vsel %vm1295, %v3623, %v3629
    %v3631 = vrot.slane %v3322, 3
    %v3632 = vsel %vm1295, %v3625, %v3631
    %v3633 = vrot.slane %v3410, 3
    %v3634 = vsel %vm1295, %v3627, %v3633
    %v3635 = vrot.slane %v3486, 3
    %v3636 = vsel %vm1295, %v3629, %v3635
    %v3637 = vrot.slane %v3323, 3
    %v3638 = vsel %vm1295, %v3631, %v3637
    %v3639 = vrot.slane %v3412, 3
    %v3640 = vsel %vm1295, %v3633, %v3639
    %v3641 = vrot.slane %v3488, 3
    %v3642 = vsel %vm1295, %v3635, %v3641
    %v3643 = vrot.slane %v3324, 3
    %v3644 = vsel %vm1295, %v3637, %v3643
    %v3645 = vrot.slane %v3414, 3
    %v3646 = vsel %vm1295, %v3639, %v3645
    %v3647 = vrot.slane %v3490, 3
    %v3648 = vsel %vm1295, %v3641, %v3647
    %v3649 = vrot.slane %v3325, 3
    %v3650 = vsel %vm1295, %v3643, %v3649
    %v3651 = vrot.slane %v3416, 3
    %v3652 = vsel %vm1295, %v3645, %v3651
    %v3653 = vrot.slane %v3492, 3
    %v3654 = vsel %vm1295, %v3647, %v3653
    %v3655 = vrot.slane %v3326, 3
    %v3656 = vsel %vm1295, %v3649, %v3655
    %v3657 = vrot.slane %v3418, 3
    %v3658 = vsel %vm1295, %v3651, %v3657
    %v3659 = vrot.slane %v3494, 3
    %v3660 = vsel %vm1295, %v3653, %v3659
    %v3661 = vrot.slane %v3327, 3
    %v3662 = vsel %vm1295, %v3655, %v3661
    %v3663 = vrot.slane %v3420, 3
    %v3664 = vsel %vm1295, %v3657, %v3663
    %v3665 = vrot.slane %v3496, 3
    %v3666 = vsel %vm1295, %v3659, %v3665
    %v3667 = vrot.slane %v3328, 3
    %v3668 = vsel %vm1295, %v3661, %v3667
    %v3669 = vrot.slane %v3422, 3
    %v3670 = vsel %vm1295, %v3663, %v3669
    %v3671 = vrot.slane %v3498, 3
    %v3672 = vsel %vm1295, %v3665, %v3671
    %v3673 = vrot.slane %v3329, 3
    %v3674 = vsel %vm1295, %v3667, %v3673
    %v3675 = vrot.slane %v3424, 3
    %v3676 = vsel %vm1295, %v3669, %v3675
    %v3677 = vrot.slane %v3500, 3
    %v3678 = vsel %vm1295, %v3671, %v3677
    %v3679 = vrot.slane %v3330, 3
    %v3680 = vsel %vm1295, %v3673, %v3679
    %v3681 = vrot.slane %v3426, 3
    %v3682 = vsel %vm1295, %v3675, %v3681
    %v3683 = vrot.slane %v3502, 3
    %v3684 = vsel %vm1295, %v3677, %v3683
    %v3685 = vrot.slane %v3331, 3
    %v3686 = vsel %vm1295, %v3679, %v3685
    %v3687 = vrot.slane %v3428, 3
    %v3688 = vsel %vm1295, %v3681, %v3687
    %v3689 = vrot.slane %v3504, 3
    %v3690 = vsel %vm1295, %v3683, %v3689
    %v3691 = vrot.slane %v3332, 3
    %v3692 = vsel %vm1295, %v3685, %v3691
    %v3693 = vrot.slane %v3430, 3
    %v3694 = vsel %vm1295, %v3687, %v3693
    %v3695 = vrot.slane %v3506, 3
    %v3696 = vsel %vm1295, %v3689, %v3695
    %v3697 = vrot.slane %v3333, 3
    %v3698 = vsel %vm1295, %v3691, %v3697
    %v3699 = vrot.slane %v3432, 3
    %v3700 = vsel %vm1295, %v3693, %v3699
    %v3701 = vrot.slane %v3508, 3
    %v3702 = vsel %vm1295, %v3695, %v3701
    %v3703 = vrot.slane %v3334, 3
    %v3704 = vsel %vm1295, %v3697, %v3703
    %v3705 = vrot.slane %v3431, 3
    %v3706 = vsel %vm1295, %v3699, %v3705
    %v3707 = vrot.slane %v3510, 3
    %v3708 = vsel %vm1295, %v3701, %v3707
    %v3805 = vld [vmem:[#allocation8] sm:$0xf]
    %v3806 = vld [vmem:[#allocation8 + $0x4] sm:$0xf]
    %v3807 = vld [vmem:[#allocation8 + $0x8] sm:$0xf]
    %v3808 = vld [vmem:[#allocation8 + $0xc] sm:$0xf]
    %v3809 = vld [vmem:[#allocation8 + $0x10] sm:$0xf]
    %v3810 = vld [vmem:[#allocation8 + $0x14] sm:$0xf]
    %v3811 = vld [vmem:[#allocation8 + $0x18] sm:$0xf]
    %v3812 = vld [vmem:[#allocation8 + $0x1c] sm:$0xf]
    %v3813 = vld [vmem:[#allocation8 + $0x20] sm:$0xf]
    %v3814 = vld [vmem:[#allocation8 + $0x24] sm:$0xf]
    %v3815 = vld [vmem:[#allocation8 + $0x28] sm:$0xf]
    %v3816 = vld [vmem:[#allocation8 + $0x2c] sm:$0xf]
    %v3817 = vld [vmem:[#allocation8 + $0x30] sm:$0xf]
    %v3818 = vld [vmem:[#allocation8 + $0x34] sm:$0xf]
    %v3819 = vld [vmem:[#allocation8 + $0x38] sm:$0xf]
    %v3820 = vld [vmem:[#allocation8 + $0x3c] sm:$0xf]
    %v3821 = vld [vmem:[#allocation8 + $0x40] sm:$0xf]
    %v3822 = vld [vmem:[#allocation8 + $0x44] sm:$0xf]
    %v3823 = vld [vmem:[#allocation8 + $0x48] sm:$0xf]
    %v3824 = vld [vmem:[#allocation8 + $0x4c] sm:$0xf]
    %v3825 = vld [vmem:[#allocation8 + $0x50] sm:$0xf]
    %v3826 = vld [vmem:[#allocation8 + $0x54] sm:$0xf]
    %v3827 = vld [vmem:[#allocation8 + $0x58] sm:$0xf]
    %v3828 = vld [vmem:[#allocation8 + $0x5c] sm:$0xf]
    %v3829 = vld [vmem:[#allocation8 + $0x60] sm:$0xf]
    %v3830 = vld [vmem:[#allocation8 + $0x64] sm:$0xf]
    %v3831 = vld [vmem:[#allocation8 + $0x68] sm:$0xf]
    %v3832 = vld [vmem:[#allocation8 + $0x6c] sm:$0xf]
    %v3833 = vld [vmem:[#allocation8 + $0x70] sm:$0xf]
    %v3834 = vld [vmem:[#allocation8 + $0x74] sm:$0xf]
    %v3835 = vld [vmem:[#allocation8 + $0x78] sm:$0xf]
    %v3836 = vld [vmem:[#allocation8 + $0x7c] sm:$0xf]
    %v3837 = vld [vmem:[#allocation8 + $0x80] sm:$0xf]
    %v3838 = vld [vmem:[#allocation8 + $0x84] sm:$0xf]
    %v3839 = vld [vmem:[#allocation8 + $0x88] sm:$0xf]
    %v3840 = vld [vmem:[#allocation8 + $0x8c] sm:$0xf]
    %v3841 = vld [vmem:[#allocation8 + $0x90] sm:$0xf]
    %v3842 = vld [vmem:[#allocation8 + $0x94] sm:$0xf]
    %v3843 = vld [vmem:[#allocation8 + $0x98] sm:$0xf]
    %v3844 = vld [vmem:[#allocation8 + $0x9c] sm:$0xf]
    %v3845 = vld [vmem:[#allocation8 + $0xa0] sm:$0xf]
    %v3846 = vld [vmem:[#allocation8 + $0xa4] sm:$0xf]
    %v3847 = vld [vmem:[#allocation8 + $0xa8] sm:$0xf]
    %v3848 = vld [vmem:[#allocation8 + $0xac] sm:$0xf]
    %v3849 = vld [vmem:[#allocation8 + $0xb0] sm:$0xf]
    %v3850 = vld [vmem:[#allocation8 + $0xb4] sm:$0xf]
    %v3851 = vld [vmem:[#allocation8 + $0xb8] sm:$0xf]
    %v3852 = vld [vmem:[#allocation8 + $0xbc] sm:$0xf]
    %v3901 = vunpack.c.l.b16 %v3805
    %v3902 = vunpack.c.l.b16 %v3806
    %v3903 = vunpack.c.l.b16 %v3807
    %v3904 = vunpack.c.l.b16 %v3808
    %v3905 = vunpack.c.l.b16 %v3809
    %v3906 = vunpack.c.l.b16 %v3810
    %v3907 = vunpack.c.l.b16 %v3811
    %v3908 = vunpack.c.l.b16 %v3812
    %v3909 = vunpack.c.l.b16 %v3813
    %v3910 = vunpack.c.l.b16 %v3814
    %v3911 = vunpack.c.l.b16 %v3815
    %v3912 = vunpack.c.l.b16 %v3816
    %v3913 = vunpack.c.l.b16 %v3817
    %v3914 = vunpack.c.l.b16 %v3818
    %v3915 = vunpack.c.l.b16 %v3819
    %v3916 = vunpack.c.l.b16 %v3820
    %v3917 = vunpack.c.l.b16 %v3821
    %v3918 = vunpack.c.l.b16 %v3822
    %v3919 = vunpack.c.l.b16 %v3823
    %v3920 = vunpack.c.l.b16 %v3824
    %v3921 = vunpack.c.l.b16 %v3825
    %v3922 = vunpack.c.l.b16 %v3826
    %v3923 = vunpack.c.l.b16 %v3827
    %v3924 = vunpack.c.l.b16 %v3828
    %v3925 = vunpack.c.l.b16 %v3829
    %v3926 = vunpack.c.l.b16 %v3830
    %v3927 = vunpack.c.l.b16 %v3831
    %v3928 = vunpack.c.l.b16 %v3832
    %v3929 = vunpack.c.l.b16 %v3833
    %v3930 = vunpack.c.l.b16 %v3834
    %v3931 = vunpack.c.l.b16 %v3835
    %v3932 = vunpack.c.l.b16 %v3836
    %v3933 = vunpack.c.l.b16 %v3837
    %v3934 = vunpack.c.l.b16 %v3838
    %v3935 = vunpack.c.l.b16 %v3839
    %v3936 = vunpack.c.l.b16 %v3840
    %v3937 = vunpack.c.l.b16 %v3841
    %v3938 = vunpack.c.l.b16 %v3842
    %v3939 = vunpack.c.l.b16 %v3843
    %v3940 = vunpack.c.l.b16 %v3844
    %v3941 = vunpack.c.l.b16 %v3845
    %v3942 = vunpack.c.l.b16 %v3846
    %v3943 = vunpack.c.l.b16 %v3847
    %v3944 = vunpack.c.l.b16 %v3848
    %v3945 = vunpack.c.l.b16 %v3849
    %v3946 = vunpack.c.l.b16 %v3850
    %v3947 = vunpack.c.l.b16 %v3851
    %v3948 = vunpack.c.l.b16 %v3852
    %v3949 = vpack.c.b16 %v3902, %v3901
    %v3950 = vpack.c.b16 %v3904, %v3903
    %v3951 = vpack.c.b16 %v3906, %v3905
    %v3952 = vpack.c.b16 %v3908, %v3907
    %v3953 = vpack.c.b16 %v3910, %v3909
    %v3954 = vpack.c.b16 %v3912, %v3911
    %v3955 = vpack.c.b16 %v3914, %v3913
    %v3956 = vpack.c.b16 %v3916, %v3915
    %v3957 = vpack.c.b16 %v3918, %v3917
    %v3958 = vpack.c.b16 %v3920, %v3919
    %v3959 = vpack.c.b16 %v3922, %v3921
    %v3960 = vpack.c.b16 %v3924, %v3923
    %v3961 = vpack.c.b16 %v3926, %v3925
    %v3962 = vpack.c.b16 %v3928, %v3927
    %v3963 = vpack.c.b16 %v3930, %v3929
    %v3964 = vpack.c.b16 %v3932, %v3931
    %v3965 = vpack.c.b16 %v3934, %v3933
    %v3966 = vpack.c.b16 %v3936, %v3935
    %v3967 = vpack.c.b16 %v3938, %v3937
    %v3968 = vpack.c.b16 %v3940, %v3939
    %v3969 = vpack.c.b16 %v3942, %v3941
    %v3970 = vpack.c.b16 %v3944, %v3943
    %v3971 = vpack.c.b16 %v3946, %v3945
    %v3972 = vpack.c.b16 %v3948, %v3947
    %3997 = vmatprep.subr.bf16.mxu0 0
    %3998 = vmatpush1.bf16.msra.mxu0 %v3956
    %3999 = vmatprep.subr.bf16.mxu0 0
    %4000 = vmatpush1.bf16.msra.mxu0 %v3955
    %4001 = vmatprep.subr.bf16.mxu0 0
    %4002 = vmatpush1.bf16.msra.mxu0 %v3954
    %4003 = vmatprep.subr.bf16.mxu0 0
    %4004 = vmatpush1.bf16.msra.mxu0 %v3953
    %4005 = vmatprep.subr.bf16.mxu0 0
    %4006 = vmatpush1.bf16.msra.mxu0 %v3952
    %4007 = vmatprep.subr.bf16.mxu0 0
    %4008 = vmatpush1.bf16.msra.mxu0 %v3951
    %4009 = vmatprep.subr.bf16.mxu0 0
    %4010 = vmatpush1.bf16.msra.mxu0 %v3950
    %4011 = vmatprep.subr.bf16.mxu0 0
    %4012 = vmatpush1.bf16.msra.mxu0 %v3949
    %4013 = vmatprep.subr.bf16.mxu0 0
    %4014 = vmatpush2.bf16.msra.mxu0 %v3964
    %4015 = vmatprep.subr.bf16.mxu0 0
    %4016 = vmatpush2.bf16.msra.mxu0 %v3963
    %4017 = vmatprep.subr.bf16.mxu0 0
    %4018 = vmatpush2.bf16.msra.mxu0 %v3962
    %4019 = vmatprep.subr.bf16.mxu0 0
    %4020 = vmatpush2.bf16.msra.mxu0 %v3961
    %4021 = vmatprep.subr.bf16.mxu0 0
    %4022 = vmatpush2.bf16.msra.mxu0 %v3960
    %4023 = vmatprep.subr.bf16.mxu0 0
    %4024 = vmatpush2.bf16.msra.mxu0 %v3959
    %4025 = vmatprep.subr.bf16.mxu0 0
    %4026 = vmatpush2.bf16.msra.mxu0 %v3958
    %4027 = vmatprep.subr.bf16.mxu0 0
    %4028 = vmatpush2.bf16.msra.mxu0 %v3957
    %4029 = vmatprep.mubr.bf16.mxu0 %v3516
    %4030 = vmatmul.mubr.bf16.gmra.mxu0 %v3513
    %v4031 = vpop.f32.mrf.mxu0
    %v4032 = vadd.f32 0.0, %v4031
    %v4033 = vpop.f32.mrf.mxu0
    %v4034 = vpop.f32.mrf.mxu0
    %v4035 = vadd.f32 0.0, %v4034
    %v4036 = vpop.f32.mrf.mxu0
    %4037 = vmatprep.mubr.bf16.mxu0 %v3523
    %4038 = vmatmul.mubr.bf16.gmra.mxu0 %v3521
    %v4039 = vpop.f32.mrf.mxu0
    %v4040 = vadd.f32 0.0, %v4039
    %v4041 = vpop.f32.mrf.mxu0
    %v4042 = vpop.f32.mrf.mxu0
    %v4043 = vadd.f32 0.0, %v4042
    %v4044 = vpop.f32.mrf.mxu0
    %4045 = vmatprep.mubr.bf16.mxu0 %v3529
    %4046 = vmatmul.mubr.bf16.gmra.mxu0 %v3527
    %v4047 = vpop.f32.mrf.mxu0
    %v4048 = vadd.f32 0.0, %v4047
    %v4049 = vpop.f32.mrf.mxu0
    %v4050 = vpop.f32.mrf.mxu0
    %v4051 = vadd.f32 0.0, %v4050
    %v4052 = vpop.f32.mrf.mxu0
    %4053 = vmatprep.mubr.bf16.mxu0 %v3535
    %4054 = vmatmul.mubr.bf16.gmra.mxu0 %v3533
    %v4055 = vpop.f32.mrf.mxu0
    %v4056 = vadd.f32 0.0, %v4055
    %v4057 = vpop.f32.mrf.mxu0
    %v4058 = vpop.f32.mrf.mxu0
    %v4059 = vadd.f32 0.0, %v4058
    %v4060 = vpop.f32.mrf.mxu0
    %4061 = vmatprep.mubr.bf16.mxu0 %v3541
    %4062 = vmatmul.mubr.bf16.gmra.mxu0 %v3539
    %v4063 = vpop.f32.mrf.mxu0
    %v4064 = vadd.f32 0.0, %v4063
    %v4065 = vpop.f32.mrf.mxu0
    %v4066 = vpop.f32.mrf.mxu0
    %v4067 = vadd.f32 0.0, %v4066
    %v4068 = vpop.f32.mrf.mxu0
    %4069 = vmatprep.mubr.bf16.mxu0 %v3547
    %4070 = vmatmul.mubr.bf16.gmra.mxu0 %v3545
    %v4071 = vpop.f32.mrf.mxu0
    %v4072 = vadd.f32 0.0, %v4071
    %v4073 = vpop.f32.mrf.mxu0
    %v4074 = vpop.f32.mrf.mxu0
    %v4075 = vadd.f32 0.0, %v4074
    %v4076 = vpop.f32.mrf.mxu0
    %4077 = vmatprep.mubr.bf16.mxu0 %v3553
    %4078 = vmatmul.mubr.bf16.gmra.mxu0 %v3551
    %v4079 = vpop.f32.mrf.mxu0
    %v4080 = vadd.f32 0.0, %v4079
    %v4081 = vpop.f32.mrf.mxu0
    %v4082 = vpop.f32.mrf.mxu0
    %v4083 = vadd.f32 0.0, %v4082
    %v4084 = vpop.f32.mrf.mxu0
    %4085 = vmatprep.mubr.bf16.mxu0 %v3559
    %4086 = vmatmul.mubr.bf16.gmra.mxu0 %v3557
    %v4087 = vpop.f32.mrf.mxu0
    %v4088 = vadd.f32 0.0, %v4087
    %v4089 = vpop.f32.mrf.mxu0
    %v4090 = vpop.f32.mrf.mxu0
    %v4091 = vadd.f32 0.0, %v4090
    %v4092 = vpop.f32.mrf.mxu0
    %4093 = vmatprep.mubr.bf16.mxu0 %v3565
    %4094 = vmatmul.mubr.bf16.gmra.mxu0 %v3563
    %v4095 = vpop.f32.mrf.mxu0
    %v4096 = vadd.f32 0.0, %v4095
    %v4097 = vpop.f32.mrf.mxu0
    %v4098 = vpop.f32.mrf.mxu0
    %v4099 = vadd.f32 0.0, %v4098
    %v4100 = vpop.f32.mrf.mxu0
    %4101 = vmatprep.mubr.bf16.mxu0 %v3571
    %4102 = vmatmul.mubr.bf16.gmra.mxu0 %v3569
    %v4103 = vpop.f32.mrf.mxu0
    %v4104 = vadd.f32 0.0, %v4103
    %v4105 = vpop.f32.mrf.mxu0
    %v4106 = vpop.f32.mrf.mxu0
    %v4107 = vadd.f32 0.0, %v4106
    %v4108 = vpop.f32.mrf.mxu0
    %4109 = vmatprep.mubr.bf16.mxu0 %v3577
    %4110 = vmatmul.mubr.bf16.gmra.mxu0 %v3575
    %v4111 = vpop.f32.mrf.mxu0
    %v4112 = vadd.f32 0.0, %v4111
    %v4113 = vpop.f32.mrf.mxu0
    %v4114 = vpop.f32.mrf.mxu0
    %v4115 = vadd.f32 0.0, %v4114
    %v4116 = vpop.f32.mrf.mxu0
    %4117 = vmatprep.mubr.bf16.mxu0 %v3583
    %4118 = vmatmul.mubr.bf16.gmra.mxu0 %v3581
    %v4119 = vpop.f32.mrf.mxu0
    %v4120 = vadd.f32 0.0, %v4119
    %v4121 = vpop.f32.mrf.mxu0
    %v4122 = vpop.f32.mrf.mxu0
    %v4123 = vadd.f32 0.0, %v4122
    %v4124 = vpop.f32.mrf.mxu0
    %4125 = vmatprep.mubr.bf16.mxu0 %v3589
    %4126 = vmatmul.mubr.bf16.gmra.mxu0 %v3587
    %v4127 = vpop.f32.mrf.mxu0
    %v4128 = vadd.f32 0.0, %v4127
    %v4129 = vpop.f32.mrf.mxu0
    %v4130 = vpop.f32.mrf.mxu0
    %v4131 = vadd.f32 0.0, %v4130
    %v4132 = vpop.f32.mrf.mxu0
    %4133 = vmatprep.mubr.bf16.mxu0 %v3595
    %4134 = vmatmul.mubr.bf16.gmra.mxu0 %v3593
    %v4135 = vpop.f32.mrf.mxu0
    %v4136 = vadd.f32 0.0, %v4135
    %v4137 = vpop.f32.mrf.mxu0
    %v4138 = vpop.f32.mrf.mxu0
    %v4139 = vadd.f32 0.0, %v4138
    %v4140 = vpop.f32.mrf.mxu0
    %4141 = vmatprep.mubr.bf16.mxu0 %v3601
    %4142 = vmatmul.mubr.bf16.gmra.mxu0 %v3599
    %v4143 = vpop.f32.mrf.mxu0
    %v4144 = vadd.f32 0.0, %v4143
    %v4145 = vpop.f32.mrf.mxu0
    %v4146 = vpop.f32.mrf.mxu0
    %v4147 = vadd.f32 0.0, %v4146
    %v4148 = vpop.f32.mrf.mxu0
    %4149 = vmatprep.mubr.bf16.mxu0 %v3607
    %4150 = vmatmul.mubr.bf16.gmra.mxu0 %v3605
    %v4151 = vpop.f32.mrf.mxu0
    %v4152 = vadd.f32 0.0, %v4151
    %v4153 = vpop.f32.mrf.mxu0
    %v4154 = vpop.f32.mrf.mxu0
    %v4155 = vadd.f32 0.0, %v4154
    %v4156 = vpop.f32.mrf.mxu0
    %4157 = vmatprep.mubr.bf16.mxu0 %v3615
    %4158 = vmatmul.mubr.bf16.gmra.mxu0 %v3612
    %v4159 = vpop.f32.mrf.mxu0
    %v4160 = vadd.f32 0.0, %v4159
    %v4161 = vpop.f32.mrf.mxu0
    %v4162 = vpop.f32.mrf.mxu0
    %v4163 = vadd.f32 0.0, %v4162
    %v4164 = vpop.f32.mrf.mxu0
    %4165 = vmatprep.mubr.bf16.mxu0 %v3622
    %4166 = vmatmul.mubr.bf16.gmra.mxu0 %v3620
    %v4167 = vpop.f32.mrf.mxu0
    %v4168 = vadd.f32 0.0, %v4167
    %v4169 = vpop.f32.mrf.mxu0
    %v4170 = vpop.f32.mrf.mxu0
    %v4171 = vadd.f32 0.0, %v4170
    %v4172 = vpop.f32.mrf.mxu0
    %4173 = vmatprep.mubr.bf16.mxu0 %v3628
    %4174 = vmatmul.mubr.bf16.gmra.mxu0 %v3626
    %v4175 = vpop.f32.mrf.mxu0
    %v4176 = vadd.f32 0.0, %v4175
    %v4177 = vpop.f32.mrf.mxu0
    %v4178 = vpop.f32.mrf.mxu0
    %v4179 = vadd.f32 0.0, %v4178
    %v4180 = vpop.f32.mrf.mxu0
    %4181 = vmatprep.mubr.bf16.mxu0 %v3634
    %4182 = vmatmul.mubr.bf16.gmra.mxu0 %v3632
    %v4183 = vpop.f32.mrf.mxu0
    %v4184 = vadd.f32 0.0, %v4183
    %v4185 = vpop.f32.mrf.mxu0
    %v4186 = vpop.f32.mrf.mxu0
    %v4187 = vadd.f32 0.0, %v4186
    %v4188 = vpop.f32.mrf.mxu0
    %4189 = vmatprep.mubr.bf16.mxu0 %v3640
    %4190 = vmatmul.mubr.bf16.gmra.mxu0 %v3638
    %v4191 = vpop.f32.mrf.mxu0
    %v4192 = vadd.f32 0.0, %v4191
    %v4193 = vpop.f32.mrf.mxu0
    %v4194 = vpop.f32.mrf.mxu0
    %v4195 = vadd.f32 0.0, %v4194
    %v4196 = vpop.f32.mrf.mxu0
    %4197 = vmatprep.mubr.bf16.mxu0 %v3646
    %4198 = vmatmul.mubr.bf16.gmra.mxu0 %v3644
    %v4199 = vpop.f32.mrf.mxu0
    %v4200 = vadd.f32 0.0, %v4199
    %v4201 = vpop.f32.mrf.mxu0
    %v4202 = vpop.f32.mrf.mxu0
    %v4203 = vadd.f32 0.0, %v4202
    %v4204 = vpop.f32.mrf.mxu0
    %4205 = vmatprep.mubr.bf16.mxu0 %v3652
    %4206 = vmatmul.mubr.bf16.gmra.mxu0 %v3650
    %v4207 = vpop.f32.mrf.mxu0
    %v4208 = vadd.f32 0.0, %v4207
    %v4209 = vpop.f32.mrf.mxu0
    %v4210 = vpop.f32.mrf.mxu0
    %v4211 = vadd.f32 0.0, %v4210
    %v4212 = vpop.f32.mrf.mxu0
    %4213 = vmatprep.mubr.bf16.mxu0 %v3658
    %4214 = vmatmul.mubr.bf16.gmra.mxu0 %v3656
    %v4215 = vpop.f32.mrf.mxu0
    %v4216 = vadd.f32 0.0, %v4215
    %v4217 = vpop.f32.mrf.mxu0
    %v4218 = vpop.f32.mrf.mxu0
    %v4219 = vadd.f32 0.0, %v4218
    %v4220 = vpop.f32.mrf.mxu0
    %4221 = vmatprep.mubr.bf16.mxu0 %v3664
    %4222 = vmatmul.mubr.bf16.gmra.mxu0 %v3662
    %v4223 = vpop.f32.mrf.mxu0
    %v4224 = vadd.f32 0.0, %v4223
    %v4225 = vpop.f32.mrf.mxu0
    %v4226 = vpop.f32.mrf.mxu0
    %v4227 = vadd.f32 0.0, %v4226
    %v4228 = vpop.f32.mrf.mxu0
    %4229 = vmatprep.mubr.bf16.mxu0 %v3670
    %4230 = vmatmul.mubr.bf16.gmra.mxu0 %v3668
    %v4231 = vpop.f32.mrf.mxu0
    %v4232 = vadd.f32 0.0, %v4231
    %v4233 = vpop.f32.mrf.mxu0
    %v4234 = vpop.f32.mrf.mxu0
    %v4235 = vadd.f32 0.0, %v4234
    %v4236 = vpop.f32.mrf.mxu0
    %4237 = vmatprep.mubr.bf16.mxu0 %v3676
    %4238 = vmatmul.mubr.bf16.gmra.mxu0 %v3674
    %v4239 = vpop.f32.mrf.mxu0
    %v4240 = vadd.f32 0.0, %v4239
    %v4241 = vpop.f32.mrf.mxu0
    %v4242 = vpop.f32.mrf.mxu0
    %v4243 = vadd.f32 0.0, %v4242
    %v4244 = vpop.f32.mrf.mxu0
    %4245 = vmatprep.mubr.bf16.mxu0 %v3682
    %4246 = vmatmul.mubr.bf16.gmra.mxu0 %v3680
    %v4247 = vpop.f32.mrf.mxu0
    %v4248 = vadd.f32 0.0, %v4247
    %v4249 = vpop.f32.mrf.mxu0
    %v4250 = vpop.f32.mrf.mxu0
    %v4251 = vadd.f32 0.0, %v4250
    %v4252 = vpop.f32.mrf.mxu0
    %4253 = vmatprep.mubr.bf16.mxu0 %v3688
    %4254 = vmatmul.mubr.bf16.gmra.mxu0 %v3686
    %v4255 = vpop.f32.mrf.mxu0
    %v4256 = vadd.f32 0.0, %v4255
    %v4257 = vpop.f32.mrf.mxu0
    %v4258 = vpop.f32.mrf.mxu0
    %v4259 = vadd.f32 0.0, %v4258
    %v4260 = vpop.f32.mrf.mxu0
    %4261 = vmatprep.mubr.bf16.mxu0 %v3694
    %4262 = vmatmul.mubr.bf16.gmra.mxu0 %v3692
    %v4263 = vpop.f32.mrf.mxu0
    %v4264 = vadd.f32 0.0, %v4263
    %v4265 = vpop.f32.mrf.mxu0
    %v4266 = vpop.f32.mrf.mxu0
    %v4267 = vadd.f32 0.0, %v4266
    %v4268 = vpop.f32.mrf.mxu0
    %4269 = vmatprep.mubr.bf16.mxu0 %v3700
    %4270 = vmatmul.mubr.bf16.gmra.mxu0 %v3698
    %v4271 = vpop.f32.mrf.mxu0
    %v4272 = vadd.f32 0.0, %v4271
    %v4273 = vpop.f32.mrf.mxu0
    %v4274 = vpop.f32.mrf.mxu0
    %v4275 = vadd.f32 0.0, %v4274
    %v4276 = vpop.f32.mrf.mxu0
    %4277 = vmatprep.mubr.bf16.mxu0 %v3706
    %4278 = vmatmul.mubr.bf16.gmra.mxu0 %v3704
    %v4279 = vpop.f32.mrf.mxu0
    %v4280 = vadd.f32 0.0, %v4279
    %v4281 = vpop.f32.mrf.mxu0
    %v4282 = vpop.f32.mrf.mxu0
    %v4283 = vadd.f32 0.0, %v4282
    %v4284 = vpop.f32.mrf.mxu0
    %4285 = vdwg.mxu0
    %4286 = vmatprep.subr.bf16.mxu0 0
    %4287 = vmatpush1.bf16.msra.mxu0 %v3972
    %4288 = vmatprep.subr.bf16.mxu0 0
    %4289 = vmatpush1.bf16.msra.mxu0 %v3971
    %4290 = vmatprep.subr.bf16.mxu0 0
    %4291 = vmatpush1.bf16.msra.mxu0 %v3970
    %4292 = vmatprep.subr.bf16.mxu0 0
    %4293 = vmatpush1.bf16.msra.mxu0 %v3969
    %4294 = vmatprep.subr.bf16.mxu0 0
    %4295 = vmatpush1.bf16.msra.mxu0 %v3968
    %4296 = vmatprep.subr.bf16.mxu0 0
    %4297 = vmatpush1.bf16.msra.mxu0 %v3967
    %4298 = vmatprep.subr.bf16.mxu0 0
    %4299 = vmatpush1.bf16.msra.mxu0 %v3966
    %4300 = vmatprep.subr.bf16.mxu0 0
    %4301 = vmatpush1.bf16.msra.mxu0 %v3965
    %4302 = vmatprep.subr.bf16.mxu0 0
    %4303 = vmatpush2.bf16.msra.mxu0 0
    %4304 = vmatprep.subr.bf16.mxu0 0
    %4305 = vmatpush2.bf16.msra.mxu0 0
    %4306 = vmatprep.subr.bf16.mxu0 0
    %4307 = vmatpush2.bf16.msra.mxu0 0
    %4308 = vmatprep.subr.bf16.mxu0 0
    %4309 = vmatpush2.bf16.msra.mxu0 0
    %4310 = vmatprep.subr.bf16.mxu0 0
    %4311 = vmatpush2.bf16.msra.mxu0 0
    %4312 = vmatprep.subr.bf16.mxu0 0
    %4313 = vmatpush2.bf16.msra.mxu0 0
    %4314 = vmatprep.subr.bf16.mxu0 0
    %4315 = vmatpush2.bf16.msra.mxu0 0
    %4316 = vmatprep.subr.bf16.mxu0 0
    %4317 = vmatpush2.bf16.msra.mxu0 0
    %4318 = vmatprep.mubr.bf16.mxu0 0
    %4319 = vmatmul.mubr.bf16.gmra.mxu0 %v3519
    %v4320 = vpop.f32.mrf.mxu0
    %v4321 = vadd.f32 %v4032, %v4320
    %v4322 = vpop.f32.mrf.mxu0
    %v4323 = vpop.f32.mrf.mxu0
    %v4324 = vadd.f32 %v4035, %v4323
    %v4325 = vpop.f32.mrf.mxu0
    %4326 = vmatprep.mubr.bf16.mxu0 0
    %4327 = vmatmul.mubr.bf16.gmra.mxu0 %v3525
    %v4328 = vpop.f32.mrf.mxu0
    %v4329 = vadd.f32 %v4040, %v4328
    %v4330 = vpop.f32.mrf.mxu0
    %v4331 = vpop.f32.mrf.mxu0
    %v4332 = vadd.f32 %v4043, %v4331
    %v4333 = vpop.f32.mrf.mxu0
    %4334 = vmatprep.mubr.bf16.mxu0 0
    %4335 = vmatmul.mubr.bf16.gmra.mxu0 %v3531
    %v4336 = vpop.f32.mrf.mxu0
    %v4337 = vadd.f32 %v4048, %v4336
    %v4338 = vpop.f32.mrf.mxu0
    %v4339 = vpop.f32.mrf.mxu0
    %v4340 = vadd.f32 %v4051, %v4339
    %v4341 = vpop.f32.mrf.mxu0
    %4342 = vmatprep.mubr.bf16.mxu0 0
    %4343 = vmatmul.mubr.bf16.gmra.mxu0 %v3537
    %v4344 = vpop.f32.mrf.mxu0
    %v4345 = vadd.f32 %v4056, %v4344
    %v4346 = vpop.f32.mrf.mxu0
    %v4347 = vpop.f32.mrf.mxu0
    %v4348 = vadd.f32 %v4059, %v4347
    %v4349 = vpop.f32.mrf.mxu0
    %4350 = vmatprep.mubr.bf16.mxu0 0
    %4351 = vmatmul.mubr.bf16.gmra.mxu0 %v3543
    %v4352 = vpop.f32.mrf.mxu0
    %v4353 = vadd.f32 %v4064, %v4352
    %v4354 = vpop.f32.mrf.mxu0
    %v4355 = vpop.f32.mrf.mxu0
    %v4356 = vadd.f32 %v4067, %v4355
    %v4357 = vpop.f32.mrf.mxu0
    %4358 = vmatprep.mubr.bf16.mxu0 0
    %4359 = vmatmul.mubr.bf16.gmra.mxu0 %v3549
    %v4360 = vpop.f32.mrf.mxu0
    %v4361 = vadd.f32 %v4072, %v4360
    %v4362 = vpop.f32.mrf.mxu0
    %v4363 = vpop.f32.mrf.mxu0
    %v4364 = vadd.f32 %v4075, %v4363
    %v4365 = vpop.f32.mrf.mxu0
    %4366 = vmatprep.mubr.bf16.mxu0 0
    %4367 = vmatmul.mubr.bf16.gmra.mxu0 %v3555
    %v4368 = vpop.f32.mrf.mxu0
    %v4369 = vadd.f32 %v4080, %v4368
    %v4370 = vpop.f32.mrf.mxu0
    %v4371 = vpop.f32.mrf.mxu0
    %v4372 = vadd.f32 %v4083, %v4371
    %v4373 = vpop.f32.mrf.mxu0
    %4374 = vmatprep.mubr.bf16.mxu0 0
    %4375 = vmatmul.mubr.bf16.gmra.mxu0 %v3561
    %v4376 = vpop.f32.mrf.mxu0
    %v4377 = vadd.f32 %v4088, %v4376
    %v4378 = vpop.f32.mrf.mxu0
    %v4379 = vpop.f32.mrf.mxu0
    %v4380 = vadd.f32 %v4091, %v4379
    %v4381 = vpop.f32.mrf.mxu0
    %4382 = vmatprep.mubr.bf16.mxu0 0
    %4383 = vmatmul.mubr.bf16.gmra.mxu0 %v3567
    %v4384 = vpop.f32.mrf.mxu0
    %v4385 = vadd.f32 %v4096, %v4384
    %v4386 = vpop.f32.mrf.mxu0
    %v4387 = vpop.f32.mrf.mxu0
    %v4388 = vadd.f32 %v4099, %v4387
    %v4389 = vpop.f32.mrf.mxu0
    %4390 = vmatprep.mubr.bf16.mxu0 0
    %4391 = vmatmul.mubr.bf16.gmra.mxu0 %v3573
    %v4392 = vpop.f32.mrf.mxu0
    %v4393 = vadd.f32 %v4104, %v4392
    %v4394 = vpop.f32.mrf.mxu0
    %v4395 = vpop.f32.mrf.mxu0
    %v4396 = vadd.f32 %v4107, %v4395
    %v4397 = vpop.f32.mrf.mxu0
    %4398 = vmatprep.mubr.bf16.mxu0 0
    %4399 = vmatmul.mubr.bf16.gmra.mxu0 %v3579
    %v4400 = vpop.f32.mrf.mxu0
    %v4401 = vadd.f32 %v4112, %v4400
    %v4402 = vpop.f32.mrf.mxu0
    %v4403 = vpop.f32.mrf.mxu0
    %v4404 = vadd.f32 %v4115, %v4403
    %v4405 = vpop.f32.mrf.mxu0
    %4406 = vmatprep.mubr.bf16.mxu0 0
    %4407 = vmatmul.mubr.bf16.gmra.mxu0 %v3585
    %v4408 = vpop.f32.mrf.mxu0
    %v4409 = vadd.f32 %v4120, %v4408
    %v4410 = vpop.f32.mrf.mxu0
    %v4411 = vpop.f32.mrf.mxu0
    %v4412 = vadd.f32 %v4123, %v4411
    %v4413 = vpop.f32.mrf.mxu0
    %4414 = vmatprep.mubr.bf16.mxu0 0
    %4415 = vmatmul.mubr.bf16.gmra.mxu0 %v3591
    %v4416 = vpop.f32.mrf.mxu0
    %v4417 = vadd.f32 %v4128, %v4416
    %v4418 = vpop.f32.mrf.mxu0
    %v4419 = vpop.f32.mrf.mxu0
    %v4420 = vadd.f32 %v4131, %v4419
    %v4421 = vpop.f32.mrf.mxu0
    %4422 = vmatprep.mubr.bf16.mxu0 0
    %4423 = vmatmul.mubr.bf16.gmra.mxu0 %v3597
    %v4424 = vpop.f32.mrf.mxu0
    %v4425 = vadd.f32 %v4136, %v4424
    %v4426 = vpop.f32.mrf.mxu0
    %v4427 = vpop.f32.mrf.mxu0
    %v4428 = vadd.f32 %v4139, %v4427
    %v4429 = vpop.f32.mrf.mxu0
    %4430 = vmatprep.mubr.bf16.mxu0 0
    %4431 = vmatmul.mubr.bf16.gmra.mxu0 %v3603
    %v4432 = vpop.f32.mrf.mxu0
    %v4433 = vadd.f32 %v4144, %v4432
    %v4434 = vpop.f32.mrf.mxu0
    %v4435 = vpop.f32.mrf.mxu0
    %v4436 = vadd.f32 %v4147, %v4435
    %v4437 = vpop.f32.mrf.mxu0
    %4438 = vmatprep.mubr.bf16.mxu0 0
    %4439 = vmatmul.mubr.bf16.gmra.mxu0 %v3609
    %v4440 = vpop.f32.mrf.mxu0
    %v4441 = vadd.f32 %v4152, %v4440
    %v4442 = vpop.f32.mrf.mxu0
    %v4443 = vpop.f32.mrf.mxu0
    %v4444 = vadd.f32 %v4155, %v4443
    %v4445 = vpop.f32.mrf.mxu0
    %4446 = vmatprep.mubr.bf16.mxu0 0
    %4447 = vmatmul.mubr.bf16.gmra.mxu0 %v3618
    %v4448 = vpop.f32.mrf.mxu0
    %v4449 = vadd.f32 %v4160, %v4448
    %v4450 = vpop.f32.mrf.mxu0
    %v4451 = vpop.f32.mrf.mxu0
    %v4452 = vadd.f32 %v4163, %v4451
    %v4453 = vpop.f32.mrf.mxu0
    %4454 = vmatprep.mubr.bf16.mxu0 0
    %4455 = vmatmul.mubr.bf16.gmra.mxu0 %v3624
    %v4456 = vpop.f32.mrf.mxu0
    %v4457 = vadd.f32 %v4168, %v4456
    %v4458 = vpop.f32.mrf.mxu0
    %v4459 = vpop.f32.mrf.mxu0
    %v4460 = vadd.f32 %v4171, %v4459
    %v4461 = vpop.f32.mrf.mxu0
    %4462 = vmatprep.mubr.bf16.mxu0 0
    %4463 = vmatmul.mubr.bf16.gmra.mxu0 %v3630
    %v4464 = vpop.f32.mrf.mxu0
    %v4465 = vadd.f32 %v4176, %v4464
    %v4466 = vpop.f32.mrf.mxu0
    %v4467 = vpop.f32.mrf.mxu0
    %v4468 = vadd.f32 %v4179, %v4467
    %v4469 = vpop.f32.mrf.mxu0
    %4470 = vmatprep.mubr.bf16.mxu0 0
    %4471 = vmatmul.mubr.bf16.gmra.mxu0 %v3636
    %v4472 = vpop.f32.mrf.mxu0
    %v4473 = vadd.f32 %v4184, %v4472
    %v4474 = vpop.f32.mrf.mxu0
    %v4475 = vpop.f32.mrf.mxu0
    %v4476 = vadd.f32 %v4187, %v4475
    %v4477 = vpop.f32.mrf.mxu0
    %4478 = vmatprep.mubr.bf16.mxu0 0
    %4479 = vmatmul.mubr.bf16.gmra.mxu0 %v3642
    %v4480 = vpop.f32.mrf.mxu0
    %v4481 = vadd.f32 %v4192, %v4480
    %v4482 = vpop.f32.mrf.mxu0
    %v4483 = vpop.f32.mrf.mxu0
    %v4484 = vadd.f32 %v4195, %v4483
    %v4485 = vpop.f32.mrf.mxu0
    %4486 = vmatprep.mubr.bf16.mxu0 0
    %4487 = vmatmul.mubr.bf16.gmra.mxu0 %v3648
    %v4488 = vpop.f32.mrf.mxu0
    %v4489 = vadd.f32 %v4200, %v4488
    %v4490 = vpop.f32.mrf.mxu0
    %v4491 = vpop.f32.mrf.mxu0
    %v4492 = vadd.f32 %v4203, %v4491
    %v4493 = vpop.f32.mrf.mxu0
    %4494 = vmatprep.mubr.bf16.mxu0 0
    %4495 = vmatmul.mubr.bf16.gmra.mxu0 %v3654
    %v4496 = vpop.f32.mrf.mxu0
    %v4497 = vadd.f32 %v4208, %v4496
    %v4498 = vpop.f32.mrf.mxu0
    %v4499 = vpop.f32.mrf.mxu0
    %v4500 = vadd.f32 %v4211, %v4499
    %v4501 = vpop.f32.mrf.mxu0
    %4502 = vmatprep.mubr.bf16.mxu0 0
    %4503 = vmatmul.mubr.bf16.gmra.mxu0 %v3660
    %v4504 = vpop.f32.mrf.mxu0
    %v4505 = vadd.f32 %v4216, %v4504
    %v4506 = vpop.f32.mrf.mxu0
    %v4507 = vpop.f32.mrf.mxu0
    %v4508 = vadd.f32 %v4219, %v4507
    %v4509 = vpop.f32.mrf.mxu0
    %4510 = vmatprep.mubr.bf16.mxu0 0
    %4511 = vmatmul.mubr.bf16.gmra.mxu0 %v3666
    %v4512 = vpop.f32.mrf.mxu0
    %v4513 = vadd.f32 %v4224, %v4512
    %v4514 = vpop.f32.mrf.mxu0
    %v4515 = vpop.f32.mrf.mxu0
    %v4516 = vadd.f32 %v4227, %v4515
    %v4517 = vpop.f32.mrf.mxu0
    %4518 = vmatprep.mubr.bf16.mxu0 0
    %4519 = vmatmul.mubr.bf16.gmra.mxu0 %v3672
    %v4520 = vpop.f32.mrf.mxu0
    %v4521 = vadd.f32 %v4232, %v4520
    %v4522 = vpop.f32.mrf.mxu0
    %v4523 = vpop.f32.mrf.mxu0
    %v4524 = vadd.f32 %v4235, %v4523
    %v4525 = vpop.f32.mrf.mxu0
    %4526 = vmatprep.mubr.bf16.mxu0 0
    %4527 = vmatmul.mubr.bf16.gmra.mxu0 %v3678
    %v4528 = vpop.f32.mrf.mxu0
    %v4529 = vadd.f32 %v4240, %v4528
    %v4530 = vpop.f32.mrf.mxu0
    %v4531 = vpop.f32.mrf.mxu0
    %v4532 = vadd.f32 %v4243, %v4531
    %v4533 = vpop.f32.mrf.mxu0
    %4534 = vmatprep.mubr.bf16.mxu0 0
    %4535 = vmatmul.mubr.bf16.gmra.mxu0 %v3684
    %v4536 = vpop.f32.mrf.mxu0
    %v4537 = vadd.f32 %v4248, %v4536
    %v4538 = vpop.f32.mrf.mxu0
    %v4539 = vpop.f32.mrf.mxu0
    %v4540 = vadd.f32 %v4251, %v4539
    %v4541 = vpop.f32.mrf.mxu0
    %4542 = vmatprep.mubr.bf16.mxu0 0
    %4543 = vmatmul.mubr.bf16.gmra.mxu0 %v3690
    %v4544 = vpop.f32.mrf.mxu0
    %v4545 = vadd.f32 %v4256, %v4544
    %v4546 = vpop.f32.mrf.mxu0
    %v4547 = vpop.f32.mrf.mxu0
    %v4548 = vadd.f32 %v4259, %v4547
    %v4549 = vpop.f32.mrf.mxu0
    %4550 = vmatprep.mubr.bf16.mxu0 0
    %4551 = vmatmul.mubr.bf16.gmra.mxu0 %v3696
    %v4552 = vpop.f32.mrf.mxu0
    %v4553 = vadd.f32 %v4264, %v4552
    %v4554 = vpop.f32.mrf.mxu0
    %v4555 = vpop.f32.mrf.mxu0
    %v4556 = vadd.f32 %v4267, %v4555
    %v4557 = vpop.f32.mrf.mxu0
    %4558 = vmatprep.mubr.bf16.mxu0 0
    %4559 = vmatmul.mubr.bf16.gmra.mxu0 %v3702
    %v4560 = vpop.f32.mrf.mxu0
    %v4561 = vadd.f32 %v4272, %v4560
    %v4562 = vpop.f32.mrf.mxu0
    %v4563 = vpop.f32.mrf.mxu0
    %v4564 = vadd.f32 %v4275, %v4563
    %v4565 = vpop.f32.mrf.mxu0
    %4566 = vmatprep.mubr.bf16.mxu0 0
    %4567 = vmatmul.mubr.bf16.gmra.mxu0 %v3708
    %v4568 = vpop.f32.mrf.mxu0
    %v4569 = vadd.f32 %v4280, %v4568
    %v4570 = vpop.f32.mrf.mxu0
    %v4571 = vpop.f32.mrf.mxu0
    %v4572 = vadd.f32 %v4283, %v4571
    %v4573 = vpop.f32.mrf.mxu0
    %4574 = vdwg.mxu0
    %v4575 = vld [vmem:[%s7] sm:$0x1]
    %v4577 = vlaneseq
    %v4578 = vshrl.u32 %v4577, 7
    %v4579 = vsub.s32 0, %v4578
    %v4580 = vrot.slane %v4575, %v4579
    %v4582 = vadd.f32 %v4321, %v4580
    %v4583 = vadd.f32 %v4324, %v4580
    %v4584 = vadd.f32 %v4329, %v4580
    %v4585 = vadd.f32 %v4332, %v4580
    %v4586 = vadd.f32 %v4337, %v4580
    %v4587 = vadd.f32 %v4340, %v4580
    %v4588 = vadd.f32 %v4345, %v4580
    %v4589 = vadd.f32 %v4348, %v4580
    %v4590 = vadd.f32 %v4353, %v4580
    %v4591 = vadd.f32 %v4356, %v4580
    %v4592 = vadd.f32 %v4361, %v4580
    %v4593 = vadd.f32 %v4364, %v4580
    %v4594 = vadd.f32 %v4369, %v4580
    %v4595 = vadd.f32 %v4372, %v4580
    %v4596 = vadd.f32 %v4377, %v4580
    %v4597 = vadd.f32 %v4380, %v4580
    %v4598 = vadd.f32 %v4385, %v4580
    %v4599 = vadd.f32 %v4388, %v4580
    %v4600 = vadd.f32 %v4393, %v4580
    %v4601 = vadd.f32 %v4396, %v4580
    %v4602 = vadd.f32 %v4401, %v4580
    %v4603 = vadd.f32 %v4404, %v4580
    %v4604 = vadd.f32 %v4409, %v4580
    %v4605 = vadd.f32 %v4412, %v4580
    %v4606 = vadd.f32 %v4417, %v4580
    %v4607 = vadd.f32 %v4420, %v4580
    %v4608 = vadd.f32 %v4425, %v4580
    %v4609 = vadd.f32 %v4428, %v4580
    %v4610 = vadd.f32 %v4433, %v4580
    %v4611 = vadd.f32 %v4436, %v4580
    %v4612 = vadd.f32 %v4441, %v4580
    %v4613 = vadd.f32 %v4444, %v4580
    %v4614 = vadd.f32 %v4449, %v4580
    %v4615 = vadd.f32 %v4452, %v4580
    %v4616 = vadd.f32 %v4457, %v4580
    %v4617 = vadd.f32 %v4460, %v4580
    %v4618 = vadd.f32 %v4465, %v4580
    %v4619 = vadd.f32 %v4468, %v4580
    %v4620 = vadd.f32 %v4473, %v4580
    %v4621 = vadd.f32 %v4476, %v4580
    %v4622 = vadd.f32 %v4481, %v4580
    %v4623 = vadd.f32 %v4484, %v4580
    %v4624 = vadd.f32 %v4489, %v4580
    %v4625 = vadd.f32 %v4492, %v4580
    %v4626 = vadd.f32 %v4497, %v4580
    %v4627 = vadd.f32 %v4500, %v4580
    %v4628 = vadd.f32 %v4505, %v4580
    %v4629 = vadd.f32 %v4508, %v4580
    %v4630 = vadd.f32 %v4513, %v4580
    %v4631 = vadd.f32 %v4516, %v4580
    %v4632 = vadd.f32 %v4521, %v4580
    %v4633 = vadd.f32 %v4524, %v4580
    %v4634 = vadd.f32 %v4529, %v4580
    %v4635 = vadd.f32 %v4532, %v4580
    %v4636 = vadd.f32 %v4537, %v4580
    %v4637 = vadd.f32 %v4540, %v4580
    %v4638 = vadd.f32 %v4545, %v4580
    %v4639 = vadd.f32 %v4548, %v4580
    %v4640 = vadd.f32 %v4553, %v4580
    %v4641 = vadd.f32 %v4556, %v4580
    %v4642 = vadd.f32 %v4561, %v4580
    %v4643 = vadd.f32 %v4564, %v4580
    %v4644 = vadd.f32 %v4569, %v4580
    %v4645 = vadd.f32 %v4572, %v4580
    %v4646 = vld [vmem:[#allocation3] sm:$0xff]
    %v4647 = vld [vmem:[#allocation3 + $0x8] sm:$0xff]
    %v4648 = vld [vmem:[#allocation3 + $0x10] sm:$0xff]
    %v4649 = vld [vmem:[#allocation3 + $0x18] sm:$0xff]
    %v4650 = vld [vmem:[#allocation3 + $0x20] sm:$0xff]
    %v4651 = vld [vmem:[#allocation3 + $0x28] sm:$0xff]
    %v4652 = vld [vmem:[#allocation3 + $0x30] sm:$0xff]
    %v4653 = vld [vmem:[#allocation3 + $0x38] sm:$0xff]
    %v4654 = vld [vmem:[#allocation3 + $0x40] sm:$0xff]
    %v4655 = vld [vmem:[#allocation3 + $0x48] sm:$0xff]
    %v4656 = vld [vmem:[#allocation3 + $0x50] sm:$0xff]
    %v4657 = vld [vmem:[#allocation3 + $0x58] sm:$0xff]
    %v4658 = vld [vmem:[#allocation3 + $0x60] sm:$0xff]
    %v4659 = vld [vmem:[#allocation3 + $0x68] sm:$0xff]
    %v4660 = vld [vmem:[#allocation3 + $0x70] sm:$0xff]
    %v4661 = vld [vmem:[#allocation3 + $0x78] sm:$0xff]
    %v4662 = vld [vmem:[#allocation3 + $0x80] sm:$0xff]
    %v4663 = vld [vmem:[#allocation3 + $0x88] sm:$0xff]
    %v4664 = vld [vmem:[#allocation3 + $0x90] sm:$0xff]
    %v4665 = vld [vmem:[#allocation3 + $0x98] sm:$0xff]
    %v4666 = vld [vmem:[#allocation3 + $0xa0] sm:$0xff]
    %v4667 = vld [vmem:[#allocation3 + $0xa8] sm:$0xff]
    %v4668 = vld [vmem:[#allocation3 + $0xb0] sm:$0xff]
    %v4669 = vld [vmem:[#allocation3 + $0xb8] sm:$0xff]
    %v4670 = vld [vmem:[#allocation3 + $0xc0] sm:$0xff]
    %v4671 = vld [vmem:[#allocation3 + $0xc8] sm:$0xff]
    %v4672 = vld [vmem:[#allocation3 + $0xd0] sm:$0xff]
    %v4673 = vld [vmem:[#allocation3 + $0xd8] sm:$0xff]
    %v4674 = vld [vmem:[#allocation3 + $0xe0] sm:$0xff]
    %v4675 = vld [vmem:[#allocation3 + $0xe8] sm:$0xff]
    %v4676 = vld [vmem:[#allocation3 + $0xf0] sm:$0xff]
    %v4677 = vld [vmem:[#allocation3 + $0xf8] sm:$0xff]
    %v4678 = vld [vmem:[#allocation3 + $0x100] sm:$0xff]
    %v4679 = vld [vmem:[#allocation3 + $0x108] sm:$0xff]
    %v4680 = vld [vmem:[#allocation3 + $0x110] sm:$0xff]
    %v4681 = vld [vmem:[#allocation3 + $0x118] sm:$0xff]
    %v4682 = vld [vmem:[#allocation3 + $0x120] sm:$0xff]
    %v4683 = vld [vmem:[#allocation3 + $0x128] sm:$0xff]
    %v4684 = vld [vmem:[#allocation3 + $0x130] sm:$0xff]
    %v4685 = vld [vmem:[#allocation3 + $0x138] sm:$0xff]
    %v4686 = vld [vmem:[#allocation3 + $0x140] sm:$0xff]
    %v4687 = vld [vmem:[#allocation3 + $0x148] sm:$0xff]
    %v4688 = vld [vmem:[#allocation3 + $0x150] sm:$0xff]
    %v4689 = vld [vmem:[#allocation3 + $0x158] sm:$0xff]
    %v4690 = vld [vmem:[#allocation3 + $0x160] sm:$0xff]
    %v4691 = vld [vmem:[#allocation3 + $0x168] sm:$0xff]
    %v4692 = vld [vmem:[#allocation3 + $0x170] sm:$0xff]
    %v4693 = vld [vmem:[#allocation3 + $0x178] sm:$0xff]
    %v4694 = vld [vmem:[#allocation3 + $0x180] sm:$0xff]
    %v4695 = vld [vmem:[#allocation3 + $0x188] sm:$0xff]
    %v4696 = vld [vmem:[#allocation3 + $0x190] sm:$0xff]
    %v4697 = vld [vmem:[#allocation3 + $0x198] sm:$0xff]
    %v4698 = vld [vmem:[#allocation3 + $0x1a0] sm:$0xff]
    %v4699 = vld [vmem:[#allocation3 + $0x1a8] sm:$0xff]
    %v4700 = vld [vmem:[#allocation3 + $0x1b0] sm:$0xff]
    %v4701 = vld [vmem:[#allocation3 + $0x1b8] sm:$0xff]
    %v4702 = vld [vmem:[#allocation3 + $0x1c0] sm:$0xff]
    %v4703 = vld [vmem:[#allocation3 + $0x1c8] sm:$0xff]
    %v4704 = vld [vmem:[#allocation3 + $0x1d0] sm:$0xff]
    %v4705 = vld [vmem:[#allocation3 + $0x1d8] sm:$0xff]
    %v4706 = vld [vmem:[#allocation3 + $0x1e0] sm:$0xff]
    %v4707 = vld [vmem:[#allocation3 + $0x1e8] sm:$0xff]
    %v4708 = vld [vmem:[#allocation3 + $0x1f0] sm:$0xff]
    %v4709 = vld [vmem:[#allocation3 + $0x1f8] sm:$0xff]
    %v4710 = vadd.f32 %v4582, %v4646
    %v4711 = vadd.f32 %v4583, %v4647
    %v4712 = vadd.f32 %v4584, %v4648
    %v4713 = vadd.f32 %v4585, %v4649
    %v4714 = vadd.f32 %v4586, %v4650
    %v4715 = vadd.f32 %v4587, %v4651
    %v4716 = vadd.f32 %v4588, %v4652
    %v4717 = vadd.f32 %v4589, %v4653
    %v4718 = vadd.f32 %v4590, %v4654
    %v4719 = vadd.f32 %v4591, %v4655
    %v4720 = vadd.f32 %v4592, %v4656
    %v4721 = vadd.f32 %v4593, %v4657
    %v4722 = vadd.f32 %v4594, %v4658
    %v4723 = vadd.f32 %v4595, %v4659
    %v4724 = vadd.f32 %v4596, %v4660
    %v4725 = vadd.f32 %v4597, %v4661
    %v4726 = vadd.f32 %v4598, %v4662
    %v4727 = vadd.f32 %v4599, %v4663
    %v4728 = vadd.f32 %v4600, %v4664
    %v4729 = vadd.f32 %v4601, %v4665
    %v4730 = vadd.f32 %v4602, %v4666
    %v4731 = vadd.f32 %v4603, %v4667
    %v4732 = vadd.f32 %v4604, %v4668
    %v4733 = vadd.f32 %v4605, %v4669
    %v4734 = vadd.f32 %v4606, %v4670
    %v4735 = vadd.f32 %v4607, %v4671
    %v4736 = vadd.f32 %v4608, %v4672
    %v4737 = vadd.f32 %v4609, %v4673
    %v4738 = vadd.f32 %v4610, %v4674
    %v4739 = vadd.f32 %v4611, %v4675
    %v4740 = vadd.f32 %v4612, %v4676
    %v4741 = vadd.f32 %v4613, %v4677
    %v4742 = vadd.f32 %v4614, %v4678
    %v4743 = vadd.f32 %v4615, %v4679
    %v4744 = vadd.f32 %v4616, %v4680
    %v4745 = vadd.f32 %v4617, %v4681
    %v4746 = vadd.f32 %v4618, %v4682
    %v4747 = vadd.f32 %v4619, %v4683
    %v4748 = vadd.f32 %v4620, %v4684
    %v4749 = vadd.f32 %v4621, %v4685
    %v4750 = vadd.f32 %v4622, %v4686
    %v4751 = vadd.f32 %v4623, %v4687
    %v4752 = vadd.f32 %v4624, %v4688
    %v4753 = vadd.f32 %v4625, %v4689
    %v4754 = vadd.f32 %v4626, %v4690
    %v4755 = vadd.f32 %v4627, %v4691
    %v4756 = vadd.f32 %v4628, %v4692
    %v4757 = vadd.f32 %v4629, %v4693
    %v4758 = vadd.f32 %v4630, %v4694
    %v4759 = vadd.f32 %v4631, %v4695
    %v4760 = vadd.f32 %v4632, %v4696
    %v4761 = vadd.f32 %v4633, %v4697
    %v4762 = vadd.f32 %v4634, %v4698
    %v4763 = vadd.f32 %v4635, %v4699
    %v4764 = vadd.f32 %v4636, %v4700
    %v4765 = vadd.f32 %v4637, %v4701
    %v4766 = vadd.f32 %v4638, %v4702
    %v4767 = vadd.f32 %v4639, %v4703
    %v4768 = vadd.f32 %v4640, %v4704
    %v4769 = vadd.f32 %v4641, %v4705
    %v4770 = vadd.f32 %v4642, %v4706
    %v4771 = vadd.f32 %v4643, %v4707
    %v4772 = vadd.f32 %v4644, %v4708
    %v4773 = vadd.f32 %v4645, %v4709
    %4774 = vst [vmem:[#allocation9] sm:$0xff] %v4710
    %4775 = vst [vmem:[#allocation9 + $0x8] sm:$0xff] %v4711
    %4776 = vst [vmem:[#allocation9 + $0x10] sm:$0xff] %v4712
    %4777 = vst [vmem:[#allocation9 + $0x18] sm:$0xff] %v4713
    %4778 = vst [vmem:[#allocation9 + $0x20] sm:$0xff] %v4714
    %4779 = vst [vmem:[#allocation9 + $0x28] sm:$0xff] %v4715
    %4780 = vst [vmem:[#allocation9 + $0x30] sm:$0xff] %v4716
    %4781 = vst [vmem:[#allocation9 + $0x38] sm:$0xff] %v4717
    %4782 = vst [vmem:[#allocation9 + $0x40] sm:$0xff] %v4718
    %4783 = vst [vmem:[#allocation9 + $0x48] sm:$0xff] %v4719
    %4784 = vst [vmem:[#allocation9 + $0x50] sm:$0xff] %v4720
    %4785 = vst [vmem:[#allocation9 + $0x58] sm:$0xff] %v4721
    %4786 = vst [vmem:[#allocation9 + $0x60] sm:$0xff] %v4722
    %4787 = vst [vmem:[#allocation9 + $0x68] sm:$0xff] %v4723
    %4788 = vst [vmem:[#allocation9 + $0x70] sm:$0xff] %v4724
    %4789 = vst [vmem:[#allocation9 + $0x78] sm:$0xff] %v4725
    %4790 = vst [vmem:[#allocation9 + $0x80] sm:$0xff] %v4726
    %4791 = vst [vmem:[#allocation9 + $0x88] sm:$0xff] %v4727
    %4792 = vst [vmem:[#allocation9 + $0x90] sm:$0xff] %v4728
    %4793 = vst [vmem:[#allocation9 + $0x98] sm:$0xff] %v4729
    %4794 = vst [vmem:[#allocation9 + $0xa0] sm:$0xff] %v4730
    %4795 = vst [vmem:[#allocation9 + $0xa8] sm:$0xff] %v4731
    %4796 = vst [vmem:[#allocation9 + $0xb0] sm:$0xff] %v4732
    %4797 = vst [vmem:[#allocation9 + $0xb8] sm:$0xff] %v4733
    %4798 = vst [vmem:[#allocation9 + $0xc0] sm:$0xff] %v4734
    %4799 = vst [vmem:[#allocation9 + $0xc8] sm:$0xff] %v4735
    %4800 = vst [vmem:[#allocation9 + $0xd0] sm:$0xff] %v4736
    %4801 = vst [vmem:[#allocation9 + $0xd8] sm:$0xff] %v4737
    %4802 = vst [vmem:[#allocation9 + $0xe0] sm:$0xff] %v4738
    %4803 = vst [vmem:[#allocation9 + $0xe8] sm:$0xff] %v4739
    %4804 = vst [vmem:[#allocation9 + $0xf0] sm:$0xff] %v4740
    %4805 = vst [vmem:[#allocation9 + $0xf8] sm:$0xff] %v4741
    %4806 = vst [vmem:[#allocation9 + $0x100] sm:$0xff] %v4742
    %4807 = vst [vmem:[#allocation9 + $0x108] sm:$0xff] %v4743
    %4808 = vst [vmem:[#allocation9 + $0x110] sm:$0xff] %v4744
    %4809 = vst [vmem:[#allocation9 + $0x118] sm:$0xff] %v4745
    %4810 = vst [vmem:[#allocation9 + $0x120] sm:$0xff] %v4746
    %4811 = vst [vmem:[#allocation9 + $0x128] sm:$0xff] %v4747
    %4812 = vst [vmem:[#allocation9 + $0x130] sm:$0xff] %v4748
    %4813 = vst [vmem:[#allocation9 + $0x138] sm:$0xff] %v4749
    %4814 = vst [vmem:[#allocation9 + $0x140] sm:$0xff] %v4750
    %4815 = vst [vmem:[#allocation9 + $0x148] sm:$0xff] %v4751
    %4816 = vst [vmem:[#allocation9 + $0x150] sm:$0xff] %v4752
    %4817 = vst [vmem:[#allocation9 + $0x158] sm:$0xff] %v4753
    %4818 = vst [vmem:[#allocation9 + $0x160] sm:$0xff] %v4754
    %4819 = vst [vmem:[#allocation9 + $0x168] sm:$0xff] %v4755
    %4820 = vst [vmem:[#allocation9 + $0x170] sm:$0xff] %v4756
    %4821 = vst [vmem:[#allocation9 + $0x178] sm:$0xff] %v4757
    %4822 = vst [vmem:[#allocation9 + $0x180] sm:$0xff] %v4758
    %4823 = vst [vmem:[#allocation9 + $0x188] sm:$0xff] %v4759
    %4824 = vst [vmem:[#allocation9 + $0x190] sm:$0xff] %v4760
    %4825 = vst [vmem:[#allocation9 + $0x198] sm:$0xff] %v4761
    %4826 = vst [vmem:[#allocation9 + $0x1a0] sm:$0xff] %v4762
    %4827 = vst [vmem:[#allocation9 + $0x1a8] sm:$0xff] %v4763
    %4828 = vst [vmem:[#allocation9 + $0x1b0] sm:$0xff] %v4764
    %4829 = vst [vmem:[#allocation9 + $0x1b8] sm:$0xff] %v4765
    %4830 = vst [vmem:[#allocation9 + $0x1c0] sm:$0xff] %v4766
    %4831 = vst [vmem:[#allocation9 + $0x1c8] sm:$0xff] %v4767
    %4832 = vst [vmem:[#allocation9 + $0x1d0] sm:$0xff] %v4768
    %4833 = vst [vmem:[#allocation9 + $0x1d8] sm:$0xff] %v4769
    %4834 = vst [vmem:[#allocation9 + $0x1e0] sm:$0xff] %v4770
    %4835 = vst [vmem:[#allocation9 + $0x1e8] sm:$0xff] %v4771
    %4836 = vst [vmem:[#allocation9 + $0x1f0] sm:$0xff] %v4772
    %4837 = vst [vmem:[#allocation9 + $0x1f8] sm:$0xff] %v4773
    // Predicated region
    $region46: #{tpu_custom_call.1} parent=1 // pred_check
      _
    $region47: #{tpu_custom_call.1} parent=1 // pred_check_branch
      %4839 = sbr.rel (0) target = $region49
    $region48: #{tpu_custom_call.1} parent=1 // pred_region
      %s4841 = ssub.s32 8192, 8192
      %4842 = vsyncadd [#allocation5], %s4841
      %s4843 = sshll.u32 [#allocation9], 4
      %s4844 = int_to_ptr.vmem [resolvable:$true] %s4843
      %4849 = dma.vmem_to_hbm [thread:$0]  %s4844, 8192, %s8, [#allocation5], 128, 128, 8
    $region49: #{tpu_custom_call.1} parent=1 // pred_fallthru
      _
    // Predicated region
    $region50: #{tpu_custom_call.1} parent=1 // pred_check
      _
    $region51: #{tpu_custom_call.1} parent=1 // pred_check_branch
      %4851 = sbr.rel (0) target = $region53
    $region52: #{tpu_custom_call.1} parent=1 // pred_region
      %4852 = dma.done [#allocation5], 8192
    $region53: #{tpu_custom_call.1} parent=1 // pred_fallthru
      _
    %4853 = vsyncpa [#allocation4], 1
    %4854 = vsyncpa [#allocation7], 1
    %4855 = vsyncpa [#allocation5], 1

</llo_original>
